<compile_context>
chip_gen: v7x
topology: tpu7x:2x2x1
jax: 0.10.0
libtpu: 0.0.40
codegen_flags: <defaults>
</compile_context>

<pallas_src>
import functools

import jax
import jax.numpy as jnp
from jax import lax
from jax.experimental import pallas as pl
from jax.experimental.pallas import tpu as pltpu


def _pick_tile(dim, target, align):
    """Largest multiple of `align` that divides `dim` and is <= target.

    Falls back to the full dimension only when no aligned divisor exists
    (full-dim blocks always satisfy the (8,128) BlockSpec rule).
    """
    if dim <= target:
        return dim
    cand = (min(target, dim) // align) * align
    while cand >= align:
        if dim % cand == 0:
            return cand
        cand -= align
    return dim


# ----------------------- tiled linear: y = x @ w.T + b ---------------------- #

def _linear_kernel(x_ref, w_ref, b_ref, o_ref, acc_ref, *, dot_dtype):
    k = pl.program_id(2)

    @pl.when(k == 0)
    def _init():
        acc_ref[...] = jnp.zeros_like(acc_ref)

    # Contract last dim of x (tm, tk) with last dim of w (tn, tk): the MXU
    # consumes the PyTorch-layout (out, in) weight directly (no transposed
    # copy, no XLU transpose).  Operands cast to bf16, f32 accumulation.
    acc_ref[...] += lax.dot_general(
        x_ref[...].astype(dot_dtype),
        w_ref[...].astype(dot_dtype),
        (((1,), (1,)), ((), ())),
        preferred_element_type=jnp.float32,
    )

    @pl.when(k == pl.num_programs(2) - 1)
    def _finalize():
        # Bias added once, outside the K reduction loop.
        o_ref[...] = (acc_ref[...] + b_ref[...]).astype(o_ref.dtype)


def linear(x, w, b, *, tm=512, tn=512, tk=512,
           dot_dtype=jnp.bfloat16, out_dtype=None):
    """y = x @ w.T + b with PyTorch-layout weight w: (out_features, in_features)."""
    M, K = x.shape
    N, K2 = w.shape
    assert K == K2, "weight/input feature mismatch"
    out_dtype = x.dtype if out_dtype is None else out_dtype
    tm = _pick_tile(M, tm, 8)     # second-last dim -> sublane aligned
    tn = _pick_tile(N, tn, 128)   # last dim of bias/output -> lane aligned
    tk = _pick_tile(K, tk, 128)   # last dim of x and w blocks -> lane aligned
    b2 = b.reshape(1, N)
    kern = functools.partial(_linear_kernel, dot_dtype=dot_dtype)
    return pl.pallas_call(
        kern,
        out_shape=jax.ShapeDtypeStruct((M, N), out_dtype),
        grid=(M // tm, N // tn, K // tk),
        in_specs=[
            pl.BlockSpec((tm, tk), lambda i, j, k: (i, k)),
            pl.BlockSpec((tn, tk), lambda i, j, k: (j, k)),
            pl.BlockSpec((1, tn), lambda i, j, k: (0, j)),
        ],
        out_specs=pl.BlockSpec((tm, tn), lambda i, j, k: (i, j)),
        scratch_shapes=[pltpu.VMEM((tm, tn), jnp.float32)],
        compiler_params=pltpu.CompilerParams(
            dimension_semantics=("parallel", "parallel", "arbitrary"),
            vmem_limit_bytes=32 * 1024 * 1024),
    )(x, w, b2)


# ---------------- flash-style multi-head attention (unmasked) --------------- #

def _flash_attn_kernel(q_ref, k_ref, v_ref, o_ref, q_sc, m_sc, l_sc, acc_sc, *,
                       scale, dot_dtype):
    kv = pl.program_id(3)

    @pl.when(kv == 0)
    def _init():
        # Scale + cast of q hoisted out of the KV loop: done once per
        # (b, h, qi) tile and reused for all nk KV steps.  Folding the
        # 1/sqrt(D) scale into q costs tq*D muls instead of tq*tk per step.
        q_sc[...] = (q_ref[0].astype(jnp.float32) * scale).astype(dot_dtype)
        m_sc[...] = jnp.full_like(m_sc, -jnp.inf)
        l_sc[...] = jnp.zeros_like(l_sc)
        acc_sc[...] = jnp.zeros_like(acc_sc)

    q = q_sc[...]                                      # (tq, D) bf16, pre-scaled
    k = k_ref[0].astype(dot_dtype)                     # (tk, D) (no-op if bf16)
    v = v_ref[0].astype(dot_dtype)                     # (tk, D)

    # Contract last dims of both operands -> no k.T / XLU transpose.
    s = lax.dot_general(q, k, (((1,), (1,)), ((), ())),
                        preferred_element_type=jnp.float32)   # (tq, tk) f32

    # TODO(synk): mask != None path (masked_fill(-inf) before the max) is not
    # implemented; the PyTorch default forward (mask=None) is what is matched.

    m_prev = m_sc[...]
    m_new = jnp.maximum(m_prev, jnp.max(s, axis=-1, keepdims=True))
    alpha = jnp.exp(m_prev - m_new)
    p = jnp.exp(s - m_new)                             # f32 (v5e-safe)
    l_sc[...] = alpha * l_sc[...] + jnp.sum(p, axis=-1, keepdims=True)
    acc_sc[...] = alpha * acc_sc[...] + jnp.dot(
        p.astype(dot_dtype), v, preferred_element_type=jnp.float32)
    m_sc[...] = m_new

    @pl.when(kv == pl.num_programs(3) - 1)
    def _finalize():
        # Exact reciprocal on the (once per q-tile) final divide.
        inv_l = pl.reciprocal(l_sc[...], approx=False)
        o_ref[0] = (acc_sc[...] * inv_l).astype(o_ref.dtype)


def attention(qkv, head_num, scale, *, tq=256, tk=512,
              dot_dtype=jnp.bfloat16, out_dtype=None):
    """Multi-head scaled-dot-product self-attention (flash / online softmax).

    Reads per-head Q/K/V slices directly from the packed (B, T, 3E) projection
    via BlockSpec index_maps and writes the result in (B, T, E) layout, so no
    head split/merge transposes go through HBM.
    NOTE: head_dim D is expected to be a multiple of 128 to keep blocks
    lane-aligned against the packed 3E axis; otherwise batch heads per block
    or pre-reshape to (B, 3, H, T, D).
    """
    B, T, E3 = qkv.shape
    E = E3 // 3
    H = head_num
    D = E // H
    out_dtype = qkv.dtype if out_dtype is None else out_dtype
    tq = _pick_tile(T, tq, 8)
    tk = _pick_tile(T, tk, 8)
    nq, nk = T // tq, T // tk

    q_spec = pl.BlockSpec((1, tq, D), lambda b, h, qi, ki: (b, qi, h))
    k_spec = pl.BlockSpec((1, tk, D), lambda b, h, qi, ki: (b, ki, H + h))
    v_spec = pl.BlockSpec((1, tk, D), lambda b, h, qi, ki: (b, ki, 2 * H + h))
    o_spec = pl.BlockSpec((1, tq, D), lambda b, h, qi, ki: (b, qi, h))

    kern = functools.partial(_flash_attn_kernel, scale=scale, dot_dtype=dot_dtype)
    return pl.pallas_call(
        kern,
        out_shape=jax.ShapeDtypeStruct((B, T, E), out_dtype),
        grid=(B, H, nq, nk),
        in_specs=[q_spec, k_spec, v_spec],
        out_specs=o_spec,
        scratch_shapes=[
            pltpu.VMEM((tq, D), dot_dtype),     # pre-scaled q tile
            pltpu.VMEM((tq, 1), jnp.float32),   # running max  m
            pltpu.VMEM((tq, 1), jnp.float32),   # running sum  l
            pltpu.VMEM((tq, D), jnp.float32),   # unnormalized accumulator
        ],
        compiler_params=pltpu.CompilerParams(
            dimension_semantics=("parallel", "parallel", "parallel", "arbitrary"),
            vmem_limit_bytes=32 * 1024 * 1024),
    )(qkv, qkv, qkv)


# ------------------------------ module wrapper ------------------------------ #

def multihead_self_attention(x, params, head_num, *,
                             dot_dtype=jnp.bfloat16, inter_dtype=jnp.bfloat16):
    """Forward pass matching the PyTorch module (mask=None)."""
    B, T, E = x.shape
    scale = float(E / head_num) ** (-0.5)

    # QKV projection: bf16 MXU, bf16 intermediate to halve HBM traffic.
    qkv = linear(x.reshape(B * T, E), params["w_qkv"], params["b_qkv"],
                 dot_dtype=dot_dtype, out_dtype=inter_dtype).reshape(B, T, 3 * E)

    # Attention: head split/merge fused into the kernel's BlockSpecs.
    o = attention(qkv, head_num, scale,
                  dot_dtype=dot_dtype, out_dtype=inter_dtype)     # (B, T, E) bf16

    # Output projection, back to the input dtype (f32).
    out = linear(o.reshape(B * T, E), params["w_out"], params["b_out"],
                 dot_dtype=dot_dtype, out_dtype=x.dtype)
    return out.reshape(B, T, E)


# ------------------------------ reference (JAX) ----------------------------- #

def reference(x, params, head_num):
    B, T, E = x.shape
    D = E // head_num
    scale = float(E / head_num) ** (-0.5)
    qkv = x @ params["w_qkv"].T + params["b_qkv"]
    q, k, v = jnp.split(qkv, 3, axis=-1)

    def to_heads(t):
        return t.reshape(B, T, head_num, D).transpose(0, 2, 1, 3).reshape(
            B * head_num, T, D)

    q, k, v = to_heads(q), to_heads(k), to_heads(v)
    w = jnp.einsum("btd,bsd->bts", q, k) * scale
    w = jax.nn.softmax(w, axis=-1)
    o = jnp.einsum("bts,bsd->btd", w, v)
    o = o.reshape(B, head_num, T, D).transpose(0, 2, 1, 3).reshape(B, T, E)
    return o @ params["w_out"].T + params["b_out"]


# ---------------------------------- main ------------------------------------ #

if __name__ == "__main__":
    # Small but lane-aligned shapes: head_dim D = E/H = 128, T = 256, so the
    # flash blocking, the K-tiled linear and the fused head layout are all
    # exercised while arrays stay tiny (< 1 MiB).
    B, T, E, H = 2, 256, 256, 2

    key = jax.random.PRNGKey(0)
    kx, k1, k2, k3, k4 = jax.random.split(key, 5)

    # PyTorch-like init: U(-1/sqrt(fan_in), 1/sqrt(fan_in)), weights (out, in).
    bound = 1.0 / (E ** 0.5)
    params = {
        "w_qkv": jax.random.uniform(k1, (3 * E, E), jnp.float32, -bound, bound),
        "b_qkv": jax.random.uniform(k2, (3 * E,), jnp.float32, -bound, bound),
        "w_out": jax.random.uniform(k3, (E, E), jnp.float32, -bound, bound),
        "b_out": jax.random.uniform(k4, (E,), jnp.float32, -bound, bound),
    }
    x = jax.random.normal(kx, (B, T, E), jnp.float32)

    out = multihead_self_attention(x, params, H)
    out = jax.block_until_ready(out)

    ref = reference(x, params, H)
    assert out.shape == (B, T, E)
    # bf16 MXU operands + bf16 intermediates -> tolerance widened accordingly.
    assert jnp.allclose(out, ref, atol=2e-2, rtol=2e-2), "mismatch vs. reference"

    print("KERNEL_OK")
</pallas_src>

<mosaic_0001>
module attributes {stable_mosaic.version = 11 : i64} {
  func.func @_linear_kernel(%arg0: i32, %arg1: i32, %arg2: i32, %arg3: memref<512x256xf32, #tpu.memory_space<vmem>>, %arg4: memref<384x256xf32, #tpu.memory_space<vmem>>, %arg5: memref<1x384xf32, #tpu.memory_space<vmem>>, %arg6: memref<512x384xbf16, #tpu.memory_space<vmem>>, %arg7: memref<512x384xf32, #tpu.memory_space<vmem>>) attributes {dimension_semantics = [#tpu.dimension_semantics<parallel>, #tpu.dimension_semantics<parallel>, #tpu.dimension_semantics<arbitrary>], iteration_bounds = array<i64: 1, 2, 1>, scalar_prefetch = 0 : i64, scratch_operands = 1 : i64, tpu.core_type = #tpu.core_type<tc>, window_params = [{transform_indices = @transform_0, window_bounds = array<i64: 512, 256>}, {transform_indices = @transform_1, window_bounds = array<i64: 384, 256>}, {transform_indices = @transform_2, window_bounds = array<i64: 1, 384>}, {transform_indices = @transform_3, window_bounds = array<i64: 512, 384>}]} {
    %c0_i32 = arith.constant 0 : i32
    %0 = arith.cmpi eq, %arg2, %c0_i32 : i32
    %1 = arith.extui %0 : i1 to i32
    %c0_i32_0 = arith.constant 0 : i32
    %2 = arith.cmpi ne, %1, %c0_i32_0 : i32
    scf.if %2 {
      %cst_10 = arith.constant 0.000000e+00 : f32
      %14 = vector.broadcast %cst_10 : f32 to vector<512x384xf32>
      %c0_11 = arith.constant 0 : index
      %c0_12 = arith.constant 0 : index
      %15 = vector.load %arg7[%c0_11, %c0_12] : memref<512x384xf32, #tpu.memory_space<vmem>>, vector<512x384xf32>
      tpu.vector_store %arg7[%c0_11, %c0_12], %14 {strides = array<i32>} : memref<512x384xf32, #tpu.memory_space<vmem>>, vector<512x384xf32>,
    } else {
    }
    %c0 = arith.constant 0 : index
    %c0_1 = arith.constant 0 : index
    %3 = vector.load %arg7[%c0, %c0_1] : memref<512x384xf32, #tpu.memory_space<vmem>>, vector<512x384xf32>
    %c0_2 = arith.constant 0 : index
    %c0_3 = arith.constant 0 : index
    %4 = vector.load %arg3[%c0_2, %c0_3] : memref<512x256xf32, #tpu.memory_space<vmem>>, vector<512x256xf32>
    %5 = arith.truncf %4 : vector<512x256xf32> to vector<512x256xbf16>
    %c0_4 = arith.constant 0 : index
    %c0_5 = arith.constant 0 : index
    %6 = vector.load %arg4[%c0_4, %c0_5] : memref<384x256xf32, #tpu.memory_space<vmem>>, vector<384x256xf32>
    %7 = arith.truncf %6 : vector<384x256xf32> to vector<384x256xbf16>
    %cst = arith.constant dense<0.000000e+00> : vector<512x384xf32>
    %8 = tpu.matmul %5, %7, %cst {dimension_numbers = #tpu.dot_dimension_numbers<[1], [1], [0], [0], [0, 0, 1, 0], [], []>} : vector<512x256xbf16>, vector<384x256xbf16>, vector<512x384xf32> -> vector<512x384xf32>
    %9 = arith.addf %3, %8 : vector<512x384xf32>
    %c0_6 = arith.constant 0 : index
    %c0_7 = arith.constant 0 : index
    %10 = vector.load %arg7[%c0_6, %c0_7] : memref<512x384xf32, #tpu.memory_space<vmem>>, vector<512x384xf32>
    tpu.vector_store %arg7[%c0_6, %c0_7], %9 {strides = array<i32>} : memref<512x384xf32, #tpu.memory_space<vmem>>, vector<512x384xf32>,
    %c0_i32_8 = arith.constant 0 : i32
    %11 = arith.cmpi eq, %arg2, %c0_i32_8 : i32
    %12 = arith.extui %11 : i1 to i32
    %c0_i32_9 = arith.constant 0 : i32
    %13 = arith.cmpi ne, %12, %c0_i32_9 : i32
    scf.if %13 {
      %c0_10 = arith.constant 0 : index
      %c0_11 = arith.constant 0 : index
      %14 = vector.load %arg7[%c0_10, %c0_11] : memref<512x384xf32, #tpu.memory_space<vmem>>, vector<512x384xf32>
      %c0_12 = arith.constant 0 : index
      %c0_13 = arith.constant 0 : index
      %15 = vector.load %arg5[%c0_12, %c0_13] : memref<1x384xf32, #tpu.memory_space<vmem>>, vector<1x384xf32>
      %16 = vector.broadcast %15 : vector<1x384xf32> to vector<512x384xf32>
      %17 = arith.addf %14, %16 : vector<512x384xf32>
      %18 = arith.truncf %17 : vector<512x384xf32> to vector<512x384xbf16>
      %c0_14 = arith.constant 0 : index
      %c0_15 = arith.constant 0 : index
      %19 = vector.load %arg6[%c0_14, %c0_15] : memref<512x384xbf16, #tpu.memory_space<vmem>>, vector<512x384xbf16>
      tpu.vector_store %arg6[%c0_14, %c0_15], %18 {strides = array<i32>} : memref<512x384xbf16, #tpu.memory_space<vmem>>, vector<512x384xbf16>,
    } else {
    }
    return
  }
  func.func @transform_0(%arg0: i32, %arg1: i32, %arg2: i32) -> (i32, i32) {
    %c0_i32 = arith.constant 0 : i32
    return %arg0, %arg2 : i32, i32
  }
  func.func @transform_1(%arg0: i32, %arg1: i32, %arg2: i32) -> (i32, i32) {
    %c0_i32 = arith.constant 0 : i32
    return %arg1, %arg2 : i32, i32
  }
  func.func @transform_2(%arg0: i32, %arg1: i32, %arg2: i32) -> (i32, i32) {
    %c0_i32 = arith.constant 0 : i32
    %c0_i32_0 = arith.constant 0 : i32
    return %c0_i32, %arg1 : i32, i32
  }
  func.func @transform_3(%arg0: i32, %arg1: i32, %arg2: i32) -> (i32, i32) {
    %c0_i32 = arith.constant 0 : i32
    return %arg0, %arg1 : i32, i32
  }
}

</mosaic_0001>

<llo_original>
// kernel: tpu_custom_call.1
$region0: #{tpu_custom_call.1}
  #allocation0 [shape = 'u32[]', space=smem, size = 0x4, offset = 0x4, fixed_abs, tag = 'smem constant byte address 0x4 - core index']
  #allocation1 [shape = 'u32[144,128]{1,0:T(1,128)}', space=vmem, size = 0x12000, scoped, tag = 'internal scratch']
  #allocation2 [shape = 'f32[512,384]{1,0:T(8,128)}', space=vmem, size = 0xc0000, scoped, tag = 'scratch operand']
  %s0 = inlined_call_operand.hbm [shape: f32[512,256], index: 0, kind: input, shape index: {}]
  %s1 = inlined_call_operand.hbm [shape: f32[768,256], index: 1, kind: input, shape index: {}]
  %s2 = inlined_call_operand.vmem [shape: f32[1,768], index: 2, kind: input, shape index: {}]
  %s3 = inlined_call_operand.hbm [shape: bf16[512,768], index: 3, kind: output, shape index: {}]
  %s4 = sld [smem:[#allocation0]]
  $region61: #{tpu_custom_call.1} parent=0
    _
  %s6 = ssub.s32 1, %s4
  %s7 = scalar_select 0, %s6, %s4
  $region1: #{tpu_custom_call.1} parent=0
    #allocation3 [shape = 'u8[524288]{0}', space=vmem, size = 0x80000, scoped, tag = 'input window, operand 0, single buffered']
    #allocation4 [shape = 's32[2]{0}', space=sflag, size = 0x8, scoped, tag = 'scoped memory for tpu_custom_call.1']
    #allocation5 [shape = 's32[2]{0}', space=sflag, size = 0x8, scoped, tag = 'scoped memory for tpu_custom_call.1']
    #allocation6 [shape = 'u8[786432]{0}', space=vmem, size = 0xc0000, scoped, tag = 'input window, operand 1']
    #allocation7 [shape = 's32[2]{0}', space=sflag, size = 0x8, scoped, tag = 'scoped memory for tpu_custom_call.1']
    #allocation8 [shape = 'u8[786432]{0}', space=vmem, size = 0xc0000, scoped, tag = 'output window, operand 0']
    %8 = vsyncpa [#allocation4], 0
    %9 = vsyncpa [#allocation7], 0
    %s10 = scalar_lea.sflag [#allocation7], 1
    %11 = vsyncpa %s10, 0
    %12 = vsyncpa [#allocation5], 0
    %s13 = scalar_lea.sflag [#allocation5], 1
    %14 = vsyncpa %s13, 0
    loop: start=0, step=1, limit=4
    $region2: #{tpu_custom_call.1} parent=1 // loop_pre_header
      _
    $region3: #{tpu_custom_call.1} parent=1 // loop_header
      %s16 = sphi 0, %s20
      %p17 = scmp.ge.s32.totalorder %s16, 4
      %s23 = sphi 0, %s42
      %s24 = sphi 0, %s38
      %s25 = sphi 0, %s34
      %s26 = sphi 0, %s23
      %s27 = sphi 0, %s24
      %s28 = sphi 0, %s25
      %s29 = sphi 0, %s26
      %s30 = sphi 0, %s27
      %s31 = sphi 0, %s28
      %s47 = sphi 0, %s49
      %s50 = sphi 0, %s47
      %s51 = sphi 0, %s50
      %s67 = sphi 0, %s51
      %s75 = sphi 0, %s77
      %s78 = sphi 0, %s75
      %s79 = sphi 0, %s78
      %s95 = sphi 0, %s79
      %s101 = sphi 0, %s103
      %s104 = sphi 0, %s101
      %s105 = sphi 0, %s104
      %s121 = sphi 0, %s105
      %s129 = sphi 0, %s131
      %s132 = sphi 0, %s129
      %s133 = sphi 0, %s132
      %s149 = sphi 0, %s133
    $region4: #{tpu_custom_call.1} parent=1 // loop_header_branch
      %19 = sbr.rel (%p17) target = $region8
    $region5: #{tpu_custom_call.1} parent=1 // loop_body
      %s21 = ssub.s32 %s16, 1
      %s22 = ssub.s32 %s16, 2
      %s32 = sadd.s32 1, %s25
      %p33 = scmp.ge.s32.totalorder %s32, 1
      %s34 = scalar_select %p33, 0, %s32
      %s35 = sadd.s32 1, %s24
      %s36 = scalar_select %p33, %s35, %s24
      %p37 = scmp.ge.s32.totalorder %s36, 2
      %s38 = scalar_select %p37, 0, %s36
      %s39 = sadd.s32 1, %s23
      %s40 = scalar_select %p37, %s39, %s23
      %p41 = scmp.ge.s32.totalorder %s40, 1
      %s42 = scalar_select %p41, 0, %s40
      %s43 = ssub.s32 %s23, %s42
      %s44 = ssub.s32 %s25, %s34
      %s45 = sor.u32 %s43, %s44
      %p46 = scmp.eq.s32.totalorder %s45, 0
      %s48 = sadd.s32 %s47, 1
      %s49 = scalar_select %p46, %s47, %s48
      %p52 = pneg %p46
      %p53 = scmp.eq.s32.totalorder %s16, 1
      %p54 = por %p52, %p53
      %p55 = scmp.ne.s32.totalorder %s47, %s50
      %p56 = scmp.eq.s32.totalorder %s16, 0
      %p57 = por %p55, %p56
      %p58 = scmp.ne.s32.totalorder %s47, %s50
      %p59 = scmp.eq.s32.totalorder %s21, 1
      %p60 = por %p58, %p59
      %p61 = scmp.ne.s32.totalorder %s50, %s51
      %p62 = scmp.eq.s32.totalorder %s21, 0
      %p63 = por %p61, %p62
      %p64 = scmp.ne.s32.totalorder %s50, %s51
      %p65 = scmp.eq.s32.totalorder %s22, 1
      %p66 = por %p64, %p65
      %p68 = scmp.ne.s32.totalorder %s51, %s67
      %p69 = scmp.eq.s32.totalorder %s22, 0
      %p70 = por %p68, %p69
      %s71 = ssub.s32 %s24, %s38
      %s72 = ssub.s32 %s25, %s34
      %s73 = sor.u32 %s71, %s72
      %p74 = scmp.eq.s32.totalorder %s73, 0
      %s76 = sadd.s32 %s75, 1
      %s77 = scalar_select %p74, %s75, %s76
      %p80 = pneg %p74
      %p81 = scmp.eq.s32.totalorder %s16, 1
      %p82 = por %p80, %p81
      %p83 = scmp.ne.s32.totalorder %s75, %s78
      %p84 = scmp.eq.s32.totalorder %s16, 0
      %p85 = por %p83, %p84
      %p86 = scmp.ne.s32.totalorder %s75, %s78
      %p87 = scmp.eq.s32.totalorder %s21, 1
      %p88 = por %p86, %p87
      %p89 = scmp.ne.s32.totalorder %s78, %s79
      %p90 = scmp.eq.s32.totalorder %s21, 0
      %p91 = por %p89, %p90
      %p92 = scmp.ne.s32.totalorder %s78, %s79
      %p93 = scmp.eq.s32.totalorder %s22, 1
      %p94 = por %p92, %p93
      %p96 = scmp.ne.s32.totalorder %s79, %s95
      %p97 = scmp.eq.s32.totalorder %s22, 0
      %p98 = por %p96, %p97
      %s99 = ssub.s32 %s24, %s38
      %p100 = scmp.eq.s32.totalorder %s99, 0
      %s102 = sadd.s32 %s101, 1
      %s103 = scalar_select %p100, %s101, %s102
      %p106 = pneg %p100
      %p107 = scmp.eq.s32.totalorder %s16, 1
      %p108 = por %p106, %p107
      %p109 = scmp.ne.s32.totalorder %s101, %s104
      %p110 = scmp.eq.s32.totalorder %s16, 0
      %p111 = por %p109, %p110
      %p112 = scmp.ne.s32.totalorder %s101, %s104
      %p113 = scmp.eq.s32.totalorder %s21, 1
      %p114 = por %p112, %p113
      %p115 = scmp.ne.s32.totalorder %s104, %s105
      %p116 = scmp.eq.s32.totalorder %s21, 0
      %p117 = por %p115, %p116
      %p118 = scmp.ne.s32.totalorder %s104, %s105
      %p119 = scmp.eq.s32.totalorder %s22, 1
      %p120 = por %p118, %p119
      %p122 = scmp.ne.s32.totalorder %s105, %s121
      %p123 = scmp.eq.s32.totalorder %s22, 0
      %p124 = por %p122, %p123
      %s125 = ssub.s32 %s23, %s42
      %s126 = ssub.s32 %s24, %s38
      %s127 = sor.u32 %s125, %s126
      %p128 = scmp.eq.s32.totalorder %s127, 0
      %s130 = sadd.s32 %s129, 1
      %s131 = scalar_select %p128, %s129, %s130
      %p134 = pneg %p128
      %p135 = scmp.eq.s32.totalorder %s16, 1
      %p136 = por %p134, %p135
      %p137 = scmp.ne.s32.totalorder %s129, %s132
      %p138 = scmp.eq.s32.totalorder %s16, 0
      %p139 = por %p137, %p138
      %p140 = scmp.ne.s32.totalorder %s129, %s132
      %p141 = scmp.eq.s32.totalorder %s21, 1
      %p142 = por %p140, %p141
      %p143 = scmp.ne.s32.totalorder %s132, %s133
      %p144 = scmp.eq.s32.totalorder %s21, 0
      %p145 = por %p143, %p144
      %p146 = scmp.ne.s32.totalorder %s132, %s133
      %p147 = scmp.eq.s32.totalorder %s22, 1
      %p148 = por %p146, %p147
      %p150 = scmp.ne.s32.totalorder %s133, %s149
      %p151 = scmp.eq.s32.totalorder %s22, 0
      %p152 = por %p150, %p151
      %p153 = scmp.le.s32.totalorder 1, %s16
      %p154 = scmp.lt.s32.totalorder %s16, 3
      %p155 = pnand %p153, %p154
      %p156 = pneg %p155
      // Predicated region
      $region9: #{tpu_custom_call.1} parent=5 // pred_check
        _
      $region10: #{tpu_custom_call.1} parent=5 // pred_check_branch
        %158 = sbr.rel (%p155) target = $region12
      $region11: #{tpu_custom_call.1} parent=5 // pred_region
        %s159 = ssub.s32 %s16, 1
        // Predicated region
        $region13: #{tpu_custom_call.1} parent=11 // pred_check
          %p160 = pneg %p63
        $region14: #{tpu_custom_call.1} parent=11 // pred_check_branch
          %162 = sbr.rel (%p160) target = $region16
        $region15: #{tpu_custom_call.1} parent=11 // pred_region
          %s163 = smul.u32 64, %s26
          %s164 = smul.u32 2, %s28
          %s166 = ssub.s32 16384, 16384
          %167 = vsyncadd [#allocation4], %s166
          %s168 = smul.addr %s163, 2
          %s169 = sadd.s32 %s164, %s168
          %s170 = smul.addr %s169, 128
          %s171 = scalar_lea.hbm %s0, %s170
          %s172 = sshll.u32 [#allocation3], 4
          %s173 = int_to_ptr.vmem [resolvable:$true] %s172
          %178 = dma.hbm_to_vmem [thread:$0]  %s171, 16384, %s173, [#allocation4], 256, 256, 16
        $region16: #{tpu_custom_call.1} parent=11 // pred_fallthru
          _
      $region12: #{tpu_custom_call.1} parent=5 // pred_fallthru
        _
      %p179 = scmp.lt.s32.totalorder %s16, 2
      // Predicated region
      $region17: #{tpu_custom_call.1} parent=5 // pred_check
        %p180 = pneg %p179
      $region18: #{tpu_custom_call.1} parent=5 // pred_check_branch
        %182 = sbr.rel (%p180) target = $region20
      $region19: #{tpu_custom_call.1} parent=5 // pred_region
        // Predicated region
        $region21: #{tpu_custom_call.1} parent=19 // pred_check
          %p183 = pneg %p85
        $region22: #{tpu_custom_call.1} parent=19 // pred_check_branch
          %185 = sbr.rel (%p183) target = $region24
        $region23: #{tpu_custom_call.1} parent=19 // pred_region
          %s186 = sand.u32 %s75, 1
          %s187 = scalar_lea.sflag [#allocation7], %s186
          %s188 = sand.u32 %s75, 1
          %s189 = smul.addr %s188, 768
          %s190 = scalar_lea.vmem [#allocation6], %s189
          %s191 = smul.u32 48, %s24
          %s192 = smul.u32 2, %s25
          %s194 = ssub.s32 12288, 12288
          %195 = vsyncadd %s187, %s194
          %s196 = smul.addr %s191, 2
          %s197 = sadd.s32 %s192, %s196
          %s198 = smul.addr %s197, 128
          %s199 = scalar_lea.hbm %s1, %s198
          %s200 = sshll.u32 %s190, 4
          %s201 = int_to_ptr.vmem [resolvable:$true] %s200
          %206 = dma.hbm_to_vmem [thread:$0]  %s199, 12288, %s201, %s187, 256, 256, 16
        $region24: #{tpu_custom_call.1} parent=19 // pred_fallthru
          _
        // Predicated region
        $region25: #{tpu_custom_call.1} parent=19 // pred_check
          %p207 = pneg %p111
        $region26: #{tpu_custom_call.1} parent=19 // pred_check_branch
          %209 = sbr.rel (%p207) target = $region28
        $region27: #{tpu_custom_call.1} parent=19 // pred_region
          %s210 = smul.u32 3, %s24
          %p211 = scmp.lt.s32.totalorder %s210, 5
          %s212 = scalar_select %p211, %s210, 5
          %s213 = scalar_lea.vmem %s2, %s212
          %s214 = smul.u32 3, %s24
        $region28: #{tpu_custom_call.1} parent=19 // pred_fallthru
          _
      $region20: #{tpu_custom_call.1} parent=5 // pred_fallthru
        _
      %p215 = scmp.le.s32.totalorder 1, %s16
      %p216 = scmp.lt.s32.totalorder %s16, 3
      %p217 = pnand %p215, %p216
      %p218 = pneg %p217
      // Predicated region
      $region29: #{tpu_custom_call.1} parent=5 // pred_check
        _
      $region30: #{tpu_custom_call.1} parent=5 // pred_check_branch
        %220 = sbr.rel (%p217) target = $region32
      $region31: #{tpu_custom_call.1} parent=5 // pred_region
        %s221 = ssub.s32 %s16, 1
        // Predicated region
        $region33: #{tpu_custom_call.1} parent=31 // pred_check
          %p222 = pneg %p63
        $region34: #{tpu_custom_call.1} parent=31 // pred_check_branch
          %224 = sbr.rel (%p222) target = $region36
        $region35: #{tpu_custom_call.1} parent=31 // pred_region
          %225 = dma.done [#allocation4], 16384
        $region36: #{tpu_custom_call.1} parent=31 // pred_fallthru
          _
        %s226 = sand.u32 %s78, 1
        %s227 = scalar_lea.sflag [#allocation7], %s226
        %s228 = sand.u32 %s78, 1
        %s229 = smul.addr %s228, 768
        %s230 = scalar_lea.vmem [#allocation6], %s229
        // Predicated region
        $region37: #{tpu_custom_call.1} parent=31 // pred_check
          %p231 = pneg %p91
        $region38: #{tpu_custom_call.1} parent=31 // pred_check_branch
          %233 = sbr.rel (%p231) target = $region40
        $region39: #{tpu_custom_call.1} parent=31 // pred_region
          %234 = dma.done %s227, 12288
        $region40: #{tpu_custom_call.1} parent=31 // pred_fallthru
          _
        %p235 = pneg %p63
        %p236 = pneg %p60
        %s237 = sand.u32 %s78, 1
        %s238 = scalar_lea.sflag [#allocation7], %s237
        %s239 = sand.u32 %s78, 1
        %s240 = smul.addr %s239, 768
        %s241 = scalar_lea.vmem [#allocation6], %s240
        %p242 = pneg %p91
        %p243 = pneg %p88
        %s244 = smul.u32 3, %s27
        %p245 = scmp.lt.s32.totalorder %s244, 5
        %s246 = scalar_select %p245, %s244, 5
        %s247 = scalar_lea.vmem %s2, %s246
        %p248 = pneg %p117
        %p249 = pneg %p114
        %p250 = pneg %p145
        %p251 = pneg %p142
        %s252 = sand.u32 %s132, 1
        %s253 = scalar_lea.sflag [#allocation5], %s252
        %s254 = sand.u32 %s132, 1
        %s255 = smul.addr %s254, 768
        %s256 = scalar_lea.vmem [#allocation8], %s255
        %s257 = smul.u32 64, %s26
        %s258 = smul.u32 2, %s28
        %s259 = smul.u32 48, %s27
        %s260 = smul.u32 2, %s28
        %s261 = smul.u32 3, %s27
        %p262 = scmp.lt.s32.totalorder %s261, 5
        %s263 = scalar_select %p262, %s261, 5
        %s264 = scalar_lea.vmem %s2, %s263
        %s265 = smul.u32 3, %s27
        %s266 = smul.u32 64, %s26
        %s267 = smul.u32 3, %s27
        %p269 = scmp.eq.s32.totalorder %s28, 0
        // Predicated region
        $region41: #{tpu_custom_call.1} parent=31 // pred_check
          %p270 = pneg %p269
        $region42: #{tpu_custom_call.1} parent=31 // pred_check_branch
          %272 = sbr.rel (%p270) target = $region44
        $region43: #{tpu_custom_call.1} parent=31 // pred_region
          %273 = vst [vmem:[#allocation2] sm:$0xff] 0.0
          %274 = vst [vmem:[#allocation2 + $0x8] sm:$0xff] 0.0
          %275 = vst [vmem:[#allocation2 + $0x10] sm:$0xff] 0.0
          %276 = vst [vmem:[#allocation2 + $0x18] sm:$0xff] 0.0
          %277 = vst [vmem:[#allocation2 + $0x20] sm:$0xff] 0.0
          %278 = vst [vmem:[#allocation2 + $0x28] sm:$0xff] 0.0
          %279 = vst [vmem:[#allocation2 + $0x30] sm:$0xff] 0.0
          %280 = vst [vmem:[#allocation2 + $0x38] sm:$0xff] 0.0
          %281 = vst [vmem:[#allocation2 + $0x40] sm:$0xff] 0.0
          %282 = vst [vmem:[#allocation2 + $0x48] sm:$0xff] 0.0
          %283 = vst [vmem:[#allocation2 + $0x50] sm:$0xff] 0.0
          %284 = vst [vmem:[#allocation2 + $0x58] sm:$0xff] 0.0
          %285 = vst [vmem:[#allocation2 + $0x60] sm:$0xff] 0.0
          %286 = vst [vmem:[#allocation2 + $0x68] sm:$0xff] 0.0
          %287 = vst [vmem:[#allocation2 + $0x70] sm:$0xff] 0.0
          %288 = vst [vmem:[#allocation2 + $0x78] sm:$0xff] 0.0
          %289 = vst [vmem:[#allocation2 + $0x80] sm:$0xff] 0.0
          %290 = vst [vmem:[#allocation2 + $0x88] sm:$0xff] 0.0
          %291 = vst [vmem:[#allocation2 + $0x90] sm:$0xff] 0.0
          %292 = vst [vmem:[#allocation2 + $0x98] sm:$0xff] 0.0
          %293 = vst [vmem:[#allocation2 + $0xa0] sm:$0xff] 0.0
          %294 = vst [vmem:[#allocation2 + $0xa8] sm:$0xff] 0.0
          %295 = vst [vmem:[#allocation2 + $0xb0] sm:$0xff] 0.0
          %296 = vst [vmem:[#allocation2 + $0xb8] sm:$0xff] 0.0
          %297 = vst [vmem:[#allocation2 + $0xc0] sm:$0xff] 0.0
          %298 = vst [vmem:[#allocation2 + $0xc8] sm:$0xff] 0.0
          %299 = vst [vmem:[#allocation2 + $0xd0] sm:$0xff] 0.0
          %300 = vst [vmem:[#allocation2 + $0xd8] sm:$0xff] 0.0
          %301 = vst [vmem:[#allocation2 + $0xe0] sm:$0xff] 0.0
          %302 = vst [vmem:[#allocation2 + $0xe8] sm:$0xff] 0.0
          %303 = vst [vmem:[#allocation2 + $0xf0] sm:$0xff] 0.0
          %304 = vst [vmem:[#allocation2 + $0xf8] sm:$0xff] 0.0
          %305 = vst [vmem:[#allocation2 + $0x100] sm:$0xff] 0.0
          %306 = vst [vmem:[#allocation2 + $0x108] sm:$0xff] 0.0
          %307 = vst [vmem:[#allocation2 + $0x110] sm:$0xff] 0.0
          %308 = vst [vmem:[#allocation2 + $0x118] sm:$0xff] 0.0
          %309 = vst [vmem:[#allocation2 + $0x120] sm:$0xff] 0.0
          %310 = vst [vmem:[#allocation2 + $0x128] sm:$0xff] 0.0
          %311 = vst [vmem:[#allocation2 + $0x130] sm:$0xff] 0.0
          %312 = vst [vmem:[#allocation2 + $0x138] sm:$0xff] 0.0
          %313 = vst [vmem:[#allocation2 + $0x140] sm:$0xff] 0.0
          %314 = vst [vmem:[#allocation2 + $0x148] sm:$0xff] 0.0
          %315 = vst [vmem:[#allocation2 + $0x150] sm:$0xff] 0.0
          %316 = vst [vmem:[#allocation2 + $0x158] sm:$0xff] 0.0
          %317 = vst [vmem:[#allocation2 + $0x160] sm:$0xff] 0.0
          %318 = vst [vmem:[#allocation2 + $0x168] sm:$0xff] 0.0
          %319 = vst [vmem:[#allocation2 + $0x170] sm:$0xff] 0.0
          %320 = vst [vmem:[#allocation2 + $0x178] sm:$0xff] 0.0
          %321 = vst [vmem:[#allocation2 + $0x180] sm:$0xff] 0.0
          %322 = vst [vmem:[#allocation2 + $0x188] sm:$0xff] 0.0
          %323 = vst [vmem:[#allocation2 + $0x190] sm:$0xff] 0.0
          %324 = vst [vmem:[#allocation2 + $0x198] sm:$0xff] 0.0
          %325 = vst [vmem:[#allocation2 + $0x1a0] sm:$0xff] 0.0
          %326 = vst [vmem:[#allocation2 + $0x1a8] sm:$0xff] 0.0
          %327 = vst [vmem:[#allocation2 + $0x1b0] sm:$0xff] 0.0
          %328 = vst [vmem:[#allocation2 + $0x1b8] sm:$0xff] 0.0
          %329 = vst [vmem:[#allocation2 + $0x1c0] sm:$0xff] 0.0
          %330 = vst [vmem:[#allocation2 + $0x1c8] sm:$0xff] 0.0
          %331 = vst [vmem:[#allocation2 + $0x1d0] sm:$0xff] 0.0
          %332 = vst [vmem:[#allocation2 + $0x1d8] sm:$0xff] 0.0
          %333 = vst [vmem:[#allocation2 + $0x1e0] sm:$0xff] 0.0
          %334 = vst [vmem:[#allocation2 + $0x1e8] sm:$0xff] 0.0
          %335 = vst [vmem:[#allocation2 + $0x1f0] sm:$0xff] 0.0
          %336 = vst [vmem:[#allocation2 + $0x1f8] sm:$0xff] 0.0
          %337 = vst [vmem:[#allocation2 + $0x200] sm:$0xff] 0.0
          %338 = vst [vmem:[#allocation2 + $0x208] sm:$0xff] 0.0
          %339 = vst [vmem:[#allocation2 + $0x210] sm:$0xff] 0.0
          %340 = vst [vmem:[#allocation2 + $0x218] sm:$0xff] 0.0
          %341 = vst [vmem:[#allocation2 + $0x220] sm:$0xff] 0.0
          %342 = vst [vmem:[#allocation2 + $0x228] sm:$0xff] 0.0
          %343 = vst [vmem:[#allocation2 + $0x230] sm:$0xff] 0.0
          %344 = vst [vmem:[#allocation2 + $0x238] sm:$0xff] 0.0
          %345 = vst [vmem:[#allocation2 + $0x240] sm:$0xff] 0.0
          %346 = vst [vmem:[#allocation2 + $0x248] sm:$0xff] 0.0
          %347 = vst [vmem:[#allocation2 + $0x250] sm:$0xff] 0.0
          %348 = vst [vmem:[#allocation2 + $0x258] sm:$0xff] 0.0
          %349 = vst [vmem:[#allocation2 + $0x260] sm:$0xff] 0.0
          %350 = vst [vmem:[#allocation2 + $0x268] sm:$0xff] 0.0
          %351 = vst [vmem:[#allocation2 + $0x270] sm:$0xff] 0.0
          %352 = vst [vmem:[#allocation2 + $0x278] sm:$0xff] 0.0
          %353 = vst [vmem:[#allocation2 + $0x280] sm:$0xff] 0.0
          %354 = vst [vmem:[#allocation2 + $0x288] sm:$0xff] 0.0
          %355 = vst [vmem:[#allocation2 + $0x290] sm:$0xff] 0.0
          %356 = vst [vmem:[#allocation2 + $0x298] sm:$0xff] 0.0
          %357 = vst [vmem:[#allocation2 + $0x2a0] sm:$0xff] 0.0
          %358 = vst [vmem:[#allocation2 + $0x2a8] sm:$0xff] 0.0
          %359 = vst [vmem:[#allocation2 + $0x2b0] sm:$0xff] 0.0
          %360 = vst [vmem:[#allocation2 + $0x2b8] sm:$0xff] 0.0
          %361 = vst [vmem:[#allocation2 + $0x2c0] sm:$0xff] 0.0
          %362 = vst [vmem:[#allocation2 + $0x2c8] sm:$0xff] 0.0
          %363 = vst [vmem:[#allocation2 + $0x2d0] sm:$0xff] 0.0
          %364 = vst [vmem:[#allocation2 + $0x2d8] sm:$0xff] 0.0
          %365 = vst [vmem:[#allocation2 + $0x2e0] sm:$0xff] 0.0
          %366 = vst [vmem:[#allocation2 + $0x2e8] sm:$0xff] 0.0
          %367 = vst [vmem:[#allocation2 + $0x2f0] sm:$0xff] 0.0
          %368 = vst [vmem:[#allocation2 + $0x2f8] sm:$0xff] 0.0
          %369 = vst [vmem:[#allocation2 + $0x300] sm:$0xff] 0.0
          %370 = vst [vmem:[#allocation2 + $0x308] sm:$0xff] 0.0
          %371 = vst [vmem:[#allocation2 + $0x310] sm:$0xff] 0.0
          %372 = vst [vmem:[#allocation2 + $0x318] sm:$0xff] 0.0
          %373 = vst [vmem:[#allocation2 + $0x320] sm:$0xff] 0.0
          %374 = vst [vmem:[#allocation2 + $0x328] sm:$0xff] 0.0
          %375 = vst [vmem:[#allocation2 + $0x330] sm:$0xff] 0.0
          %376 = vst [vmem:[#allocation2 + $0x338] sm:$0xff] 0.0
          %377 = vst [vmem:[#allocation2 + $0x340] sm:$0xff] 0.0
          %378 = vst [vmem:[#allocation2 + $0x348] sm:$0xff] 0.0
          %379 = vst [vmem:[#allocation2 + $0x350] sm:$0xff] 0.0
          %380 = vst [vmem:[#allocation2 + $0x358] sm:$0xff] 0.0
          %381 = vst [vmem:[#allocation2 + $0x360] sm:$0xff] 0.0
          %382 = vst [vmem:[#allocation2 + $0x368] sm:$0xff] 0.0
          %383 = vst [vmem:[#allocation2 + $0x370] sm:$0xff] 0.0
          %384 = vst [vmem:[#allocation2 + $0x378] sm:$0xff] 0.0
          %385 = vst [vmem:[#allocation2 + $0x380] sm:$0xff] 0.0
          %386 = vst [vmem:[#allocation2 + $0x388] sm:$0xff] 0.0
          %387 = vst [vmem:[#allocation2 + $0x390] sm:$0xff] 0.0
          %388 = vst [vmem:[#allocation2 + $0x398] sm:$0xff] 0.0
          %389 = vst [vmem:[#allocation2 + $0x3a0] sm:$0xff] 0.0
          %390 = vst [vmem:[#allocation2 + $0x3a8] sm:$0xff] 0.0
          %391 = vst [vmem:[#allocation2 + $0x3b0] sm:$0xff] 0.0
          %392 = vst [vmem:[#allocation2 + $0x3b8] sm:$0xff] 0.0
          %393 = vst [vmem:[#allocation2 + $0x3c0] sm:$0xff] 0.0
          %394 = vst [vmem:[#allocation2 + $0x3c8] sm:$0xff] 0.0
          %395 = vst [vmem:[#allocation2 + $0x3d0] sm:$0xff] 0.0
          %396 = vst [vmem:[#allocation2 + $0x3d8] sm:$0xff] 0.0
          %397 = vst [vmem:[#allocation2 + $0x3e0] sm:$0xff] 0.0
          %398 = vst [vmem:[#allocation2 + $0x3e8] sm:$0xff] 0.0
          %399 = vst [vmem:[#allocation2 + $0x3f0] sm:$0xff] 0.0
          %400 = vst [vmem:[#allocation2 + $0x3f8] sm:$0xff] 0.0
          %401 = vst [vmem:[#allocation2 + $0x400] sm:$0xff] 0.0
          %402 = vst [vmem:[#allocation2 + $0x408] sm:$0xff] 0.0
          %403 = vst [vmem:[#allocation2 + $0x410] sm:$0xff] 0.0
          %404 = vst [vmem:[#allocation2 + $0x418] sm:$0xff] 0.0
          %405 = vst [vmem:[#allocation2 + $0x420] sm:$0xff] 0.0
          %406 = vst [vmem:[#allocation2 + $0x428] sm:$0xff] 0.0
          %407 = vst [vmem:[#allocation2 + $0x430] sm:$0xff] 0.0
          %408 = vst [vmem:[#allocation2 + $0x438] sm:$0xff] 0.0
          %409 = vst [vmem:[#allocation2 + $0x440] sm:$0xff] 0.0
          %410 = vst [vmem:[#allocation2 + $0x448] sm:$0xff] 0.0
          %411 = vst [vmem:[#allocation2 + $0x450] sm:$0xff] 0.0
          %412 = vst [vmem:[#allocation2 + $0x458] sm:$0xff] 0.0
          %413 = vst [vmem:[#allocation2 + $0x460] sm:$0xff] 0.0
          %414 = vst [vmem:[#allocation2 + $0x468] sm:$0xff] 0.0
          %415 = vst [vmem:[#allocation2 + $0x470] sm:$0xff] 0.0
          %416 = vst [vmem:[#allocation2 + $0x478] sm:$0xff] 0.0
          %417 = vst [vmem:[#allocation2 + $0x480] sm:$0xff] 0.0
          %418 = vst [vmem:[#allocation2 + $0x488] sm:$0xff] 0.0
          %419 = vst [vmem:[#allocation2 + $0x490] sm:$0xff] 0.0
          %420 = vst [vmem:[#allocation2 + $0x498] sm:$0xff] 0.0
          %421 = vst [vmem:[#allocation2 + $0x4a0] sm:$0xff] 0.0
          %422 = vst [vmem:[#allocation2 + $0x4a8] sm:$0xff] 0.0
          %423 = vst [vmem:[#allocation2 + $0x4b0] sm:$0xff] 0.0
          %424 = vst [vmem:[#allocation2 + $0x4b8] sm:$0xff] 0.0
          %425 = vst [vmem:[#allocation2 + $0x4c0] sm:$0xff] 0.0
          %426 = vst [vmem:[#allocation2 + $0x4c8] sm:$0xff] 0.0
          %427 = vst [vmem:[#allocation2 + $0x4d0] sm:$0xff] 0.0
          %428 = vst [vmem:[#allocation2 + $0x4d8] sm:$0xff] 0.0
          %429 = vst [vmem:[#allocation2 + $0x4e0] sm:$0xff] 0.0
          %430 = vst [vmem:[#allocation2 + $0x4e8] sm:$0xff] 0.0
          %431 = vst [vmem:[#allocation2 + $0x4f0] sm:$0xff] 0.0
          %432 = vst [vmem:[#allocation2 + $0x4f8] sm:$0xff] 0.0
          %433 = vst [vmem:[#allocation2 + $0x500] sm:$0xff] 0.0
          %434 = vst [vmem:[#allocation2 + $0x508] sm:$0xff] 0.0
          %435 = vst [vmem:[#allocation2 + $0x510] sm:$0xff] 0.0
          %436 = vst [vmem:[#allocation2 + $0x518] sm:$0xff] 0.0
          %437 = vst [vmem:[#allocation2 + $0x520] sm:$0xff] 0.0
          %438 = vst [vmem:[#allocation2 + $0x528] sm:$0xff] 0.0
          %439 = vst [vmem:[#allocation2 + $0x530] sm:$0xff] 0.0
          %440 = vst [vmem:[#allocation2 + $0x538] sm:$0xff] 0.0
          %441 = vst [vmem:[#allocation2 + $0x540] sm:$0xff] 0.0
          %442 = vst [vmem:[#allocation2 + $0x548] sm:$0xff] 0.0
          %443 = vst [vmem:[#allocation2 + $0x550] sm:$0xff] 0.0
          %444 = vst [vmem:[#allocation2 + $0x558] sm:$0xff] 0.0
          %445 = vst [vmem:[#allocation2 + $0x560] sm:$0xff] 0.0
          %446 = vst [vmem:[#allocation2 + $0x568] sm:$0xff] 0.0
          %447 = vst [vmem:[#allocation2 + $0x570] sm:$0xff] 0.0
          %448 = vst [vmem:[#allocation2 + $0x578] sm:$0xff] 0.0
          %449 = vst [vmem:[#allocation2 + $0x580] sm:$0xff] 0.0
          %450 = vst [vmem:[#allocation2 + $0x588] sm:$0xff] 0.0
          %451 = vst [vmem:[#allocation2 + $0x590] sm:$0xff] 0.0
          %452 = vst [vmem:[#allocation2 + $0x598] sm:$0xff] 0.0
          %453 = vst [vmem:[#allocation2 + $0x5a0] sm:$0xff] 0.0
          %454 = vst [vmem:[#allocation2 + $0x5a8] sm:$0xff] 0.0
          %455 = vst [vmem:[#allocation2 + $0x5b0] sm:$0xff] 0.0
          %456 = vst [vmem:[#allocation2 + $0x5b8] sm:$0xff] 0.0
          %457 = vst [vmem:[#allocation2 + $0x5c0] sm:$0xff] 0.0
          %458 = vst [vmem:[#allocation2 + $0x5c8] sm:$0xff] 0.0
          %459 = vst [vmem:[#allocation2 + $0x5d0] sm:$0xff] 0.0
          %460 = vst [vmem:[#allocation2 + $0x5d8] sm:$0xff] 0.0
          %461 = vst [vmem:[#allocation2 + $0x5e0] sm:$0xff] 0.0
          %462 = vst [vmem:[#allocation2 + $0x5e8] sm:$0xff] 0.0
          %463 = vst [vmem:[#allocation2 + $0x5f0] sm:$0xff] 0.0
          %464 = vst [vmem:[#allocation2 + $0x5f8] sm:$0xff] 0.0
        $region44: #{tpu_custom_call.1} parent=31 // pred_fallthru
          _
        %v465 = vld [vmem:[#allocation2] sm:$0xff]
        %v466 = vld [vmem:[#allocation2 + $0x8] sm:$0xff]
        %v467 = vld [vmem:[#allocation2 + $0x10] sm:$0xff]
        %v468 = vld [vmem:[#allocation2 + $0x18] sm:$0xff]
        %v469 = vld [vmem:[#allocation2 + $0x20] sm:$0xff]
        %v470 = vld [vmem:[#allocation2 + $0x28] sm:$0xff]
        %v471 = vld [vmem:[#allocation2 + $0x30] sm:$0xff]
        %v472 = vld [vmem:[#allocation2 + $0x38] sm:$0xff]
        %v473 = vld [vmem:[#allocation2 + $0x40] sm:$0xff]
        %v474 = vld [vmem:[#allocation2 + $0x48] sm:$0xff]
        %v475 = vld [vmem:[#allocation2 + $0x50] sm:$0xff]
        %v476 = vld [vmem:[#allocation2 + $0x58] sm:$0xff]
        %v477 = vld [vmem:[#allocation2 + $0x60] sm:$0xff]
        %v478 = vld [vmem:[#allocation2 + $0x68] sm:$0xff]
        %v479 = vld [vmem:[#allocation2 + $0x70] sm:$0xff]
        %v480 = vld [vmem:[#allocation2 + $0x78] sm:$0xff]
        %v481 = vld [vmem:[#allocation2 + $0x80] sm:$0xff]
        %v482 = vld [vmem:[#allocation2 + $0x88] sm:$0xff]
        %v483 = vld [vmem:[#allocation2 + $0x90] sm:$0xff]
        %v484 = vld [vmem:[#allocation2 + $0x98] sm:$0xff]
        %v485 = vld [vmem:[#allocation2 + $0xa0] sm:$0xff]
        %v486 = vld [vmem:[#allocation2 + $0xa8] sm:$0xff]
        %v487 = vld [vmem:[#allocation2 + $0xb0] sm:$0xff]
        %v488 = vld [vmem:[#allocation2 + $0xb8] sm:$0xff]
        %v489 = vld [vmem:[#allocation2 + $0xc0] sm:$0xff]
        %v490 = vld [vmem:[#allocation2 + $0xc8] sm:$0xff]
        %v491 = vld [vmem:[#allocation2 + $0xd0] sm:$0xff]
        %v492 = vld [vmem:[#allocation2 + $0xd8] sm:$0xff]
        %v493 = vld [vmem:[#allocation2 + $0xe0] sm:$0xff]
        %v494 = vld [vmem:[#allocation2 + $0xe8] sm:$0xff]
        %v495 = vld [vmem:[#allocation2 + $0xf0] sm:$0xff]
        %v496 = vld [vmem:[#allocation2 + $0xf8] sm:$0xff]
        %v497 = vld [vmem:[#allocation2 + $0x100] sm:$0xff]
        %v498 = vld [vmem:[#allocation2 + $0x108] sm:$0xff]
        %v499 = vld [vmem:[#allocation2 + $0x110] sm:$0xff]
        %v500 = vld [vmem:[#allocation2 + $0x118] sm:$0xff]
        %v501 = vld [vmem:[#allocation2 + $0x120] sm:$0xff]
        %v502 = vld [vmem:[#allocation2 + $0x128] sm:$0xff]
        %v503 = vld [vmem:[#allocation2 + $0x130] sm:$0xff]
        %v504 = vld [vmem:[#allocation2 + $0x138] sm:$0xff]
        %v505 = vld [vmem:[#allocation2 + $0x140] sm:$0xff]
        %v506 = vld [vmem:[#allocation2 + $0x148] sm:$0xff]
        %v507 = vld [vmem:[#allocation2 + $0x150] sm:$0xff]
        %v508 = vld [vmem:[#allocation2 + $0x158] sm:$0xff]
        %v509 = vld [vmem:[#allocation2 + $0x160] sm:$0xff]
        %v510 = vld [vmem:[#allocation2 + $0x168] sm:$0xff]
        %v511 = vld [vmem:[#allocation2 + $0x170] sm:$0xff]
        %v512 = vld [vmem:[#allocation2 + $0x178] sm:$0xff]
        %v513 = vld [vmem:[#allocation2 + $0x180] sm:$0xff]
        %v514 = vld [vmem:[#allocation2 + $0x188] sm:$0xff]
        %v515 = vld [vmem:[#allocation2 + $0x190] sm:$0xff]
        %v516 = vld [vmem:[#allocation2 + $0x198] sm:$0xff]
        %v517 = vld [vmem:[#allocation2 + $0x1a0] sm:$0xff]
        %v518 = vld [vmem:[#allocation2 + $0x1a8] sm:$0xff]
        %v519 = vld [vmem:[#allocation2 + $0x1b0] sm:$0xff]
        %v520 = vld [vmem:[#allocation2 + $0x1b8] sm:$0xff]
        %v521 = vld [vmem:[#allocation2 + $0x1c0] sm:$0xff]
        %v522 = vld [vmem:[#allocation2 + $0x1c8] sm:$0xff]
        %v523 = vld [vmem:[#allocation2 + $0x1d0] sm:$0xff]
        %v524 = vld [vmem:[#allocation2 + $0x1d8] sm:$0xff]
        %v525 = vld [vmem:[#allocation2 + $0x1e0] sm:$0xff]
        %v526 = vld [vmem:[#allocation2 + $0x1e8] sm:$0xff]
        %v527 = vld [vmem:[#allocation2 + $0x1f0] sm:$0xff]
        %v528 = vld [vmem:[#allocation2 + $0x1f8] sm:$0xff]
        %v529 = vld [vmem:[#allocation2 + $0x200] sm:$0xff]
        %v530 = vld [vmem:[#allocation2 + $0x208] sm:$0xff]
        %v531 = vld [vmem:[#allocation2 + $0x210] sm:$0xff]
        %v532 = vld [vmem:[#allocation2 + $0x218] sm:$0xff]
        %v533 = vld [vmem:[#allocation2 + $0x220] sm:$0xff]
        %v534 = vld [vmem:[#allocation2 + $0x228] sm:$0xff]
        %v535 = vld [vmem:[#allocation2 + $0x230] sm:$0xff]
        %v536 = vld [vmem:[#allocation2 + $0x238] sm:$0xff]
        %v537 = vld [vmem:[#allocation2 + $0x240] sm:$0xff]
        %v538 = vld [vmem:[#allocation2 + $0x248] sm:$0xff]
        %v539 = vld [vmem:[#allocation2 + $0x250] sm:$0xff]
        %v540 = vld [vmem:[#allocation2 + $0x258] sm:$0xff]
        %v541 = vld [vmem:[#allocation2 + $0x260] sm:$0xff]
        %v542 = vld [vmem:[#allocation2 + $0x268] sm:$0xff]
        %v543 = vld [vmem:[#allocation2 + $0x270] sm:$0xff]
        %v544 = vld [vmem:[#allocation2 + $0x278] sm:$0xff]
        %v545 = vld [vmem:[#allocation2 + $0x280] sm:$0xff]
        %v546 = vld [vmem:[#allocation2 + $0x288] sm:$0xff]
        %v547 = vld [vmem:[#allocation2 + $0x290] sm:$0xff]
        %v548 = vld [vmem:[#allocation2 + $0x298] sm:$0xff]
        %v549 = vld [vmem:[#allocation2 + $0x2a0] sm:$0xff]
        %v550 = vld [vmem:[#allocation2 + $0x2a8] sm:$0xff]
        %v551 = vld [vmem:[#allocation2 + $0x2b0] sm:$0xff]
        %v552 = vld [vmem:[#allocation2 + $0x2b8] sm:$0xff]
        %v553 = vld [vmem:[#allocation2 + $0x2c0] sm:$0xff]
        %v554 = vld [vmem:[#allocation2 + $0x2c8] sm:$0xff]
        %v555 = vld [vmem:[#allocation2 + $0x2d0] sm:$0xff]
        %v556 = vld [vmem:[#allocation2 + $0x2d8] sm:$0xff]
        %v557 = vld [vmem:[#allocation2 + $0x2e0] sm:$0xff]
        %v558 = vld [vmem:[#allocation2 + $0x2e8] sm:$0xff]
        %v559 = vld [vmem:[#allocation2 + $0x2f0] sm:$0xff]
        %v560 = vld [vmem:[#allocation2 + $0x2f8] sm:$0xff]
        %v561 = vld [vmem:[#allocation2 + $0x300] sm:$0xff]
        %v562 = vld [vmem:[#allocation2 + $0x308] sm:$0xff]
        %v563 = vld [vmem:[#allocation2 + $0x310] sm:$0xff]
        %v564 = vld [vmem:[#allocation2 + $0x318] sm:$0xff]
        %v565 = vld [vmem:[#allocation2 + $0x320] sm:$0xff]
        %v566 = vld [vmem:[#allocation2 + $0x328] sm:$0xff]
        %v567 = vld [vmem:[#allocation2 + $0x330] sm:$0xff]
        %v568 = vld [vmem:[#allocation2 + $0x338] sm:$0xff]
        %v569 = vld [vmem:[#allocation2 + $0x340] sm:$0xff]
        %v570 = vld [vmem:[#allocation2 + $0x348] sm:$0xff]
        %v571 = vld [vmem:[#allocation2 + $0x350] sm:$0xff]
        %v572 = vld [vmem:[#allocation2 + $0x358] sm:$0xff]
        %v573 = vld [vmem:[#allocation2 + $0x360] sm:$0xff]
        %v574 = vld [vmem:[#allocation2 + $0x368] sm:$0xff]
        %v575 = vld [vmem:[#allocation2 + $0x370] sm:$0xff]
        %v576 = vld [vmem:[#allocation2 + $0x378] sm:$0xff]
        %v577 = vld [vmem:[#allocation2 + $0x380] sm:$0xff]
        %v578 = vld [vmem:[#allocation2 + $0x388] sm:$0xff]
        %v579 = vld [vmem:[#allocation2 + $0x390] sm:$0xff]
        %v580 = vld [vmem:[#allocation2 + $0x398] sm:$0xff]
        %v581 = vld [vmem:[#allocation2 + $0x3a0] sm:$0xff]
        %v582 = vld [vmem:[#allocation2 + $0x3a8] sm:$0xff]
        %v583 = vld [vmem:[#allocation2 + $0x3b0] sm:$0xff]
        %v584 = vld [vmem:[#allocation2 + $0x3b8] sm:$0xff]
        %v585 = vld [vmem:[#allocation2 + $0x3c0] sm:$0xff]
        %v586 = vld [vmem:[#allocation2 + $0x3c8] sm:$0xff]
        %v587 = vld [vmem:[#allocation2 + $0x3d0] sm:$0xff]
        %v588 = vld [vmem:[#allocation2 + $0x3d8] sm:$0xff]
        %v589 = vld [vmem:[#allocation2 + $0x3e0] sm:$0xff]
        %v590 = vld [vmem:[#allocation2 + $0x3e8] sm:$0xff]
        %v591 = vld [vmem:[#allocation2 + $0x3f0] sm:$0xff]
        %v592 = vld [vmem:[#allocation2 + $0x3f8] sm:$0xff]
        %v593 = vld [vmem:[#allocation2 + $0x400] sm:$0xff]
        %v594 = vld [vmem:[#allocation2 + $0x408] sm:$0xff]
        %v595 = vld [vmem:[#allocation2 + $0x410] sm:$0xff]
        %v596 = vld [vmem:[#allocation2 + $0x418] sm:$0xff]
        %v597 = vld [vmem:[#allocation2 + $0x420] sm:$0xff]
        %v598 = vld [vmem:[#allocation2 + $0x428] sm:$0xff]
        %v599 = vld [vmem:[#allocation2 + $0x430] sm:$0xff]
        %v600 = vld [vmem:[#allocation2 + $0x438] sm:$0xff]
        %v601 = vld [vmem:[#allocation2 + $0x440] sm:$0xff]
        %v602 = vld [vmem:[#allocation2 + $0x448] sm:$0xff]
        %v603 = vld [vmem:[#allocation2 + $0x450] sm:$0xff]
        %v604 = vld [vmem:[#allocation2 + $0x458] sm:$0xff]
        %v605 = vld [vmem:[#allocation2 + $0x460] sm:$0xff]
        %v606 = vld [vmem:[#allocation2 + $0x468] sm:$0xff]
        %v607 = vld [vmem:[#allocation2 + $0x470] sm:$0xff]
        %v608 = vld [vmem:[#allocation2 + $0x478] sm:$0xff]
        %v609 = vld [vmem:[#allocation2 + $0x480] sm:$0xff]
        %v610 = vld [vmem:[#allocation2 + $0x488] sm:$0xff]
        %v611 = vld [vmem:[#allocation2 + $0x490] sm:$0xff]
        %v612 = vld [vmem:[#allocation2 + $0x498] sm:$0xff]
        %v613 = vld [vmem:[#allocation2 + $0x4a0] sm:$0xff]
        %v614 = vld [vmem:[#allocation2 + $0x4a8] sm:$0xff]
        %v615 = vld [vmem:[#allocation2 + $0x4b0] sm:$0xff]
        %v616 = vld [vmem:[#allocation2 + $0x4b8] sm:$0xff]
        %v617 = vld [vmem:[#allocation2 + $0x4c0] sm:$0xff]
        %v618 = vld [vmem:[#allocation2 + $0x4c8] sm:$0xff]
        %v619 = vld [vmem:[#allocation2 + $0x4d0] sm:$0xff]
        %v620 = vld [vmem:[#allocation2 + $0x4d8] sm:$0xff]
        %v621 = vld [vmem:[#allocation2 + $0x4e0] sm:$0xff]
        %v622 = vld [vmem:[#allocation2 + $0x4e8] sm:$0xff]
        %v623 = vld [vmem:[#allocation2 + $0x4f0] sm:$0xff]
        %v624 = vld [vmem:[#allocation2 + $0x4f8] sm:$0xff]
        %v625 = vld [vmem:[#allocation2 + $0x500] sm:$0xff]
        %v626 = vld [vmem:[#allocation2 + $0x508] sm:$0xff]
        %v627 = vld [vmem:[#allocation2 + $0x510] sm:$0xff]
        %v628 = vld [vmem:[#allocation2 + $0x518] sm:$0xff]
        %v629 = vld [vmem:[#allocation2 + $0x520] sm:$0xff]
        %v630 = vld [vmem:[#allocation2 + $0x528] sm:$0xff]
        %v631 = vld [vmem:[#allocation2 + $0x530] sm:$0xff]
        %v632 = vld [vmem:[#allocation2 + $0x538] sm:$0xff]
        %v633 = vld [vmem:[#allocation2 + $0x540] sm:$0xff]
        %v634 = vld [vmem:[#allocation2 + $0x548] sm:$0xff]
        %v635 = vld [vmem:[#allocation2 + $0x550] sm:$0xff]
        %v636 = vld [vmem:[#allocation2 + $0x558] sm:$0xff]
        %v637 = vld [vmem:[#allocation2 + $0x560] sm:$0xff]
        %v638 = vld [vmem:[#allocation2 + $0x568] sm:$0xff]
        %v639 = vld [vmem:[#allocation2 + $0x570] sm:$0xff]
        %v640 = vld [vmem:[#allocation2 + $0x578] sm:$0xff]
        %v641 = vld [vmem:[#allocation2 + $0x580] sm:$0xff]
        %v642 = vld [vmem:[#allocation2 + $0x588] sm:$0xff]
        %v643 = vld [vmem:[#allocation2 + $0x590] sm:$0xff]
        %v644 = vld [vmem:[#allocation2 + $0x598] sm:$0xff]
        %v645 = vld [vmem:[#allocation2 + $0x5a0] sm:$0xff]
        %v646 = vld [vmem:[#allocation2 + $0x5a8] sm:$0xff]
        %v647 = vld [vmem:[#allocation2 + $0x5b0] sm:$0xff]
        %v648 = vld [vmem:[#allocation2 + $0x5b8] sm:$0xff]
        %v649 = vld [vmem:[#allocation2 + $0x5c0] sm:$0xff]
        %v650 = vld [vmem:[#allocation2 + $0x5c8] sm:$0xff]
        %v651 = vld [vmem:[#allocation2 + $0x5d0] sm:$0xff]
        %v652 = vld [vmem:[#allocation2 + $0x5d8] sm:$0xff]
        %v653 = vld [vmem:[#allocation2 + $0x5e0] sm:$0xff]
        %v654 = vld [vmem:[#allocation2 + $0x5e8] sm:$0xff]
        %v655 = vld [vmem:[#allocation2 + $0x5f0] sm:$0xff]
        %v656 = vld [vmem:[#allocation2 + $0x5f8] sm:$0xff]
        %v657 = vld [vmem:[#allocation3] sm:$0xff]
        %v658 = vld [vmem:[#allocation3 + $0x8] sm:$0xff]
        %v659 = vld [vmem:[#allocation3 + $0x10] sm:$0xff]
        %v660 = vld [vmem:[#allocation3 + $0x18] sm:$0xff]
        %v661 = vld [vmem:[#allocation3 + $0x20] sm:$0xff]
        %v662 = vld [vmem:[#allocation3 + $0x28] sm:$0xff]
        %v663 = vld [vmem:[#allocation3 + $0x30] sm:$0xff]
        %v664 = vld [vmem:[#allocation3 + $0x38] sm:$0xff]
        %v665 = vld [vmem:[#allocation3 + $0x40] sm:$0xff]
        %v666 = vld [vmem:[#allocation3 + $0x48] sm:$0xff]
        %v667 = vld [vmem:[#allocation3 + $0x50] sm:$0xff]
        %v668 = vld [vmem:[#allocation3 + $0x58] sm:$0xff]
        %v669 = vld [vmem:[#allocation3 + $0x60] sm:$0xff]
        %v670 = vld [vmem:[#allocation3 + $0x68] sm:$0xff]
        %v671 = vld [vmem:[#allocation3 + $0x70] sm:$0xff]
        %v672 = vld [vmem:[#allocation3 + $0x78] sm:$0xff]
        %v673 = vld [vmem:[#allocation3 + $0x80] sm:$0xff]
        %v674 = vld [vmem:[#allocation3 + $0x88] sm:$0xff]
        %v675 = vld [vmem:[#allocation3 + $0x90] sm:$0xff]
        %v676 = vld [vmem:[#allocation3 + $0x98] sm:$0xff]
        %v677 = vld [vmem:[#allocation3 + $0xa0] sm:$0xff]
        %v678 = vld [vmem:[#allocation3 + $0xa8] sm:$0xff]
        %v679 = vld [vmem:[#allocation3 + $0xb0] sm:$0xff]
        %v680 = vld [vmem:[#allocation3 + $0xb8] sm:$0xff]
        %v681 = vld [vmem:[#allocation3 + $0xc0] sm:$0xff]
        %v682 = vld [vmem:[#allocation3 + $0xc8] sm:$0xff]
        %v683 = vld [vmem:[#allocation3 + $0xd0] sm:$0xff]
        %v684 = vld [vmem:[#allocation3 + $0xd8] sm:$0xff]
        %v685 = vld [vmem:[#allocation3 + $0xe0] sm:$0xff]
        %v686 = vld [vmem:[#allocation3 + $0xe8] sm:$0xff]
        %v687 = vld [vmem:[#allocation3 + $0xf0] sm:$0xff]
        %v688 = vld [vmem:[#allocation3 + $0xf8] sm:$0xff]
        %v689 = vld [vmem:[#allocation3 + $0x100] sm:$0xff]
        %v690 = vld [vmem:[#allocation3 + $0x108] sm:$0xff]
        %v691 = vld [vmem:[#allocation3 + $0x110] sm:$0xff]
        %v692 = vld [vmem:[#allocation3 + $0x118] sm:$0xff]
        %v693 = vld [vmem:[#allocation3 + $0x120] sm:$0xff]
        %v694 = vld [vmem:[#allocation3 + $0x128] sm:$0xff]
        %v695 = vld [vmem:[#allocation3 + $0x130] sm:$0xff]
        %v696 = vld [vmem:[#allocation3 + $0x138] sm:$0xff]
        %v697 = vld [vmem:[#allocation3 + $0x140] sm:$0xff]
        %v698 = vld [vmem:[#allocation3 + $0x148] sm:$0xff]
        %v699 = vld [vmem:[#allocation3 + $0x150] sm:$0xff]
        %v700 = vld [vmem:[#allocation3 + $0x158] sm:$0xff]
        %v701 = vld [vmem:[#allocation3 + $0x160] sm:$0xff]
        %v702 = vld [vmem:[#allocation3 + $0x168] sm:$0xff]
        %v703 = vld [vmem:[#allocation3 + $0x170] sm:$0xff]
        %v704 = vld [vmem:[#allocation3 + $0x178] sm:$0xff]
        %v705 = vld [vmem:[#allocation3 + $0x180] sm:$0xff]
        %v706 = vld [vmem:[#allocation3 + $0x188] sm:$0xff]
        %v707 = vld [vmem:[#allocation3 + $0x190] sm:$0xff]
        %v708 = vld [vmem:[#allocation3 + $0x198] sm:$0xff]
        %v709 = vld [vmem:[#allocation3 + $0x1a0] sm:$0xff]
        %v710 = vld [vmem:[#allocation3 + $0x1a8] sm:$0xff]
        %v711 = vld [vmem:[#allocation3 + $0x1b0] sm:$0xff]
        %v712 = vld [vmem:[#allocation3 + $0x1b8] sm:$0xff]
        %v713 = vld [vmem:[#allocation3 + $0x1c0] sm:$0xff]
        %v714 = vld [vmem:[#allocation3 + $0x1c8] sm:$0xff]
        %v715 = vld [vmem:[#allocation3 + $0x1d0] sm:$0xff]
        %v716 = vld [vmem:[#allocation3 + $0x1d8] sm:$0xff]
        %v717 = vld [vmem:[#allocation3 + $0x1e0] sm:$0xff]
        %v718 = vld [vmem:[#allocation3 + $0x1e8] sm:$0xff]
        %v719 = vld [vmem:[#allocation3 + $0x1f0] sm:$0xff]
        %v720 = vld [vmem:[#allocation3 + $0x1f8] sm:$0xff]
        %v721 = vld [vmem:[#allocation3 + $0x200] sm:$0xff]
        %v722 = vld [vmem:[#allocation3 + $0x208] sm:$0xff]
        %v723 = vld [vmem:[#allocation3 + $0x210] sm:$0xff]
        %v724 = vld [vmem:[#allocation3 + $0x218] sm:$0xff]
        %v725 = vld [vmem:[#allocation3 + $0x220] sm:$0xff]
        %v726 = vld [vmem:[#allocation3 + $0x228] sm:$0xff]
        %v727 = vld [vmem:[#allocation3 + $0x230] sm:$0xff]
        %v728 = vld [vmem:[#allocation3 + $0x238] sm:$0xff]
        %v729 = vld [vmem:[#allocation3 + $0x240] sm:$0xff]
        %v730 = vld [vmem:[#allocation3 + $0x248] sm:$0xff]
        %v731 = vld [vmem:[#allocation3 + $0x250] sm:$0xff]
        %v732 = vld [vmem:[#allocation3 + $0x258] sm:$0xff]
        %v733 = vld [vmem:[#allocation3 + $0x260] sm:$0xff]
        %v734 = vld [vmem:[#allocation3 + $0x268] sm:$0xff]
        %v735 = vld [vmem:[#allocation3 + $0x270] sm:$0xff]
        %v736 = vld [vmem:[#allocation3 + $0x278] sm:$0xff]
        %v737 = vld [vmem:[#allocation3 + $0x280] sm:$0xff]
        %v738 = vld [vmem:[#allocation3 + $0x288] sm:$0xff]
        %v739 = vld [vmem:[#allocation3 + $0x290] sm:$0xff]
        %v740 = vld [vmem:[#allocation3 + $0x298] sm:$0xff]
        %v741 = vld [vmem:[#allocation3 + $0x2a0] sm:$0xff]
        %v742 = vld [vmem:[#allocation3 + $0x2a8] sm:$0xff]
        %v743 = vld [vmem:[#allocation3 + $0x2b0] sm:$0xff]
        %v744 = vld [vmem:[#allocation3 + $0x2b8] sm:$0xff]
        %v745 = vld [vmem:[#allocation3 + $0x2c0] sm:$0xff]
        %v746 = vld [vmem:[#allocation3 + $0x2c8] sm:$0xff]
        %v747 = vld [vmem:[#allocation3 + $0x2d0] sm:$0xff]
        %v748 = vld [vmem:[#allocation3 + $0x2d8] sm:$0xff]
        %v749 = vld [vmem:[#allocation3 + $0x2e0] sm:$0xff]
        %v750 = vld [vmem:[#allocation3 + $0x2e8] sm:$0xff]
        %v751 = vld [vmem:[#allocation3 + $0x2f0] sm:$0xff]
        %v752 = vld [vmem:[#allocation3 + $0x2f8] sm:$0xff]
        %v753 = vld [vmem:[#allocation3 + $0x300] sm:$0xff]
        %v754 = vld [vmem:[#allocation3 + $0x308] sm:$0xff]
        %v755 = vld [vmem:[#allocation3 + $0x310] sm:$0xff]
        %v756 = vld [vmem:[#allocation3 + $0x318] sm:$0xff]
        %v757 = vld [vmem:[#allocation3 + $0x320] sm:$0xff]
        %v758 = vld [vmem:[#allocation3 + $0x328] sm:$0xff]
        %v759 = vld [vmem:[#allocation3 + $0x330] sm:$0xff]
        %v760 = vld [vmem:[#allocation3 + $0x338] sm:$0xff]
        %v761 = vld [vmem:[#allocation3 + $0x340] sm:$0xff]
        %v762 = vld [vmem:[#allocation3 + $0x348] sm:$0xff]
        %v763 = vld [vmem:[#allocation3 + $0x350] sm:$0xff]
        %v764 = vld [vmem:[#allocation3 + $0x358] sm:$0xff]
        %v765 = vld [vmem:[#allocation3 + $0x360] sm:$0xff]
        %v766 = vld [vmem:[#allocation3 + $0x368] sm:$0xff]
        %v767 = vld [vmem:[#allocation3 + $0x370] sm:$0xff]
        %v768 = vld [vmem:[#allocation3 + $0x378] sm:$0xff]
        %v769 = vld [vmem:[#allocation3 + $0x380] sm:$0xff]
        %v770 = vld [vmem:[#allocation3 + $0x388] sm:$0xff]
        %v771 = vld [vmem:[#allocation3 + $0x390] sm:$0xff]
        %v772 = vld [vmem:[#allocation3 + $0x398] sm:$0xff]
        %v773 = vld [vmem:[#allocation3 + $0x3a0] sm:$0xff]
        %v774 = vld [vmem:[#allocation3 + $0x3a8] sm:$0xff]
        %v775 = vld [vmem:[#allocation3 + $0x3b0] sm:$0xff]
        %v776 = vld [vmem:[#allocation3 + $0x3b8] sm:$0xff]
        %v777 = vld [vmem:[#allocation3 + $0x3c0] sm:$0xff]
        %v778 = vld [vmem:[#allocation3 + $0x3c8] sm:$0xff]
        %v779 = vld [vmem:[#allocation3 + $0x3d0] sm:$0xff]
        %v780 = vld [vmem:[#allocation3 + $0x3d8] sm:$0xff]
        %v781 = vld [vmem:[#allocation3 + $0x3e0] sm:$0xff]
        %v782 = vld [vmem:[#allocation3 + $0x3e8] sm:$0xff]
        %v783 = vld [vmem:[#allocation3 + $0x3f0] sm:$0xff]
        %v784 = vld [vmem:[#allocation3 + $0x3f8] sm:$0xff]
        %v785 = vpack.c.bf16 %v659, %v657
        %v786 = vpack.c.bf16 %v660, %v658
        %v787 = vpack.c.bf16 %v663, %v661
        %v788 = vpack.c.bf16 %v664, %v662
        %v789 = vpack.c.bf16 %v667, %v665
        %v790 = vpack.c.bf16 %v668, %v666
        %v791 = vpack.c.bf16 %v671, %v669
        %v792 = vpack.c.bf16 %v672, %v670
        %v793 = vpack.c.bf16 %v675, %v673
        %v794 = vpack.c.bf16 %v676, %v674
        %v795 = vpack.c.bf16 %v679, %v677
        %v796 = vpack.c.bf16 %v680, %v678
        %v797 = vpack.c.bf16 %v683, %v681
        %v798 = vpack.c.bf16 %v684, %v682
        %v799 = vpack.c.bf16 %v687, %v685
        %v800 = vpack.c.bf16 %v688, %v686
        %v801 = vpack.c.bf16 %v691, %v689
        %v802 = vpack.c.bf16 %v692, %v690
        %v803 = vpack.c.bf16 %v695, %v693
        %v804 = vpack.c.bf16 %v696, %v694
        %v805 = vpack.c.bf16 %v699, %v697
        %v806 = vpack.c.bf16 %v700, %v698
        %v807 = vpack.c.bf16 %v703, %v701
        %v808 = vpack.c.bf16 %v704, %v702
        %v809 = vpack.c.bf16 %v707, %v705
        %v810 = vpack.c.bf16 %v708, %v706
        %v811 = vpack.c.bf16 %v711, %v709
        %v812 = vpack.c.bf16 %v712, %v710
        %v813 = vpack.c.bf16 %v715, %v713
        %v814 = vpack.c.bf16 %v716, %v714
        %v815 = vpack.c.bf16 %v719, %v717
        %v816 = vpack.c.bf16 %v720, %v718
        %v817 = vpack.c.bf16 %v723, %v721
        %v818 = vpack.c.bf16 %v724, %v722
        %v819 = vpack.c.bf16 %v727, %v725
        %v820 = vpack.c.bf16 %v728, %v726
        %v821 = vpack.c.bf16 %v731, %v729
        %v822 = vpack.c.bf16 %v732, %v730
        %v823 = vpack.c.bf16 %v735, %v733
        %v824 = vpack.c.bf16 %v736, %v734
        %v825 = vpack.c.bf16 %v739, %v737
        %v826 = vpack.c.bf16 %v740, %v738
        %v827 = vpack.c.bf16 %v743, %v741
        %v828 = vpack.c.bf16 %v744, %v742
        %v829 = vpack.c.bf16 %v747, %v745
        %v830 = vpack.c.bf16 %v748, %v746
        %v831 = vpack.c.bf16 %v751, %v749
        %v832 = vpack.c.bf16 %v752, %v750
        %v833 = vpack.c.bf16 %v755, %v753
        %v834 = vpack.c.bf16 %v756, %v754
        %v835 = vpack.c.bf16 %v759, %v757
        %v836 = vpack.c.bf16 %v760, %v758
        %v837 = vpack.c.bf16 %v763, %v761
        %v838 = vpack.c.bf16 %v764, %v762
        %v839 = vpack.c.bf16 %v767, %v765
        %v840 = vpack.c.bf16 %v768, %v766
        %v841 = vpack.c.bf16 %v771, %v769
        %v842 = vpack.c.bf16 %v772, %v770
        %v843 = vpack.c.bf16 %v775, %v773
        %v844 = vpack.c.bf16 %v776, %v774
        %v845 = vpack.c.bf16 %v779, %v777
        %v846 = vpack.c.bf16 %v780, %v778
        %v847 = vpack.c.bf16 %v783, %v781
        %v848 = vpack.c.bf16 %v784, %v782
        %v849 = vld [vmem:[%s230] sm:$0xff]
        %v850 = vld [vmem:[%s230 + $0x8] sm:$0xff]
        %v851 = vld [vmem:[%s230 + $0x10] sm:$0xff]
        %v852 = vld [vmem:[%s230 + $0x18] sm:$0xff]
        %v853 = vld [vmem:[%s230 + $0x20] sm:$0xff]
        %v854 = vld [vmem:[%s230 + $0x28] sm:$0xff]
        %v855 = vld [vmem:[%s230 + $0x30] sm:$0xff]
        %v856 = vld [vmem:[%s230 + $0x38] sm:$0xff]
        %v857 = vld [vmem:[%s230 + $0x40] sm:$0xff]
        %v858 = vld [vmem:[%s230 + $0x48] sm:$0xff]
        %v859 = vld [vmem:[%s230 + $0x50] sm:$0xff]
        %v860 = vld [vmem:[%s230 + $0x58] sm:$0xff]
        %v861 = vld [vmem:[%s230 + $0x60] sm:$0xff]
        %v862 = vld [vmem:[%s230 + $0x68] sm:$0xff]
        %v863 = vld [vmem:[%s230 + $0x70] sm:$0xff]
        %v864 = vld [vmem:[%s230 + $0x78] sm:$0xff]
        %v865 = vld [vmem:[%s230 + $0x80] sm:$0xff]
        %v866 = vld [vmem:[%s230 + $0x88] sm:$0xff]
        %v867 = vld [vmem:[%s230 + $0x90] sm:$0xff]
        %v868 = vld [vmem:[%s230 + $0x98] sm:$0xff]
        %v869 = vld [vmem:[%s230 + $0xa0] sm:$0xff]
        %v870 = vld [vmem:[%s230 + $0xa8] sm:$0xff]
        %v871 = vld [vmem:[%s230 + $0xb0] sm:$0xff]
        %v872 = vld [vmem:[%s230 + $0xb8] sm:$0xff]
        %v873 = vld [vmem:[%s230 + $0xc0] sm:$0xff]
        %v874 = vld [vmem:[%s230 + $0xc8] sm:$0xff]
        %v875 = vld [vmem:[%s230 + $0xd0] sm:$0xff]
        %v876 = vld [vmem:[%s230 + $0xd8] sm:$0xff]
        %v877 = vld [vmem:[%s230 + $0xe0] sm:$0xff]
        %v878 = vld [vmem:[%s230 + $0xe8] sm:$0xff]
        %v879 = vld [vmem:[%s230 + $0xf0] sm:$0xff]
        %v880 = vld [vmem:[%s230 + $0xf8] sm:$0xff]
        %v881 = vld [vmem:[%s230 + $0x100] sm:$0xff]
        %v882 = vld [vmem:[%s230 + $0x108] sm:$0xff]
        %v883 = vld [vmem:[%s230 + $0x110] sm:$0xff]
        %v884 = vld [vmem:[%s230 + $0x118] sm:$0xff]
        %v885 = vld [vmem:[%s230 + $0x120] sm:$0xff]
        %v886 = vld [vmem:[%s230 + $0x128] sm:$0xff]
        %v887 = vld [vmem:[%s230 + $0x130] sm:$0xff]
        %v888 = vld [vmem:[%s230 + $0x138] sm:$0xff]
        %v889 = vld [vmem:[%s230 + $0x140] sm:$0xff]
        %v890 = vld [vmem:[%s230 + $0x148] sm:$0xff]
        %v891 = vld [vmem:[%s230 + $0x150] sm:$0xff]
        %v892 = vld [vmem:[%s230 + $0x158] sm:$0xff]
        %v893 = vld [vmem:[%s230 + $0x160] sm:$0xff]
        %v894 = vld [vmem:[%s230 + $0x168] sm:$0xff]
        %v895 = vld [vmem:[%s230 + $0x170] sm:$0xff]
        %v896 = vld [vmem:[%s230 + $0x178] sm:$0xff]
        %v897 = vld [vmem:[%s230 + $0x180] sm:$0xff]
        %v898 = vld [vmem:[%s230 + $0x188] sm:$0xff]
        %v899 = vld [vmem:[%s230 + $0x190] sm:$0xff]
        %v900 = vld [vmem:[%s230 + $0x198] sm:$0xff]
        %v901 = vld [vmem:[%s230 + $0x1a0] sm:$0xff]
        %v902 = vld [vmem:[%s230 + $0x1a8] sm:$0xff]
        %v903 = vld [vmem:[%s230 + $0x1b0] sm:$0xff]
        %v904 = vld [vmem:[%s230 + $0x1b8] sm:$0xff]
        %v905 = vld [vmem:[%s230 + $0x1c0] sm:$0xff]
        %v906 = vld [vmem:[%s230 + $0x1c8] sm:$0xff]
        %v907 = vld [vmem:[%s230 + $0x1d0] sm:$0xff]
        %v908 = vld [vmem:[%s230 + $0x1d8] sm:$0xff]
        %v909 = vld [vmem:[%s230 + $0x1e0] sm:$0xff]
        %v910 = vld [vmem:[%s230 + $0x1e8] sm:$0xff]
        %v911 = vld [vmem:[%s230 + $0x1f0] sm:$0xff]
        %v912 = vld [vmem:[%s230 + $0x1f8] sm:$0xff]
        %v913 = vld [vmem:[%s230 + $0x200] sm:$0xff]
        %v914 = vld [vmem:[%s230 + $0x208] sm:$0xff]
        %v915 = vld [vmem:[%s230 + $0x210] sm:$0xff]
        %v916 = vld [vmem:[%s230 + $0x218] sm:$0xff]
        %v917 = vld [vmem:[%s230 + $0x220] sm:$0xff]
        %v918 = vld [vmem:[%s230 + $0x228] sm:$0xff]
        %v919 = vld [vmem:[%s230 + $0x230] sm:$0xff]
        %v920 = vld [vmem:[%s230 + $0x238] sm:$0xff]
        %v921 = vld [vmem:[%s230 + $0x240] sm:$0xff]
        %v922 = vld [vmem:[%s230 + $0x248] sm:$0xff]
        %v923 = vld [vmem:[%s230 + $0x250] sm:$0xff]
        %v924 = vld [vmem:[%s230 + $0x258] sm:$0xff]
        %v925 = vld [vmem:[%s230 + $0x260] sm:$0xff]
        %v926 = vld [vmem:[%s230 + $0x268] sm:$0xff]
        %v927 = vld [vmem:[%s230 + $0x270] sm:$0xff]
        %v928 = vld [vmem:[%s230 + $0x278] sm:$0xff]
        %v929 = vld [vmem:[%s230 + $0x280] sm:$0xff]
        %v930 = vld [vmem:[%s230 + $0x288] sm:$0xff]
        %v931 = vld [vmem:[%s230 + $0x290] sm:$0xff]
        %v932 = vld [vmem:[%s230 + $0x298] sm:$0xff]
        %v933 = vld [vmem:[%s230 + $0x2a0] sm:$0xff]
        %v934 = vld [vmem:[%s230 + $0x2a8] sm:$0xff]
        %v935 = vld [vmem:[%s230 + $0x2b0] sm:$0xff]
        %v936 = vld [vmem:[%s230 + $0x2b8] sm:$0xff]
        %v937 = vld [vmem:[%s230 + $0x2c0] sm:$0xff]
        %v938 = vld [vmem:[%s230 + $0x2c8] sm:$0xff]
        %v939 = vld [vmem:[%s230 + $0x2d0] sm:$0xff]
        %v940 = vld [vmem:[%s230 + $0x2d8] sm:$0xff]
        %v941 = vld [vmem:[%s230 + $0x2e0] sm:$0xff]
        %v942 = vld [vmem:[%s230 + $0x2e8] sm:$0xff]
        %v943 = vld [vmem:[%s230 + $0x2f0] sm:$0xff]
        %v944 = vld [vmem:[%s230 + $0x2f8] sm:$0xff]
        %v945 = vpack.c.bf16 %v851, %v849
        %v946 = vpack.c.bf16 %v852, %v850
        %v947 = vpack.c.bf16 %v855, %v853
        %v948 = vpack.c.bf16 %v856, %v854
        %v949 = vpack.c.bf16 %v859, %v857
        %v950 = vpack.c.bf16 %v860, %v858
        %v951 = vpack.c.bf16 %v863, %v861
        %v952 = vpack.c.bf16 %v864, %v862
        %v953 = vpack.c.bf16 %v867, %v865
        %v954 = vpack.c.bf16 %v868, %v866
        %v955 = vpack.c.bf16 %v871, %v869
        %v956 = vpack.c.bf16 %v872, %v870
        %v957 = vpack.c.bf16 %v875, %v873
        %v958 = vpack.c.bf16 %v876, %v874
        %v959 = vpack.c.bf16 %v879, %v877
        %v960 = vpack.c.bf16 %v880, %v878
        %v961 = vpack.c.bf16 %v883, %v881
        %v962 = vpack.c.bf16 %v884, %v882
        %v963 = vpack.c.bf16 %v887, %v885
        %v964 = vpack.c.bf16 %v888, %v886
        %v965 = vpack.c.bf16 %v891, %v889
        %v966 = vpack.c.bf16 %v892, %v890
        %v967 = vpack.c.bf16 %v895, %v893
        %v968 = vpack.c.bf16 %v896, %v894
        %v969 = vpack.c.bf16 %v899, %v897
        %v970 = vpack.c.bf16 %v900, %v898
        %v971 = vpack.c.bf16 %v903, %v901
        %v972 = vpack.c.bf16 %v904, %v902
        %v973 = vpack.c.bf16 %v907, %v905
        %v974 = vpack.c.bf16 %v908, %v906
        %v975 = vpack.c.bf16 %v911, %v909
        %v976 = vpack.c.bf16 %v912, %v910
        %v977 = vpack.c.bf16 %v915, %v913
        %v978 = vpack.c.bf16 %v916, %v914
        %v979 = vpack.c.bf16 %v919, %v917
        %v980 = vpack.c.bf16 %v920, %v918
        %v981 = vpack.c.bf16 %v923, %v921
        %v982 = vpack.c.bf16 %v924, %v922
        %v983 = vpack.c.bf16 %v927, %v925
        %v984 = vpack.c.bf16 %v928, %v926
        %v985 = vpack.c.bf16 %v931, %v929
        %v986 = vpack.c.bf16 %v932, %v930
        %v987 = vpack.c.bf16 %v935, %v933
        %v988 = vpack.c.bf16 %v936, %v934
        %v989 = vpack.c.bf16 %v939, %v937
        %v990 = vpack.c.bf16 %v940, %v938
        %v991 = vpack.c.bf16 %v943, %v941
        %v992 = vpack.c.bf16 %v944, %v942
        %993 = vmatprep.subr.bf16.mxu0 %v946
        %994 = vmatpush1.bf16.xpose.msra.mxu0 %v945
        %995 = vmatprep.subr.bf16.mxu0 %v948
        %996 = vmatpush1.bf16.xpose.msra.mxu0 %v947
        %997 = vmatprep.subr.bf16.mxu0 %v950
        %998 = vmatpush1.bf16.xpose.msra.mxu0 %v949
        %999 = vmatprep.subr.bf16.mxu0 %v952
        %1000 = vmatpush1.bf16.xpose.msra.mxu0 %v951
        %1001 = vmatprep.subr.bf16.mxu0 %v954
        %1002 = vmatpush1.bf16.xpose.msra.mxu0 %v953
        %1003 = vmatprep.subr.bf16.mxu0 %v956
        %1004 = vmatpush1.bf16.xpose.msra.mxu0 %v955
        %1005 = vmatprep.subr.bf16.mxu0 %v958
        %1006 = vmatpush1.bf16.xpose.msra.mxu0 %v957
        %1007 = vmatprep.subr.bf16.mxu0 %v960
        %1008 = vmatpush1.bf16.xpose.msra.mxu0 %v959
        %1009 = vmatprep.subr.bf16.mxu0 %v962
        %1010 = vmatpush1.bf16.xpose.msra.mxu0 %v961
        %1011 = vmatprep.subr.bf16.mxu0 %v964
        %1012 = vmatpush1.bf16.xpose.msra.mxu0 %v963
        %1013 = vmatprep.subr.bf16.mxu0 %v966
        %1014 = vmatpush1.bf16.xpose.msra.mxu0 %v965
        %1015 = vmatprep.subr.bf16.mxu0 %v968
        %1016 = vmatpush1.bf16.xpose.msra.mxu0 %v967
        %1017 = vmatprep.subr.bf16.mxu0 %v970
        %1018 = vmatpush1.bf16.xpose.msra.mxu0 %v969
        %1019 = vmatprep.subr.bf16.mxu0 %v972
        %1020 = vmatpush1.bf16.xpose.msra.mxu0 %v971
        %1021 = vmatprep.subr.bf16.mxu0 %v974
        %1022 = vmatpush1.bf16.xpose.msra.mxu0 %v973
        %1023 = vmatprep.subr.bf16.mxu0 %v976
        %1024 = vmatpush1.bf16.xpose.msra.mxu0 %v975
        %1025 = vmatprep.mubr.bf16.mxu0 %v786
        %1026 = vmatmul.mubr.bf16.gmra.mrb[0].mxu0 %v785
        %v1027 = vpop.f32.mrb[0].mxu0
        %v1028 = vadd.f32 0.0, %v1027
        %v1029 = vpop.f32.mrb[0].mxu0
        %v1030 = vadd.f32 0.0, %v1029
        %v1031 = vpop.f32.mrb[0].mxu0
        %v1032 = vadd.f32 0.0, %v1031
        %v1033 = vpop.f32.mrb[0].mxu0
        %v1034 = vadd.f32 0.0, %v1033
        %1035 = vmatprep.mubr.bf16.mxu0 %v788
        %1036 = vmatmul.mubr.bf16.gmra.mrb[0].mxu0 %v787
        %v1037 = vpop.f32.mrb[0].mxu0
        %v1038 = vadd.f32 0.0, %v1037
        %v1039 = vpop.f32.mrb[0].mxu0
        %v1040 = vadd.f32 0.0, %v1039
        %v1041 = vpop.f32.mrb[0].mxu0
        %v1042 = vadd.f32 0.0, %v1041
        %v1043 = vpop.f32.mrb[0].mxu0
        %v1044 = vadd.f32 0.0, %v1043
        %1045 = vmatprep.mubr.bf16.mxu0 %v790
        %1046 = vmatmul.mubr.bf16.gmra.mrb[0].mxu0 %v789
        %v1047 = vpop.f32.mrb[0].mxu0
        %v1048 = vadd.f32 0.0, %v1047
        %v1049 = vpop.f32.mrb[0].mxu0
        %v1050 = vadd.f32 0.0, %v1049
        %v1051 = vpop.f32.mrb[0].mxu0
        %v1052 = vadd.f32 0.0, %v1051
        %v1053 = vpop.f32.mrb[0].mxu0
        %v1054 = vadd.f32 0.0, %v1053
        %1055 = vmatprep.mubr.bf16.mxu0 %v792
        %1056 = vmatmul.mubr.bf16.gmra.mrb[0].mxu0 %v791
        %v1057 = vpop.f32.mrb[0].mxu0
        %v1058 = vadd.f32 0.0, %v1057
        %v1059 = vpop.f32.mrb[0].mxu0
        %v1060 = vadd.f32 0.0, %v1059
        %v1061 = vpop.f32.mrb[0].mxu0
        %v1062 = vadd.f32 0.0, %v1061
        %v1063 = vpop.f32.mrb[0].mxu0
        %v1064 = vadd.f32 0.0, %v1063
        %1065 = vmatprep.mubr.bf16.mxu0 %v794
        %1066 = vmatmul.mubr.bf16.gmra.mrb[0].mxu0 %v793
        %v1067 = vpop.f32.mrb[0].mxu0
        %v1068 = vadd.f32 0.0, %v1067
        %v1069 = vpop.f32.mrb[0].mxu0
        %v1070 = vadd.f32 0.0, %v1069
        %v1071 = vpop.f32.mrb[0].mxu0
        %v1072 = vadd.f32 0.0, %v1071
        %v1073 = vpop.f32.mrb[0].mxu0
        %v1074 = vadd.f32 0.0, %v1073
        %1075 = vmatprep.mubr.bf16.mxu0 %v796
        %1076 = vmatmul.mubr.bf16.gmra.mrb[0].mxu0 %v795
        %v1077 = vpop.f32.mrb[0].mxu0
        %v1078 = vadd.f32 0.0, %v1077
        %v1079 = vpop.f32.mrb[0].mxu0
        %v1080 = vadd.f32 0.0, %v1079
        %v1081 = vpop.f32.mrb[0].mxu0
        %v1082 = vadd.f32 0.0, %v1081
        %v1083 = vpop.f32.mrb[0].mxu0
        %v1084 = vadd.f32 0.0, %v1083
        %1085 = vmatprep.mubr.bf16.mxu0 %v798
        %1086 = vmatmul.mubr.bf16.gmra.mrb[0].mxu0 %v797
        %v1087 = vpop.f32.mrb[0].mxu0
        %v1088 = vadd.f32 0.0, %v1087
        %v1089 = vpop.f32.mrb[0].mxu0
        %v1090 = vadd.f32 0.0, %v1089
        %v1091 = vpop.f32.mrb[0].mxu0
        %v1092 = vadd.f32 0.0, %v1091
        %v1093 = vpop.f32.mrb[0].mxu0
        %v1094 = vadd.f32 0.0, %v1093
        %1095 = vmatprep.mubr.bf16.mxu0 %v800
        %1096 = vmatmul.mubr.bf16.gmra.mrb[0].mxu0 %v799
        %v1097 = vpop.f32.mrb[0].mxu0
        %v1098 = vadd.f32 0.0, %v1097
        %v1099 = vpop.f32.mrb[0].mxu0
        %v1100 = vadd.f32 0.0, %v1099
        %v1101 = vpop.f32.mrb[0].mxu0
        %v1102 = vadd.f32 0.0, %v1101
        %v1103 = vpop.f32.mrb[0].mxu0
        %v1104 = vadd.f32 0.0, %v1103
        %1105 = vmatprep.mubr.bf16.mxu0 %v802
        %1106 = vmatmul.mubr.bf16.gmra.mrb[0].mxu0 %v801
        %v1107 = vpop.f32.mrb[0].mxu0
        %v1108 = vadd.f32 0.0, %v1107
        %v1109 = vpop.f32.mrb[0].mxu0
        %v1110 = vadd.f32 0.0, %v1109
        %v1111 = vpop.f32.mrb[0].mxu0
        %v1112 = vadd.f32 0.0, %v1111
        %v1113 = vpop.f32.mrb[0].mxu0
        %v1114 = vadd.f32 0.0, %v1113
        %1115 = vmatprep.mubr.bf16.mxu0 %v804
        %1116 = vmatmul.mubr.bf16.gmra.mrb[0].mxu0 %v803
        %v1117 = vpop.f32.mrb[0].mxu0
        %v1118 = vadd.f32 0.0, %v1117
        %v1119 = vpop.f32.mrb[0].mxu0
        %v1120 = vadd.f32 0.0, %v1119
        %v1121 = vpop.f32.mrb[0].mxu0
        %v1122 = vadd.f32 0.0, %v1121
        %v1123 = vpop.f32.mrb[0].mxu0
        %v1124 = vadd.f32 0.0, %v1123
        %1125 = vmatprep.mubr.bf16.mxu0 %v806
        %1126 = vmatmul.mubr.bf16.gmra.mrb[0].mxu0 %v805
        %v1127 = vpop.f32.mrb[0].mxu0
        %v1128 = vadd.f32 0.0, %v1127
        %v1129 = vpop.f32.mrb[0].mxu0
        %v1130 = vadd.f32 0.0, %v1129
        %v1131 = vpop.f32.mrb[0].mxu0
        %v1132 = vadd.f32 0.0, %v1131
        %v1133 = vpop.f32.mrb[0].mxu0
        %v1134 = vadd.f32 0.0, %v1133
        %1135 = vmatprep.mubr.bf16.mxu0 %v808
        %1136 = vmatmul.mubr.bf16.gmra.mrb[0].mxu0 %v807
        %v1137 = vpop.f32.mrb[0].mxu0
        %v1138 = vadd.f32 0.0, %v1137
        %v1139 = vpop.f32.mrb[0].mxu0
        %v1140 = vadd.f32 0.0, %v1139
        %v1141 = vpop.f32.mrb[0].mxu0
        %v1142 = vadd.f32 0.0, %v1141
        %v1143 = vpop.f32.mrb[0].mxu0
        %v1144 = vadd.f32 0.0, %v1143
        %1145 = vmatprep.mubr.bf16.mxu0 %v810
        %1146 = vmatmul.mubr.bf16.gmra.mrb[0].mxu0 %v809
        %v1147 = vpop.f32.mrb[0].mxu0
        %v1148 = vadd.f32 0.0, %v1147
        %v1149 = vpop.f32.mrb[0].mxu0
        %v1150 = vadd.f32 0.0, %v1149
        %v1151 = vpop.f32.mrb[0].mxu0
        %v1152 = vadd.f32 0.0, %v1151
        %v1153 = vpop.f32.mrb[0].mxu0
        %v1154 = vadd.f32 0.0, %v1153
        %1155 = vmatprep.mubr.bf16.mxu0 %v812
        %1156 = vmatmul.mubr.bf16.gmra.mrb[0].mxu0 %v811
        %v1157 = vpop.f32.mrb[0].mxu0
        %v1158 = vadd.f32 0.0, %v1157
        %v1159 = vpop.f32.mrb[0].mxu0
        %v1160 = vadd.f32 0.0, %v1159
        %v1161 = vpop.f32.mrb[0].mxu0
        %v1162 = vadd.f32 0.0, %v1161
        %v1163 = vpop.f32.mrb[0].mxu0
        %v1164 = vadd.f32 0.0, %v1163
        %1165 = vmatprep.mubr.bf16.mxu0 %v814
        %1166 = vmatmul.mubr.bf16.gmra.mrb[0].mxu0 %v813
        %v1167 = vpop.f32.mrb[0].mxu0
        %v1168 = vadd.f32 0.0, %v1167
        %v1169 = vpop.f32.mrb[0].mxu0
        %v1170 = vadd.f32 0.0, %v1169
        %v1171 = vpop.f32.mrb[0].mxu0
        %v1172 = vadd.f32 0.0, %v1171
        %v1173 = vpop.f32.mrb[0].mxu0
        %v1174 = vadd.f32 0.0, %v1173
        %1175 = vmatprep.mubr.bf16.mxu0 %v816
        %1176 = vmatmul.mubr.bf16.gmra.mrb[0].mxu0 %v815
        %v1177 = vpop.f32.mrb[0].mxu0
        %v1178 = vadd.f32 0.0, %v1177
        %v1179 = vpop.f32.mrb[0].mxu0
        %v1180 = vadd.f32 0.0, %v1179
        %v1181 = vpop.f32.mrb[0].mxu0
        %v1182 = vadd.f32 0.0, %v1181
        %v1183 = vpop.f32.mrb[0].mxu0
        %v1184 = vadd.f32 0.0, %v1183
        %1185 = vmatprep.mubr.bf16.mxu0 %v818
        %1186 = vmatmul.mubr.bf16.gmra.mrb[0].mxu0 %v817
        %v1187 = vpop.f32.mrb[0].mxu0
        %v1188 = vadd.f32 0.0, %v1187
        %v1189 = vpop.f32.mrb[0].mxu0
        %v1190 = vadd.f32 0.0, %v1189
        %v1191 = vpop.f32.mrb[0].mxu0
        %v1192 = vadd.f32 0.0, %v1191
        %v1193 = vpop.f32.mrb[0].mxu0
        %v1194 = vadd.f32 0.0, %v1193
        %1195 = vmatprep.mubr.bf16.mxu0 %v820
        %1196 = vmatmul.mubr.bf16.gmra.mrb[0].mxu0 %v819
        %v1197 = vpop.f32.mrb[0].mxu0
        %v1198 = vadd.f32 0.0, %v1197
        %v1199 = vpop.f32.mrb[0].mxu0
        %v1200 = vadd.f32 0.0, %v1199
        %v1201 = vpop.f32.mrb[0].mxu0
        %v1202 = vadd.f32 0.0, %v1201
        %v1203 = vpop.f32.mrb[0].mxu0
        %v1204 = vadd.f32 0.0, %v1203
        %1205 = vmatprep.mubr.bf16.mxu0 %v822
        %1206 = vmatmul.mubr.bf16.gmra.mrb[0].mxu0 %v821
        %v1207 = vpop.f32.mrb[0].mxu0
        %v1208 = vadd.f32 0.0, %v1207
        %v1209 = vpop.f32.mrb[0].mxu0
        %v1210 = vadd.f32 0.0, %v1209
        %v1211 = vpop.f32.mrb[0].mxu0
        %v1212 = vadd.f32 0.0, %v1211
        %v1213 = vpop.f32.mrb[0].mxu0
        %v1214 = vadd.f32 0.0, %v1213
        %1215 = vmatprep.mubr.bf16.mxu0 %v824
        %1216 = vmatmul.mubr.bf16.gmra.mrb[0].mxu0 %v823
        %v1217 = vpop.f32.mrb[0].mxu0
        %v1218 = vadd.f32 0.0, %v1217
        %v1219 = vpop.f32.mrb[0].mxu0
        %v1220 = vadd.f32 0.0, %v1219
        %v1221 = vpop.f32.mrb[0].mxu0
        %v1222 = vadd.f32 0.0, %v1221
        %v1223 = vpop.f32.mrb[0].mxu0
        %v1224 = vadd.f32 0.0, %v1223
        %1225 = vmatprep.mubr.bf16.mxu0 %v826
        %1226 = vmatmul.mubr.bf16.gmra.mrb[0].mxu0 %v825
        %v1227 = vpop.f32.mrb[0].mxu0
        %v1228 = vadd.f32 0.0, %v1227
        %v1229 = vpop.f32.mrb[0].mxu0
        %v1230 = vadd.f32 0.0, %v1229
        %v1231 = vpop.f32.mrb[0].mxu0
        %v1232 = vadd.f32 0.0, %v1231
        %v1233 = vpop.f32.mrb[0].mxu0
        %v1234 = vadd.f32 0.0, %v1233
        %1235 = vmatprep.mubr.bf16.mxu0 %v828
        %1236 = vmatmul.mubr.bf16.gmra.mrb[0].mxu0 %v827
        %v1237 = vpop.f32.mrb[0].mxu0
        %v1238 = vadd.f32 0.0, %v1237
        %v1239 = vpop.f32.mrb[0].mxu0
        %v1240 = vadd.f32 0.0, %v1239
        %v1241 = vpop.f32.mrb[0].mxu0
        %v1242 = vadd.f32 0.0, %v1241
        %v1243 = vpop.f32.mrb[0].mxu0
        %v1244 = vadd.f32 0.0, %v1243
        %1245 = vmatprep.mubr.bf16.mxu0 %v830
        %1246 = vmatmul.mubr.bf16.gmra.mrb[0].mxu0 %v829
        %v1247 = vpop.f32.mrb[0].mxu0
        %v1248 = vadd.f32 0.0, %v1247
        %v1249 = vpop.f32.mrb[0].mxu0
        %v1250 = vadd.f32 0.0, %v1249
        %v1251 = vpop.f32.mrb[0].mxu0
        %v1252 = vadd.f32 0.0, %v1251
        %v1253 = vpop.f32.mrb[0].mxu0
        %v1254 = vadd.f32 0.0, %v1253
        %1255 = vmatprep.mubr.bf16.mxu0 %v832
        %1256 = vmatmul.mubr.bf16.gmra.mrb[0].mxu0 %v831
        %v1257 = vpop.f32.mrb[0].mxu0
        %v1258 = vadd.f32 0.0, %v1257
        %v1259 = vpop.f32.mrb[0].mxu0
        %v1260 = vadd.f32 0.0, %v1259
        %v1261 = vpop.f32.mrb[0].mxu0
        %v1262 = vadd.f32 0.0, %v1261
        %v1263 = vpop.f32.mrb[0].mxu0
        %v1264 = vadd.f32 0.0, %v1263
        %1265 = vmatprep.mubr.bf16.mxu0 %v834
        %1266 = vmatmul.mubr.bf16.gmra.mrb[0].mxu0 %v833
        %v1267 = vpop.f32.mrb[0].mxu0
        %v1268 = vadd.f32 0.0, %v1267
        %v1269 = vpop.f32.mrb[0].mxu0
        %v1270 = vadd.f32 0.0, %v1269
        %v1271 = vpop.f32.mrb[0].mxu0
        %v1272 = vadd.f32 0.0, %v1271
        %v1273 = vpop.f32.mrb[0].mxu0
        %v1274 = vadd.f32 0.0, %v1273
        %1275 = vmatprep.mubr.bf16.mxu0 %v836
        %1276 = vmatmul.mubr.bf16.gmra.mrb[0].mxu0 %v835
        %v1277 = vpop.f32.mrb[0].mxu0
        %v1278 = vadd.f32 0.0, %v1277
        %v1279 = vpop.f32.mrb[0].mxu0
        %v1280 = vadd.f32 0.0, %v1279
        %v1281 = vpop.f32.mrb[0].mxu0
        %v1282 = vadd.f32 0.0, %v1281
        %v1283 = vpop.f32.mrb[0].mxu0
        %v1284 = vadd.f32 0.0, %v1283
        %1285 = vmatprep.mubr.bf16.mxu0 %v838
        %1286 = vmatmul.mubr.bf16.gmra.mrb[0].mxu0 %v837
        %v1287 = vpop.f32.mrb[0].mxu0
        %v1288 = vadd.f32 0.0, %v1287
        %v1289 = vpop.f32.mrb[0].mxu0
        %v1290 = vadd.f32 0.0, %v1289
        %v1291 = vpop.f32.mrb[0].mxu0
        %v1292 = vadd.f32 0.0, %v1291
        %v1293 = vpop.f32.mrb[0].mxu0
        %v1294 = vadd.f32 0.0, %v1293
        %1295 = vmatprep.mubr.bf16.mxu0 %v840
        %1296 = vmatmul.mubr.bf16.gmra.mrb[0].mxu0 %v839
        %v1297 = vpop.f32.mrb[0].mxu0
        %v1298 = vadd.f32 0.0, %v1297
        %v1299 = vpop.f32.mrb[0].mxu0
        %v1300 = vadd.f32 0.0, %v1299
        %v1301 = vpop.f32.mrb[0].mxu0
        %v1302 = vadd.f32 0.0, %v1301
        %v1303 = vpop.f32.mrb[0].mxu0
        %v1304 = vadd.f32 0.0, %v1303
        %1305 = vmatprep.mubr.bf16.mxu0 %v842
        %1306 = vmatmul.mubr.bf16.gmra.mrb[0].mxu0 %v841
        %v1307 = vpop.f32.mrb[0].mxu0
        %v1308 = vadd.f32 0.0, %v1307
        %v1309 = vpop.f32.mrb[0].mxu0
        %v1310 = vadd.f32 0.0, %v1309
        %v1311 = vpop.f32.mrb[0].mxu0
        %v1312 = vadd.f32 0.0, %v1311
        %v1313 = vpop.f32.mrb[0].mxu0
        %v1314 = vadd.f32 0.0, %v1313
        %1315 = vmatprep.mubr.bf16.mxu0 %v844
        %1316 = vmatmul.mubr.bf16.gmra.mrb[0].mxu0 %v843
        %v1317 = vpop.f32.mrb[0].mxu0
        %v1318 = vadd.f32 0.0, %v1317
        %v1319 = vpop.f32.mrb[0].mxu0
        %v1320 = vadd.f32 0.0, %v1319
        %v1321 = vpop.f32.mrb[0].mxu0
        %v1322 = vadd.f32 0.0, %v1321
        %v1323 = vpop.f32.mrb[0].mxu0
        %v1324 = vadd.f32 0.0, %v1323
        %1325 = vmatprep.mubr.bf16.mxu0 %v846
        %1326 = vmatmul.mubr.bf16.gmra.mrb[0].mxu0 %v845
        %v1327 = vpop.f32.mrb[0].mxu0
        %v1328 = vadd.f32 0.0, %v1327
        %v1329 = vpop.f32.mrb[0].mxu0
        %v1330 = vadd.f32 0.0, %v1329
        %v1331 = vpop.f32.mrb[0].mxu0
        %v1332 = vadd.f32 0.0, %v1331
        %v1333 = vpop.f32.mrb[0].mxu0
        %v1334 = vadd.f32 0.0, %v1333
        %1335 = vmatprep.mubr.bf16.mxu0 %v848
        %1336 = vmatmul.mubr.bf16.gmra.mrb[0].mxu0 %v847
        %v1337 = vpop.f32.mrb[0].mxu0
        %v1338 = vadd.f32 0.0, %v1337
        %v1339 = vpop.f32.mrb[0].mxu0
        %v1340 = vadd.f32 0.0, %v1339
        %v1341 = vpop.f32.mrb[0].mxu0
        %v1342 = vadd.f32 0.0, %v1341
        %v1343 = vpop.f32.mrb[0].mxu0
        %v1344 = vadd.f32 0.0, %v1343
        %1345 = vdwg.mxu0
        %1346 = vmatprep.subr.bf16.mxu0 %v978
        %1347 = vmatpush1.bf16.xpose.msra.mxu0 %v977
        %1348 = vmatprep.subr.bf16.mxu0 %v980
        %1349 = vmatpush1.bf16.xpose.msra.mxu0 %v979
        %1350 = vmatprep.subr.bf16.mxu0 %v982
        %1351 = vmatpush1.bf16.xpose.msra.mxu0 %v981
        %1352 = vmatprep.subr.bf16.mxu0 %v984
        %1353 = vmatpush1.bf16.xpose.msra.mxu0 %v983
        %1354 = vmatprep.subr.bf16.mxu0 %v986
        %1355 = vmatpush1.bf16.xpose.msra.mxu0 %v985
        %1356 = vmatprep.subr.bf16.mxu0 %v988
        %1357 = vmatpush1.bf16.xpose.msra.mxu0 %v987
        %1358 = vmatprep.subr.bf16.mxu0 %v990
        %1359 = vmatpush1.bf16.xpose.msra.mxu0 %v989
        %1360 = vmatprep.subr.bf16.mxu0 %v992
        %1361 = vmatpush1.bf16.xpose.msra.mxu0 %v991
        %1362 = vmatprep.subr.bf16.mxu0 0
        %1363 = vmatpush1.bf16.xpose.msra.mxu0 0
        %1364 = vmatprep.subr.bf16.mxu0 0
        %1365 = vmatpush1.bf16.xpose.msra.mxu0 0
        %1366 = vmatprep.subr.bf16.mxu0 0
        %1367 = vmatpush1.bf16.xpose.msra.mxu0 0
        %1368 = vmatprep.subr.bf16.mxu0 0
        %1369 = vmatpush1.bf16.xpose.msra.mxu0 0
        %1370 = vmatprep.subr.bf16.mxu0 0
        %1371 = vmatpush1.bf16.xpose.msra.mxu0 0
        %1372 = vmatprep.subr.bf16.mxu0 0
        %1373 = vmatpush1.bf16.xpose.msra.mxu0 0
        %1374 = vmatprep.subr.bf16.mxu0 0
        %1375 = vmatpush1.bf16.xpose.msra.mxu0 0
        %1376 = vmatprep.subr.bf16.mxu0 0
        %1377 = vmatpush1.bf16.xpose.msra.mxu0 0
        %1378 = vmatprep.mubr.bf16.mxu0 %v786
        %1379 = vmatmul.mubr.bf16.gmra.mrb[0].mxu0 %v785
        %v1380 = vpop.f32.mrb[0].mxu0
        %v1381 = vadd.f32 0.0, %v1380
        %v1382 = vpop.f32.mrb[0].mxu0
        %v1383 = vpop.f32.mrb[0].mxu0
        %v1384 = vadd.f32 0.0, %v1383
        %v1385 = vpop.f32.mrb[0].mxu0
        %1386 = vmatprep.mubr.bf16.mxu0 %v788
        %1387 = vmatmul.mubr.bf16.gmra.mrb[0].mxu0 %v787
        %v1388 = vpop.f32.mrb[0].mxu0
        %v1389 = vadd.f32 0.0, %v1388
        %v1390 = vpop.f32.mrb[0].mxu0
        %v1391 = vpop.f32.mrb[0].mxu0
        %v1392 = vadd.f32 0.0, %v1391
        %v1393 = vpop.f32.mrb[0].mxu0
        %1394 = vmatprep.mubr.bf16.mxu0 %v790
        %1395 = vmatmul.mubr.bf16.gmra.mrb[0].mxu0 %v789
        %v1396 = vpop.f32.mrb[0].mxu0
        %v1397 = vadd.f32 0.0, %v1396
        %v1398 = vpop.f32.mrb[0].mxu0
        %v1399 = vpop.f32.mrb[0].mxu0
        %v1400 = vadd.f32 0.0, %v1399
        %v1401 = vpop.f32.mrb[0].mxu0
        %1402 = vmatprep.mubr.bf16.mxu0 %v792
        %1403 = vmatmul.mubr.bf16.gmra.mrb[0].mxu0 %v791
        %v1404 = vpop.f32.mrb[0].mxu0
        %v1405 = vadd.f32 0.0, %v1404
        %v1406 = vpop.f32.mrb[0].mxu0
        %v1407 = vpop.f32.mrb[0].mxu0
        %v1408 = vadd.f32 0.0, %v1407
        %v1409 = vpop.f32.mrb[0].mxu0
        %1410 = vmatprep.mubr.bf16.mxu0 %v794
        %1411 = vmatmul.mubr.bf16.gmra.mrb[0].mxu0 %v793
        %v1412 = vpop.f32.mrb[0].mxu0
        %v1413 = vadd.f32 0.0, %v1412
        %v1414 = vpop.f32.mrb[0].mxu0
        %v1415 = vpop.f32.mrb[0].mxu0
        %v1416 = vadd.f32 0.0, %v1415
        %v1417 = vpop.f32.mrb[0].mxu0
        %1418 = vmatprep.mubr.bf16.mxu0 %v796
        %1419 = vmatmul.mubr.bf16.gmra.mrb[0].mxu0 %v795
        %v1420 = vpop.f32.mrb[0].mxu0
        %v1421 = vadd.f32 0.0, %v1420
        %v1422 = vpop.f32.mrb[0].mxu0
        %v1423 = vpop.f32.mrb[0].mxu0
        %v1424 = vadd.f32 0.0, %v1423
        %v1425 = vpop.f32.mrb[0].mxu0
        %1426 = vmatprep.mubr.bf16.mxu0 %v798
        %1427 = vmatmul.mubr.bf16.gmra.mrb[0].mxu0 %v797
        %v1428 = vpop.f32.mrb[0].mxu0
        %v1429 = vadd.f32 0.0, %v1428
        %v1430 = vpop.f32.mrb[0].mxu0
        %v1431 = vpop.f32.mrb[0].mxu0
        %v1432 = vadd.f32 0.0, %v1431
        %v1433 = vpop.f32.mrb[0].mxu0
        %1434 = vmatprep.mubr.bf16.mxu0 %v800
        %1435 = vmatmul.mubr.bf16.gmra.mrb[0].mxu0 %v799
        %v1436 = vpop.f32.mrb[0].mxu0
        %v1437 = vadd.f32 0.0, %v1436
        %v1438 = vpop.f32.mrb[0].mxu0
        %v1439 = vpop.f32.mrb[0].mxu0
        %v1440 = vadd.f32 0.0, %v1439
        %v1441 = vpop.f32.mrb[0].mxu0
        %1442 = vmatprep.mubr.bf16.mxu0 %v802
        %1443 = vmatmul.mubr.bf16.gmra.mrb[0].mxu0 %v801
        %v1444 = vpop.f32.mrb[0].mxu0
        %v1445 = vadd.f32 0.0, %v1444
        %v1446 = vpop.f32.mrb[0].mxu0
        %v1447 = vpop.f32.mrb[0].mxu0
        %v1448 = vadd.f32 0.0, %v1447
        %v1449 = vpop.f32.mrb[0].mxu0
        %1450 = vmatprep.mubr.bf16.mxu0 %v804
        %1451 = vmatmul.mubr.bf16.gmra.mrb[0].mxu0 %v803
        %v1452 = vpop.f32.mrb[0].mxu0
        %v1453 = vadd.f32 0.0, %v1452
        %v1454 = vpop.f32.mrb[0].mxu0
        %v1455 = vpop.f32.mrb[0].mxu0
        %v1456 = vadd.f32 0.0, %v1455
        %v1457 = vpop.f32.mrb[0].mxu0
        %1458 = vmatprep.mubr.bf16.mxu0 %v806
        %1459 = vmatmul.mubr.bf16.gmra.mrb[0].mxu0 %v805
        %v1460 = vpop.f32.mrb[0].mxu0
        %v1461 = vadd.f32 0.0, %v1460
        %v1462 = vpop.f32.mrb[0].mxu0
        %v1463 = vpop.f32.mrb[0].mxu0
        %v1464 = vadd.f32 0.0, %v1463
        %v1465 = vpop.f32.mrb[0].mxu0
        %1466 = vmatprep.mubr.bf16.mxu0 %v808
        %1467 = vmatmul.mubr.bf16.gmra.mrb[0].mxu0 %v807
        %v1468 = vpop.f32.mrb[0].mxu0
        %v1469 = vadd.f32 0.0, %v1468
        %v1470 = vpop.f32.mrb[0].mxu0
        %v1471 = vpop.f32.mrb[0].mxu0
        %v1472 = vadd.f32 0.0, %v1471
        %v1473 = vpop.f32.mrb[0].mxu0
        %1474 = vmatprep.mubr.bf16.mxu0 %v810
        %1475 = vmatmul.mubr.bf16.gmra.mrb[0].mxu0 %v809
        %v1476 = vpop.f32.mrb[0].mxu0
        %v1477 = vadd.f32 0.0, %v1476
        %v1478 = vpop.f32.mrb[0].mxu0
        %v1479 = vpop.f32.mrb[0].mxu0
        %v1480 = vadd.f32 0.0, %v1479
        %v1481 = vpop.f32.mrb[0].mxu0
        %1482 = vmatprep.mubr.bf16.mxu0 %v812
        %1483 = vmatmul.mubr.bf16.gmra.mrb[0].mxu0 %v811
        %v1484 = vpop.f32.mrb[0].mxu0
        %v1485 = vadd.f32 0.0, %v1484
        %v1486 = vpop.f32.mrb[0].mxu0
        %v1487 = vpop.f32.mrb[0].mxu0
        %v1488 = vadd.f32 0.0, %v1487
        %v1489 = vpop.f32.mrb[0].mxu0
        %1490 = vmatprep.mubr.bf16.mxu0 %v814
        %1491 = vmatmul.mubr.bf16.gmra.mrb[0].mxu0 %v813
        %v1492 = vpop.f32.mrb[0].mxu0
        %v1493 = vadd.f32 0.0, %v1492
        %v1494 = vpop.f32.mrb[0].mxu0
        %v1495 = vpop.f32.mrb[0].mxu0
        %v1496 = vadd.f32 0.0, %v1495
        %v1497 = vpop.f32.mrb[0].mxu0
        %1498 = vmatprep.mubr.bf16.mxu0 %v816
        %1499 = vmatmul.mubr.bf16.gmra.mrb[0].mxu0 %v815
        %v1500 = vpop.f32.mrb[0].mxu0
        %v1501 = vadd.f32 0.0, %v1500
        %v1502 = vpop.f32.mrb[0].mxu0
        %v1503 = vpop.f32.mrb[0].mxu0
        %v1504 = vadd.f32 0.0, %v1503
        %v1505 = vpop.f32.mrb[0].mxu0
        %1506 = vmatprep.mubr.bf16.mxu0 %v818
        %1507 = vmatmul.mubr.bf16.gmra.mrb[0].mxu0 %v817
        %v1508 = vpop.f32.mrb[0].mxu0
        %v1509 = vadd.f32 0.0, %v1508
        %v1510 = vpop.f32.mrb[0].mxu0
        %v1511 = vpop.f32.mrb[0].mxu0
        %v1512 = vadd.f32 0.0, %v1511
        %v1513 = vpop.f32.mrb[0].mxu0
        %1514 = vmatprep.mubr.bf16.mxu0 %v820
        %1515 = vmatmul.mubr.bf16.gmra.mrb[0].mxu0 %v819
        %v1516 = vpop.f32.mrb[0].mxu0
        %v1517 = vadd.f32 0.0, %v1516
        %v1518 = vpop.f32.mrb[0].mxu0
        %v1519 = vpop.f32.mrb[0].mxu0
        %v1520 = vadd.f32 0.0, %v1519
        %v1521 = vpop.f32.mrb[0].mxu0
        %1522 = vmatprep.mubr.bf16.mxu0 %v822
        %1523 = vmatmul.mubr.bf16.gmra.mrb[0].mxu0 %v821
        %v1524 = vpop.f32.mrb[0].mxu0
        %v1525 = vadd.f32 0.0, %v1524
        %v1526 = vpop.f32.mrb[0].mxu0
        %v1527 = vpop.f32.mrb[0].mxu0
        %v1528 = vadd.f32 0.0, %v1527
        %v1529 = vpop.f32.mrb[0].mxu0
        %1530 = vmatprep.mubr.bf16.mxu0 %v824
        %1531 = vmatmul.mubr.bf16.gmra.mrb[0].mxu0 %v823
        %v1532 = vpop.f32.mrb[0].mxu0
        %v1533 = vadd.f32 0.0, %v1532
        %v1534 = vpop.f32.mrb[0].mxu0
        %v1535 = vpop.f32.mrb[0].mxu0
        %v1536 = vadd.f32 0.0, %v1535
        %v1537 = vpop.f32.mrb[0].mxu0
        %1538 = vmatprep.mubr.bf16.mxu0 %v826
        %1539 = vmatmul.mubr.bf16.gmra.mrb[0].mxu0 %v825
        %v1540 = vpop.f32.mrb[0].mxu0
        %v1541 = vadd.f32 0.0, %v1540
        %v1542 = vpop.f32.mrb[0].mxu0
        %v1543 = vpop.f32.mrb[0].mxu0
        %v1544 = vadd.f32 0.0, %v1543
        %v1545 = vpop.f32.mrb[0].mxu0
        %1546 = vmatprep.mubr.bf16.mxu0 %v828
        %1547 = vmatmul.mubr.bf16.gmra.mrb[0].mxu0 %v827
        %v1548 = vpop.f32.mrb[0].mxu0
        %v1549 = vadd.f32 0.0, %v1548
        %v1550 = vpop.f32.mrb[0].mxu0
        %v1551 = vpop.f32.mrb[0].mxu0
        %v1552 = vadd.f32 0.0, %v1551
        %v1553 = vpop.f32.mrb[0].mxu0
        %1554 = vmatprep.mubr.bf16.mxu0 %v830
        %1555 = vmatmul.mubr.bf16.gmra.mrb[0].mxu0 %v829
        %v1556 = vpop.f32.mrb[0].mxu0
        %v1557 = vadd.f32 0.0, %v1556
        %v1558 = vpop.f32.mrb[0].mxu0
        %v1559 = vpop.f32.mrb[0].mxu0
        %v1560 = vadd.f32 0.0, %v1559
        %v1561 = vpop.f32.mrb[0].mxu0
        %1562 = vmatprep.mubr.bf16.mxu0 %v832
        %1563 = vmatmul.mubr.bf16.gmra.mrb[0].mxu0 %v831
        %v1564 = vpop.f32.mrb[0].mxu0
        %v1565 = vadd.f32 0.0, %v1564
        %v1566 = vpop.f32.mrb[0].mxu0
        %v1567 = vpop.f32.mrb[0].mxu0
        %v1568 = vadd.f32 0.0, %v1567
        %v1569 = vpop.f32.mrb[0].mxu0
        %1570 = vmatprep.mubr.bf16.mxu0 %v834
        %1571 = vmatmul.mubr.bf16.gmra.mrb[0].mxu0 %v833
        %v1572 = vpop.f32.mrb[0].mxu0
        %v1573 = vadd.f32 0.0, %v1572
        %v1574 = vpop.f32.mrb[0].mxu0
        %v1575 = vpop.f32.mrb[0].mxu0
        %v1576 = vadd.f32 0.0, %v1575
        %v1577 = vpop.f32.mrb[0].mxu0
        %1578 = vmatprep.mubr.bf16.mxu0 %v836
        %1579 = vmatmul.mubr.bf16.gmra.mrb[0].mxu0 %v835
        %v1580 = vpop.f32.mrb[0].mxu0
        %v1581 = vadd.f32 0.0, %v1580
        %v1582 = vpop.f32.mrb[0].mxu0
        %v1583 = vpop.f32.mrb[0].mxu0
        %v1584 = vadd.f32 0.0, %v1583
        %v1585 = vpop.f32.mrb[0].mxu0
        %1586 = vmatprep.mubr.bf16.mxu0 %v838
        %1587 = vmatmul.mubr.bf16.gmra.mrb[0].mxu0 %v837
        %v1588 = vpop.f32.mrb[0].mxu0
        %v1589 = vadd.f32 0.0, %v1588
        %v1590 = vpop.f32.mrb[0].mxu0
        %v1591 = vpop.f32.mrb[0].mxu0
        %v1592 = vadd.f32 0.0, %v1591
        %v1593 = vpop.f32.mrb[0].mxu0
        %1594 = vmatprep.mubr.bf16.mxu0 %v840
        %1595 = vmatmul.mubr.bf16.gmra.mrb[0].mxu0 %v839
        %v1596 = vpop.f32.mrb[0].mxu0
        %v1597 = vadd.f32 0.0, %v1596
        %v1598 = vpop.f32.mrb[0].mxu0
        %v1599 = vpop.f32.mrb[0].mxu0
        %v1600 = vadd.f32 0.0, %v1599
        %v1601 = vpop.f32.mrb[0].mxu0
        %1602 = vmatprep.mubr.bf16.mxu0 %v842
        %1603 = vmatmul.mubr.bf16.gmra.mrb[0].mxu0 %v841
        %v1604 = vpop.f32.mrb[0].mxu0
        %v1605 = vadd.f32 0.0, %v1604
        %v1606 = vpop.f32.mrb[0].mxu0
        %v1607 = vpop.f32.mrb[0].mxu0
        %v1608 = vadd.f32 0.0, %v1607
        %v1609 = vpop.f32.mrb[0].mxu0
        %1610 = vmatprep.mubr.bf16.mxu0 %v844
        %1611 = vmatmul.mubr.bf16.gmra.mrb[0].mxu0 %v843
        %v1612 = vpop.f32.mrb[0].mxu0
        %v1613 = vadd.f32 0.0, %v1612
        %v1614 = vpop.f32.mrb[0].mxu0
        %v1615 = vpop.f32.mrb[0].mxu0
        %v1616 = vadd.f32 0.0, %v1615
        %v1617 = vpop.f32.mrb[0].mxu0
        %1618 = vmatprep.mubr.bf16.mxu0 %v846
        %1619 = vmatmul.mubr.bf16.gmra.mrb[0].mxu0 %v845
        %v1620 = vpop.f32.mrb[0].mxu0
        %v1621 = vadd.f32 0.0, %v1620
        %v1622 = vpop.f32.mrb[0].mxu0
        %v1623 = vpop.f32.mrb[0].mxu0
        %v1624 = vadd.f32 0.0, %v1623
        %v1625 = vpop.f32.mrb[0].mxu0
        %1626 = vmatprep.mubr.bf16.mxu0 %v848
        %1627 = vmatmul.mubr.bf16.gmra.mrb[0].mxu0 %v847
        %v1628 = vpop.f32.mrb[0].mxu0
        %v1629 = vadd.f32 0.0, %v1628
        %v1630 = vpop.f32.mrb[0].mxu0
        %v1631 = vpop.f32.mrb[0].mxu0
        %v1632 = vadd.f32 0.0, %v1631
        %v1633 = vpop.f32.mrb[0].mxu0
        %1634 = vdwg.mxu0
        %v1635 = vadd.f32 %v465, %v1028
        %v1636 = vadd.f32 %v466, %v1030
        %v1637 = vadd.f32 %v467, %v1381
        %v1638 = vadd.f32 %v468, %v1032
        %v1639 = vadd.f32 %v469, %v1034
        %v1640 = vadd.f32 %v470, %v1384
        %v1641 = vadd.f32 %v471, %v1038
        %v1642 = vadd.f32 %v472, %v1040
        %v1643 = vadd.f32 %v473, %v1389
        %v1644 = vadd.f32 %v474, %v1042
        %v1645 = vadd.f32 %v475, %v1044
        %v1646 = vadd.f32 %v476, %v1392
        %v1647 = vadd.f32 %v477, %v1048
        %v1648 = vadd.f32 %v478, %v1050
        %v1649 = vadd.f32 %v479, %v1397
        %v1650 = vadd.f32 %v480, %v1052
        %v1651 = vadd.f32 %v481, %v1054
        %v1652 = vadd.f32 %v482, %v1400
        %v1653 = vadd.f32 %v483, %v1058
        %v1654 = vadd.f32 %v484, %v1060
        %v1655 = vadd.f32 %v485, %v1405
        %v1656 = vadd.f32 %v486, %v1062
        %v1657 = vadd.f32 %v487, %v1064
        %v1658 = vadd.f32 %v488, %v1408
        %v1659 = vadd.f32 %v489, %v1068
        %v1660 = vadd.f32 %v490, %v1070
        %v1661 = vadd.f32 %v491, %v1413
        %v1662 = vadd.f32 %v492, %v1072
        %v1663 = vadd.f32 %v493, %v1074
        %v1664 = vadd.f32 %v494, %v1416
        %v1665 = vadd.f32 %v495, %v1078
        %v1666 = vadd.f32 %v496, %v1080
        %v1667 = vadd.f32 %v497, %v1421
        %v1668 = vadd.f32 %v498, %v1082
        %v1669 = vadd.f32 %v499, %v1084
        %v1670 = vadd.f32 %v500, %v1424
        %v1671 = vadd.f32 %v501, %v1088
        %v1672 = vadd.f32 %v502, %v1090
        %v1673 = vadd.f32 %v503, %v1429
        %v1674 = vadd.f32 %v504, %v1092
        %v1675 = vadd.f32 %v505, %v1094
        %v1676 = vadd.f32 %v506, %v1432
        %v1677 = vadd.f32 %v507, %v1098
        %v1678 = vadd.f32 %v508, %v1100
        %v1679 = vadd.f32 %v509, %v1437
        %v1680 = vadd.f32 %v510, %v1102
        %v1681 = vadd.f32 %v511, %v1104
        %v1682 = vadd.f32 %v512, %v1440
        %v1683 = vadd.f32 %v513, %v1108
        %v1684 = vadd.f32 %v514, %v1110
        %v1685 = vadd.f32 %v515, %v1445
        %v1686 = vadd.f32 %v516, %v1112
        %v1687 = vadd.f32 %v517, %v1114
        %v1688 = vadd.f32 %v518, %v1448
        %v1689 = vadd.f32 %v519, %v1118
        %v1690 = vadd.f32 %v520, %v1120
        %v1691 = vadd.f32 %v521, %v1453
        %v1692 = vadd.f32 %v522, %v1122
        %v1693 = vadd.f32 %v523, %v1124
        %v1694 = vadd.f32 %v524, %v1456
        %v1695 = vadd.f32 %v525, %v1128
        %v1696 = vadd.f32 %v526, %v1130
        %v1697 = vadd.f32 %v527, %v1461
        %v1698 = vadd.f32 %v528, %v1132
        %v1699 = vadd.f32 %v529, %v1134
        %v1700 = vadd.f32 %v530, %v1464
        %v1701 = vadd.f32 %v531, %v1138
        %v1702 = vadd.f32 %v532, %v1140
        %v1703 = vadd.f32 %v533, %v1469
        %v1704 = vadd.f32 %v534, %v1142
        %v1705 = vadd.f32 %v535, %v1144
        %v1706 = vadd.f32 %v536, %v1472
        %v1707 = vadd.f32 %v537, %v1148
        %v1708 = vadd.f32 %v538, %v1150
        %v1709 = vadd.f32 %v539, %v1477
        %v1710 = vadd.f32 %v540, %v1152
        %v1711 = vadd.f32 %v541, %v1154
        %v1712 = vadd.f32 %v542, %v1480
        %v1713 = vadd.f32 %v543, %v1158
        %v1714 = vadd.f32 %v544, %v1160
        %v1715 = vadd.f32 %v545, %v1485
        %v1716 = vadd.f32 %v546, %v1162
        %v1717 = vadd.f32 %v547, %v1164
        %v1718 = vadd.f32 %v548, %v1488
        %v1719 = vadd.f32 %v549, %v1168
        %v1720 = vadd.f32 %v550, %v1170
        %v1721 = vadd.f32 %v551, %v1493
        %v1722 = vadd.f32 %v552, %v1172
        %v1723 = vadd.f32 %v553, %v1174
        %v1724 = vadd.f32 %v554, %v1496
        %v1725 = vadd.f32 %v555, %v1178
        %v1726 = vadd.f32 %v556, %v1180
        %v1727 = vadd.f32 %v557, %v1501
        %v1728 = vadd.f32 %v558, %v1182
        %v1729 = vadd.f32 %v559, %v1184
        %v1730 = vadd.f32 %v560, %v1504
        %v1731 = vadd.f32 %v561, %v1188
        %v1732 = vadd.f32 %v562, %v1190
        %v1733 = vadd.f32 %v563, %v1509
        %v1734 = vadd.f32 %v564, %v1192
        %v1735 = vadd.f32 %v565, %v1194
        %v1736 = vadd.f32 %v566, %v1512
        %v1737 = vadd.f32 %v567, %v1198
        %v1738 = vadd.f32 %v568, %v1200
        %v1739 = vadd.f32 %v569, %v1517
        %v1740 = vadd.f32 %v570, %v1202
        %v1741 = vadd.f32 %v571, %v1204
        %v1742 = vadd.f32 %v572, %v1520
        %v1743 = vadd.f32 %v573, %v1208
        %v1744 = vadd.f32 %v574, %v1210
        %v1745 = vadd.f32 %v575, %v1525
        %v1746 = vadd.f32 %v576, %v1212
        %v1747 = vadd.f32 %v577, %v1214
        %v1748 = vadd.f32 %v578, %v1528
        %v1749 = vadd.f32 %v579, %v1218
        %v1750 = vadd.f32 %v580, %v1220
        %v1751 = vadd.f32 %v581, %v1533
        %v1752 = vadd.f32 %v582, %v1222
        %v1753 = vadd.f32 %v583, %v1224
        %v1754 = vadd.f32 %v584, %v1536
        %v1755 = vadd.f32 %v585, %v1228
        %v1756 = vadd.f32 %v586, %v1230
        %v1757 = vadd.f32 %v587, %v1541
        %v1758 = vadd.f32 %v588, %v1232
        %v1759 = vadd.f32 %v589, %v1234
        %v1760 = vadd.f32 %v590, %v1544
        %v1761 = vadd.f32 %v591, %v1238
        %v1762 = vadd.f32 %v592, %v1240
        %v1763 = vadd.f32 %v593, %v1549
        %v1764 = vadd.f32 %v594, %v1242
        %v1765 = vadd.f32 %v595, %v1244
        %v1766 = vadd.f32 %v596, %v1552
        %v1767 = vadd.f32 %v597, %v1248
        %v1768 = vadd.f32 %v598, %v1250
        %v1769 = vadd.f32 %v599, %v1557
        %v1770 = vadd.f32 %v600, %v1252
        %v1771 = vadd.f32 %v601, %v1254
        %v1772 = vadd.f32 %v602, %v1560
        %v1773 = vadd.f32 %v603, %v1258
        %v1774 = vadd.f32 %v604, %v1260
        %v1775 = vadd.f32 %v605, %v1565
        %v1776 = vadd.f32 %v606, %v1262
        %v1777 = vadd.f32 %v607, %v1264
        %v1778 = vadd.f32 %v608, %v1568
        %v1779 = vadd.f32 %v609, %v1268
        %v1780 = vadd.f32 %v610, %v1270
        %v1781 = vadd.f32 %v611, %v1573
        %v1782 = vadd.f32 %v612, %v1272
        %v1783 = vadd.f32 %v613, %v1274
        %v1784 = vadd.f32 %v614, %v1576
        %v1785 = vadd.f32 %v615, %v1278
        %v1786 = vadd.f32 %v616, %v1280
        %v1787 = vadd.f32 %v617, %v1581
        %v1788 = vadd.f32 %v618, %v1282
        %v1789 = vadd.f32 %v619, %v1284
        %v1790 = vadd.f32 %v620, %v1584
        %v1791 = vadd.f32 %v621, %v1288
        %v1792 = vadd.f32 %v622, %v1290
        %v1793 = vadd.f32 %v623, %v1589
        %v1794 = vadd.f32 %v624, %v1292
        %v1795 = vadd.f32 %v625, %v1294
        %v1796 = vadd.f32 %v626, %v1592
        %v1797 = vadd.f32 %v627, %v1298
        %v1798 = vadd.f32 %v628, %v1300
        %v1799 = vadd.f32 %v629, %v1597
        %v1800 = vadd.f32 %v630, %v1302
        %v1801 = vadd.f32 %v631, %v1304
        %v1802 = vadd.f32 %v632, %v1600
        %v1803 = vadd.f32 %v633, %v1308
        %v1804 = vadd.f32 %v634, %v1310
        %v1805 = vadd.f32 %v635, %v1605
        %v1806 = vadd.f32 %v636, %v1312
        %v1807 = vadd.f32 %v637, %v1314
        %v1808 = vadd.f32 %v638, %v1608
        %v1809 = vadd.f32 %v639, %v1318
        %v1810 = vadd.f32 %v640, %v1320
        %v1811 = vadd.f32 %v641, %v1613
        %v1812 = vadd.f32 %v642, %v1322
        %v1813 = vadd.f32 %v643, %v1324
        %v1814 = vadd.f32 %v644, %v1616
        %v1815 = vadd.f32 %v645, %v1328
        %v1816 = vadd.f32 %v646, %v1330
        %v1817 = vadd.f32 %v647, %v1621
        %v1818 = vadd.f32 %v648, %v1332
        %v1819 = vadd.f32 %v649, %v1334
        %v1820 = vadd.f32 %v650, %v1624
        %v1821 = vadd.f32 %v651, %v1338
        %v1822 = vadd.f32 %v652, %v1340
        %v1823 = vadd.f32 %v653, %v1629
        %v1824 = vadd.f32 %v654, %v1342
        %v1825 = vadd.f32 %v655, %v1344
        %v1826 = vadd.f32 %v656, %v1632
        %1827 = vst [vmem:[#allocation2] sm:$0xff] %v1635
        %1828 = vst [vmem:[#allocation2 + $0x8] sm:$0xff] %v1636
        %1829 = vst [vmem:[#allocation2 + $0x10] sm:$0xff] %v1637
        %1830 = vst [vmem:[#allocation2 + $0x18] sm:$0xff] %v1638
        %1831 = vst [vmem:[#allocation2 + $0x20] sm:$0xff] %v1639
        %1832 = vst [vmem:[#allocation2 + $0x28] sm:$0xff] %v1640
        %1833 = vst [vmem:[#allocation2 + $0x30] sm:$0xff] %v1641
        %1834 = vst [vmem:[#allocation2 + $0x38] sm:$0xff] %v1642
        %1835 = vst [vmem:[#allocation2 + $0x40] sm:$0xff] %v1643
        %1836 = vst [vmem:[#allocation2 + $0x48] sm:$0xff] %v1644
        %1837 = vst [vmem:[#allocation2 + $0x50] sm:$0xff] %v1645
        %1838 = vst [vmem:[#allocation2 + $0x58] sm:$0xff] %v1646
        %1839 = vst [vmem:[#allocation2 + $0x60] sm:$0xff] %v1647
        %1840 = vst [vmem:[#allocation2 + $0x68] sm:$0xff] %v1648
        %1841 = vst [vmem:[#allocation2 + $0x70] sm:$0xff] %v1649
        %1842 = vst [vmem:[#allocation2 + $0x78] sm:$0xff] %v1650
        %1843 = vst [vmem:[#allocation2 + $0x80] sm:$0xff] %v1651
        %1844 = vst [vmem:[#allocation2 + $0x88] sm:$0xff] %v1652
        %1845 = vst [vmem:[#allocation2 + $0x90] sm:$0xff] %v1653
        %1846 = vst [vmem:[#allocation2 + $0x98] sm:$0xff] %v1654
        %1847 = vst [vmem:[#allocation2 + $0xa0] sm:$0xff] %v1655
        %1848 = vst [vmem:[#allocation2 + $0xa8] sm:$0xff] %v1656
        %1849 = vst [vmem:[#allocation2 + $0xb0] sm:$0xff] %v1657
        %1850 = vst [vmem:[#allocation2 + $0xb8] sm:$0xff] %v1658
        %1851 = vst [vmem:[#allocation2 + $0xc0] sm:$0xff] %v1659
        %1852 = vst [vmem:[#allocation2 + $0xc8] sm:$0xff] %v1660
        %1853 = vst [vmem:[#allocation2 + $0xd0] sm:$0xff] %v1661
        %1854 = vst [vmem:[#allocation2 + $0xd8] sm:$0xff] %v1662
        %1855 = vst [vmem:[#allocation2 + $0xe0] sm:$0xff] %v1663
        %1856 = vst [vmem:[#allocation2 + $0xe8] sm:$0xff] %v1664
        %1857 = vst [vmem:[#allocation2 + $0xf0] sm:$0xff] %v1665
        %1858 = vst [vmem:[#allocation2 + $0xf8] sm:$0xff] %v1666
        %1859 = vst [vmem:[#allocation2 + $0x100] sm:$0xff] %v1667
        %1860 = vst [vmem:[#allocation2 + $0x108] sm:$0xff] %v1668
        %1861 = vst [vmem:[#allocation2 + $0x110] sm:$0xff] %v1669
        %1862 = vst [vmem:[#allocation2 + $0x118] sm:$0xff] %v1670
        %1863 = vst [vmem:[#allocation2 + $0x120] sm:$0xff] %v1671
        %1864 = vst [vmem:[#allocation2 + $0x128] sm:$0xff] %v1672
        %1865 = vst [vmem:[#allocation2 + $0x130] sm:$0xff] %v1673
        %1866 = vst [vmem:[#allocation2 + $0x138] sm:$0xff] %v1674
        %1867 = vst [vmem:[#allocation2 + $0x140] sm:$0xff] %v1675
        %1868 = vst [vmem:[#allocation2 + $0x148] sm:$0xff] %v1676
        %1869 = vst [vmem:[#allocation2 + $0x150] sm:$0xff] %v1677
        %1870 = vst [vmem:[#allocation2 + $0x158] sm:$0xff] %v1678
        %1871 = vst [vmem:[#allocation2 + $0x160] sm:$0xff] %v1679
        %1872 = vst [vmem:[#allocation2 + $0x168] sm:$0xff] %v1680
        %1873 = vst [vmem:[#allocation2 + $0x170] sm:$0xff] %v1681
        %1874 = vst [vmem:[#allocation2 + $0x178] sm:$0xff] %v1682
        %1875 = vst [vmem:[#allocation2 + $0x180] sm:$0xff] %v1683
        %1876 = vst [vmem:[#allocation2 + $0x188] sm:$0xff] %v1684
        %1877 = vst [vmem:[#allocation2 + $0x190] sm:$0xff] %v1685
        %1878 = vst [vmem:[#allocation2 + $0x198] sm:$0xff] %v1686
        %1879 = vst [vmem:[#allocation2 + $0x1a0] sm:$0xff] %v1687
        %1880 = vst [vmem:[#allocation2 + $0x1a8] sm:$0xff] %v1688
        %1881 = vst [vmem:[#allocation2 + $0x1b0] sm:$0xff] %v1689
        %1882 = vst [vmem:[#allocation2 + $0x1b8] sm:$0xff] %v1690
        %1883 = vst [vmem:[#allocation2 + $0x1c0] sm:$0xff] %v1691
        %1884 = vst [vmem:[#allocation2 + $0x1c8] sm:$0xff] %v1692
        %1885 = vst [vmem:[#allocation2 + $0x1d0] sm:$0xff] %v1693
        %1886 = vst [vmem:[#allocation2 + $0x1d8] sm:$0xff] %v1694
        %1887 = vst [vmem:[#allocation2 + $0x1e0] sm:$0xff] %v1695
        %1888 = vst [vmem:[#allocation2 + $0x1e8] sm:$0xff] %v1696
        %1889 = vst [vmem:[#allocation2 + $0x1f0] sm:$0xff] %v1697
        %1890 = vst [vmem:[#allocation2 + $0x1f8] sm:$0xff] %v1698
        %1891 = vst [vmem:[#allocation2 + $0x200] sm:$0xff] %v1699
        %1892 = vst [vmem:[#allocation2 + $0x208] sm:$0xff] %v1700
        %1893 = vst [vmem:[#allocation2 + $0x210] sm:$0xff] %v1701
        %1894 = vst [vmem:[#allocation2 + $0x218] sm:$0xff] %v1702
        %1895 = vst [vmem:[#allocation2 + $0x220] sm:$0xff] %v1703
        %1896 = vst [vmem:[#allocation2 + $0x228] sm:$0xff] %v1704
        %1897 = vst [vmem:[#allocation2 + $0x230] sm:$0xff] %v1705
        %1898 = vst [vmem:[#allocation2 + $0x238] sm:$0xff] %v1706
        %1899 = vst [vmem:[#allocation2 + $0x240] sm:$0xff] %v1707
        %1900 = vst [vmem:[#allocation2 + $0x248] sm:$0xff] %v1708
        %1901 = vst [vmem:[#allocation2 + $0x250] sm:$0xff] %v1709
        %1902 = vst [vmem:[#allocation2 + $0x258] sm:$0xff] %v1710
        %1903 = vst [vmem:[#allocation2 + $0x260] sm:$0xff] %v1711
        %1904 = vst [vmem:[#allocation2 + $0x268] sm:$0xff] %v1712
        %1905 = vst [vmem:[#allocation2 + $0x270] sm:$0xff] %v1713
        %1906 = vst [vmem:[#allocation2 + $0x278] sm:$0xff] %v1714
        %1907 = vst [vmem:[#allocation2 + $0x280] sm:$0xff] %v1715
        %1908 = vst [vmem:[#allocation2 + $0x288] sm:$0xff] %v1716
        %1909 = vst [vmem:[#allocation2 + $0x290] sm:$0xff] %v1717
        %1910 = vst [vmem:[#allocation2 + $0x298] sm:$0xff] %v1718
        %1911 = vst [vmem:[#allocation2 + $0x2a0] sm:$0xff] %v1719
        %1912 = vst [vmem:[#allocation2 + $0x2a8] sm:$0xff] %v1720
        %1913 = vst [vmem:[#allocation2 + $0x2b0] sm:$0xff] %v1721
        %1914 = vst [vmem:[#allocation2 + $0x2b8] sm:$0xff] %v1722
        %1915 = vst [vmem:[#allocation2 + $0x2c0] sm:$0xff] %v1723
        %1916 = vst [vmem:[#allocation2 + $0x2c8] sm:$0xff] %v1724
        %1917 = vst [vmem:[#allocation2 + $0x2d0] sm:$0xff] %v1725
        %1918 = vst [vmem:[#allocation2 + $0x2d8] sm:$0xff] %v1726
        %1919 = vst [vmem:[#allocation2 + $0x2e0] sm:$0xff] %v1727
        %1920 = vst [vmem:[#allocation2 + $0x2e8] sm:$0xff] %v1728
        %1921 = vst [vmem:[#allocation2 + $0x2f0] sm:$0xff] %v1729
        %1922 = vst [vmem:[#allocation2 + $0x2f8] sm:$0xff] %v1730
        %1923 = vst [vmem:[#allocation2 + $0x300] sm:$0xff] %v1731
        %1924 = vst [vmem:[#allocation2 + $0x308] sm:$0xff] %v1732
        %1925 = vst [vmem:[#allocation2 + $0x310] sm:$0xff] %v1733
        %1926 = vst [vmem:[#allocation2 + $0x318] sm:$0xff] %v1734
        %1927 = vst [vmem:[#allocation2 + $0x320] sm:$0xff] %v1735
        %1928 = vst [vmem:[#allocation2 + $0x328] sm:$0xff] %v1736
        %1929 = vst [vmem:[#allocation2 + $0x330] sm:$0xff] %v1737
        %1930 = vst [vmem:[#allocation2 + $0x338] sm:$0xff] %v1738
        %1931 = vst [vmem:[#allocation2 + $0x340] sm:$0xff] %v1739
        %1932 = vst [vmem:[#allocation2 + $0x348] sm:$0xff] %v1740
        %1933 = vst [vmem:[#allocation2 + $0x350] sm:$0xff] %v1741
        %1934 = vst [vmem:[#allocation2 + $0x358] sm:$0xff] %v1742
        %1935 = vst [vmem:[#allocation2 + $0x360] sm:$0xff] %v1743
        %1936 = vst [vmem:[#allocation2 + $0x368] sm:$0xff] %v1744
        %1937 = vst [vmem:[#allocation2 + $0x370] sm:$0xff] %v1745
        %1938 = vst [vmem:[#allocation2 + $0x378] sm:$0xff] %v1746
        %1939 = vst [vmem:[#allocation2 + $0x380] sm:$0xff] %v1747
        %1940 = vst [vmem:[#allocation2 + $0x388] sm:$0xff] %v1748
        %1941 = vst [vmem:[#allocation2 + $0x390] sm:$0xff] %v1749
        %1942 = vst [vmem:[#allocation2 + $0x398] sm:$0xff] %v1750
        %1943 = vst [vmem:[#allocation2 + $0x3a0] sm:$0xff] %v1751
        %1944 = vst [vmem:[#allocation2 + $0x3a8] sm:$0xff] %v1752
        %1945 = vst [vmem:[#allocation2 + $0x3b0] sm:$0xff] %v1753
        %1946 = vst [vmem:[#allocation2 + $0x3b8] sm:$0xff] %v1754
        %1947 = vst [vmem:[#allocation2 + $0x3c0] sm:$0xff] %v1755
        %1948 = vst [vmem:[#allocation2 + $0x3c8] sm:$0xff] %v1756
        %1949 = vst [vmem:[#allocation2 + $0x3d0] sm:$0xff] %v1757
        %1950 = vst [vmem:[#allocation2 + $0x3d8] sm:$0xff] %v1758
        %1951 = vst [vmem:[#allocation2 + $0x3e0] sm:$0xff] %v1759
        %1952 = vst [vmem:[#allocation2 + $0x3e8] sm:$0xff] %v1760
        %1953 = vst [vmem:[#allocation2 + $0x3f0] sm:$0xff] %v1761
        %1954 = vst [vmem:[#allocation2 + $0x3f8] sm:$0xff] %v1762
        %1955 = vst [vmem:[#allocation2 + $0x400] sm:$0xff] %v1763
        %1956 = vst [vmem:[#allocation2 + $0x408] sm:$0xff] %v1764
        %1957 = vst [vmem:[#allocation2 + $0x410] sm:$0xff] %v1765
        %1958 = vst [vmem:[#allocation2 + $0x418] sm:$0xff] %v1766
        %1959 = vst [vmem:[#allocation2 + $0x420] sm:$0xff] %v1767
        %1960 = vst [vmem:[#allocation2 + $0x428] sm:$0xff] %v1768
        %1961 = vst [vmem:[#allocation2 + $0x430] sm:$0xff] %v1769
        %1962 = vst [vmem:[#allocation2 + $0x438] sm:$0xff] %v1770
        %1963 = vst [vmem:[#allocation2 + $0x440] sm:$0xff] %v1771
        %1964 = vst [vmem:[#allocation2 + $0x448] sm:$0xff] %v1772
        %1965 = vst [vmem:[#allocation2 + $0x450] sm:$0xff] %v1773
        %1966 = vst [vmem:[#allocation2 + $0x458] sm:$0xff] %v1774
        %1967 = vst [vmem:[#allocation2 + $0x460] sm:$0xff] %v1775
        %1968 = vst [vmem:[#allocation2 + $0x468] sm:$0xff] %v1776
        %1969 = vst [vmem:[#allocation2 + $0x470] sm:$0xff] %v1777
        %1970 = vst [vmem:[#allocation2 + $0x478] sm:$0xff] %v1778
        %1971 = vst [vmem:[#allocation2 + $0x480] sm:$0xff] %v1779
        %1972 = vst [vmem:[#allocation2 + $0x488] sm:$0xff] %v1780
        %1973 = vst [vmem:[#allocation2 + $0x490] sm:$0xff] %v1781
        %1974 = vst [vmem:[#allocation2 + $0x498] sm:$0xff] %v1782
        %1975 = vst [vmem:[#allocation2 + $0x4a0] sm:$0xff] %v1783
        %1976 = vst [vmem:[#allocation2 + $0x4a8] sm:$0xff] %v1784
        %1977 = vst [vmem:[#allocation2 + $0x4b0] sm:$0xff] %v1785
        %1978 = vst [vmem:[#allocation2 + $0x4b8] sm:$0xff] %v1786
        %1979 = vst [vmem:[#allocation2 + $0x4c0] sm:$0xff] %v1787
        %1980 = vst [vmem:[#allocation2 + $0x4c8] sm:$0xff] %v1788
        %1981 = vst [vmem:[#allocation2 + $0x4d0] sm:$0xff] %v1789
        %1982 = vst [vmem:[#allocation2 + $0x4d8] sm:$0xff] %v1790
        %1983 = vst [vmem:[#allocation2 + $0x4e0] sm:$0xff] %v1791
        %1984 = vst [vmem:[#allocation2 + $0x4e8] sm:$0xff] %v1792
        %1985 = vst [vmem:[#allocation2 + $0x4f0] sm:$0xff] %v1793
        %1986 = vst [vmem:[#allocation2 + $0x4f8] sm:$0xff] %v1794
        %1987 = vst [vmem:[#allocation2 + $0x500] sm:$0xff] %v1795
        %1988 = vst [vmem:[#allocation2 + $0x508] sm:$0xff] %v1796
        %1989 = vst [vmem:[#allocation2 + $0x510] sm:$0xff] %v1797
        %1990 = vst [vmem:[#allocation2 + $0x518] sm:$0xff] %v1798
        %1991 = vst [vmem:[#allocation2 + $0x520] sm:$0xff] %v1799
        %1992 = vst [vmem:[#allocation2 + $0x528] sm:$0xff] %v1800
        %1993 = vst [vmem:[#allocation2 + $0x530] sm:$0xff] %v1801
        %1994 = vst [vmem:[#allocation2 + $0x538] sm:$0xff] %v1802
        %1995 = vst [vmem:[#allocation2 + $0x540] sm:$0xff] %v1803
        %1996 = vst [vmem:[#allocation2 + $0x548] sm:$0xff] %v1804
        %1997 = vst [vmem:[#allocation2 + $0x550] sm:$0xff] %v1805
        %1998 = vst [vmem:[#allocation2 + $0x558] sm:$0xff] %v1806
        %1999 = vst [vmem:[#allocation2 + $0x560] sm:$0xff] %v1807
        %2000 = vst [vmem:[#allocation2 + $0x568] sm:$0xff] %v1808
        %2001 = vst [vmem:[#allocation2 + $0x570] sm:$0xff] %v1809
        %2002 = vst [vmem:[#allocation2 + $0x578] sm:$0xff] %v1810
        %2003 = vst [vmem:[#allocation2 + $0x580] sm:$0xff] %v1811
        %2004 = vst [vmem:[#allocation2 + $0x588] sm:$0xff] %v1812
        %2005 = vst [vmem:[#allocation2 + $0x590] sm:$0xff] %v1813
        %2006 = vst [vmem:[#allocation2 + $0x598] sm:$0xff] %v1814
        %2007 = vst [vmem:[#allocation2 + $0x5a0] sm:$0xff] %v1815
        %2008 = vst [vmem:[#allocation2 + $0x5a8] sm:$0xff] %v1816
        %2009 = vst [vmem:[#allocation2 + $0x5b0] sm:$0xff] %v1817
        %2010 = vst [vmem:[#allocation2 + $0x5b8] sm:$0xff] %v1818
        %2011 = vst [vmem:[#allocation2 + $0x5c0] sm:$0xff] %v1819
        %2012 = vst [vmem:[#allocation2 + $0x5c8] sm:$0xff] %v1820
        %2013 = vst [vmem:[#allocation2 + $0x5d0] sm:$0xff] %v1821
        %2014 = vst [vmem:[#allocation2 + $0x5d8] sm:$0xff] %v1822
        %2015 = vst [vmem:[#allocation2 + $0x5e0] sm:$0xff] %v1823
        %2016 = vst [vmem:[#allocation2 + $0x5e8] sm:$0xff] %v1824
        %2017 = vst [vmem:[#allocation2 + $0x5f0] sm:$0xff] %v1825
        %2018 = vst [vmem:[#allocation2 + $0x5f8] sm:$0xff] %v1826
        // Predicated region
        $region45: #{tpu_custom_call.1} parent=31 // pred_check
          %p2019 = pneg %p269
        $region46: #{tpu_custom_call.1} parent=31 // pred_check_branch
          %2021 = sbr.rel (%p2019) target = $region48
        $region47: #{tpu_custom_call.1} parent=31 // pred_region
          %v2022 = vld [vmem:[#allocation2] sm:$0xff]
          %v2023 = vld [vmem:[#allocation2 + $0x8] sm:$0xff]
          %v2024 = vld [vmem:[#allocation2 + $0x10] sm:$0xff]
          %v2025 = vld [vmem:[#allocation2 + $0x18] sm:$0xff]
          %v2026 = vld [vmem:[#allocation2 + $0x20] sm:$0xff]
          %v2027 = vld [vmem:[#allocation2 + $0x28] sm:$0xff]
          %v2028 = vld [vmem:[#allocation2 + $0x30] sm:$0xff]
          %v2029 = vld [vmem:[#allocation2 + $0x38] sm:$0xff]
          %v2030 = vld [vmem:[#allocation2 + $0x40] sm:$0xff]
          %v2031 = vld [vmem:[#allocation2 + $0x48] sm:$0xff]
          %v2032 = vld [vmem:[#allocation2 + $0x50] sm:$0xff]
          %v2033 = vld [vmem:[#allocation2 + $0x58] sm:$0xff]
          %v2034 = vld [vmem:[#allocation2 + $0x60] sm:$0xff]
          %v2035 = vld [vmem:[#allocation2 + $0x68] sm:$0xff]
          %v2036 = vld [vmem:[#allocation2 + $0x70] sm:$0xff]
          %v2037 = vld [vmem:[#allocation2 + $0x78] sm:$0xff]
          %v2038 = vld [vmem:[#allocation2 + $0x80] sm:$0xff]
          %v2039 = vld [vmem:[#allocation2 + $0x88] sm:$0xff]
          %v2040 = vld [vmem:[#allocation2 + $0x90] sm:$0xff]
          %v2041 = vld [vmem:[#allocation2 + $0x98] sm:$0xff]
          %v2042 = vld [vmem:[#allocation2 + $0xa0] sm:$0xff]
          %v2043 = vld [vmem:[#allocation2 + $0xa8] sm:$0xff]
          %v2044 = vld [vmem:[#allocation2 + $0xb0] sm:$0xff]
          %v2045 = vld [vmem:[#allocation2 + $0xb8] sm:$0xff]
          %v2046 = vld [vmem:[#allocation2 + $0xc0] sm:$0xff]
          %v2047 = vld [vmem:[#allocation2 + $0xc8] sm:$0xff]
          %v2048 = vld [vmem:[#allocation2 + $0xd0] sm:$0xff]
          %v2049 = vld [vmem:[#allocation2 + $0xd8] sm:$0xff]
          %v2050 = vld [vmem:[#allocation2 + $0xe0] sm:$0xff]
          %v2051 = vld [vmem:[#allocation2 + $0xe8] sm:$0xff]
          %v2052 = vld [vmem:[#allocation2 + $0xf0] sm:$0xff]
          %v2053 = vld [vmem:[#allocation2 + $0xf8] sm:$0xff]
          %v2054 = vld [vmem:[#allocation2 + $0x100] sm:$0xff]
          %v2055 = vld [vmem:[#allocation2 + $0x108] sm:$0xff]
          %v2056 = vld [vmem:[#allocation2 + $0x110] sm:$0xff]
          %v2057 = vld [vmem:[#allocation2 + $0x118] sm:$0xff]
          %v2058 = vld [vmem:[#allocation2 + $0x120] sm:$0xff]
          %v2059 = vld [vmem:[#allocation2 + $0x128] sm:$0xff]
          %v2060 = vld [vmem:[#allocation2 + $0x130] sm:$0xff]
          %v2061 = vld [vmem:[#allocation2 + $0x138] sm:$0xff]
          %v2062 = vld [vmem:[#allocation2 + $0x140] sm:$0xff]
          %v2063 = vld [vmem:[#allocation2 + $0x148] sm:$0xff]
          %v2064 = vld [vmem:[#allocation2 + $0x150] sm:$0xff]
          %v2065 = vld [vmem:[#allocation2 + $0x158] sm:$0xff]
          %v2066 = vld [vmem:[#allocation2 + $0x160] sm:$0xff]
          %v2067 = vld [vmem:[#allocation2 + $0x168] sm:$0xff]
          %v2068 = vld [vmem:[#allocation2 + $0x170] sm:$0xff]
          %v2069 = vld [vmem:[#allocation2 + $0x178] sm:$0xff]
          %v2070 = vld [vmem:[#allocation2 + $0x180] sm:$0xff]
          %v2071 = vld [vmem:[#allocation2 + $0x188] sm:$0xff]
          %v2072 = vld [vmem:[#allocation2 + $0x190] sm:$0xff]
          %v2073 = vld [vmem:[#allocation2 + $0x198] sm:$0xff]
          %v2074 = vld [vmem:[#allocation2 + $0x1a0] sm:$0xff]
          %v2075 = vld [vmem:[#allocation2 + $0x1a8] sm:$0xff]
          %v2076 = vld [vmem:[#allocation2 + $0x1b0] sm:$0xff]
          %v2077 = vld [vmem:[#allocation2 + $0x1b8] sm:$0xff]
          %v2078 = vld [vmem:[#allocation2 + $0x1c0] sm:$0xff]
          %v2079 = vld [vmem:[#allocation2 + $0x1c8] sm:$0xff]
          %v2080 = vld [vmem:[#allocation2 + $0x1d0] sm:$0xff]
          %v2081 = vld [vmem:[#allocation2 + $0x1d8] sm:$0xff]
          %v2082 = vld [vmem:[#allocation2 + $0x1e0] sm:$0xff]
          %v2083 = vld [vmem:[#allocation2 + $0x1e8] sm:$0xff]
          %v2084 = vld [vmem:[#allocation2 + $0x1f0] sm:$0xff]
          %v2085 = vld [vmem:[#allocation2 + $0x1f8] sm:$0xff]
          %v2086 = vld [vmem:[#allocation2 + $0x200] sm:$0xff]
          %v2087 = vld [vmem:[#allocation2 + $0x208] sm:$0xff]
          %v2088 = vld [vmem:[#allocation2 + $0x210] sm:$0xff]
          %v2089 = vld [vmem:[#allocation2 + $0x218] sm:$0xff]
          %v2090 = vld [vmem:[#allocation2 + $0x220] sm:$0xff]
          %v2091 = vld [vmem:[#allocation2 + $0x228] sm:$0xff]
          %v2092 = vld [vmem:[#allocation2 + $0x230] sm:$0xff]
          %v2093 = vld [vmem:[#allocation2 + $0x238] sm:$0xff]
          %v2094 = vld [vmem:[#allocation2 + $0x240] sm:$0xff]
          %v2095 = vld [vmem:[#allocation2 + $0x248] sm:$0xff]
          %v2096 = vld [vmem:[#allocation2 + $0x250] sm:$0xff]
          %v2097 = vld [vmem:[#allocation2 + $0x258] sm:$0xff]
          %v2098 = vld [vmem:[#allocation2 + $0x260] sm:$0xff]
          %v2099 = vld [vmem:[#allocation2 + $0x268] sm:$0xff]
          %v2100 = vld [vmem:[#allocation2 + $0x270] sm:$0xff]
          %v2101 = vld [vmem:[#allocation2 + $0x278] sm:$0xff]
          %v2102 = vld [vmem:[#allocation2 + $0x280] sm:$0xff]
          %v2103 = vld [vmem:[#allocation2 + $0x288] sm:$0xff]
          %v2104 = vld [vmem:[#allocation2 + $0x290] sm:$0xff]
          %v2105 = vld [vmem:[#allocation2 + $0x298] sm:$0xff]
          %v2106 = vld [vmem:[#allocation2 + $0x2a0] sm:$0xff]
          %v2107 = vld [vmem:[#allocation2 + $0x2a8] sm:$0xff]
          %v2108 = vld [vmem:[#allocation2 + $0x2b0] sm:$0xff]
          %v2109 = vld [vmem:[#allocation2 + $0x2b8] sm:$0xff]
          %v2110 = vld [vmem:[#allocation2 + $0x2c0] sm:$0xff]
          %v2111 = vld [vmem:[#allocation2 + $0x2c8] sm:$0xff]
          %v2112 = vld [vmem:[#allocation2 + $0x2d0] sm:$0xff]
          %v2113 = vld [vmem:[#allocation2 + $0x2d8] sm:$0xff]
          %v2114 = vld [vmem:[#allocation2 + $0x2e0] sm:$0xff]
          %v2115 = vld [vmem:[#allocation2 + $0x2e8] sm:$0xff]
          %v2116 = vld [vmem:[#allocation2 + $0x2f0] sm:$0xff]
          %v2117 = vld [vmem:[#allocation2 + $0x2f8] sm:$0xff]
          %v2118 = vld [vmem:[#allocation2 + $0x300] sm:$0xff]
          %v2119 = vld [vmem:[#allocation2 + $0x308] sm:$0xff]
          %v2120 = vld [vmem:[#allocation2 + $0x310] sm:$0xff]
          %v2121 = vld [vmem:[#allocation2 + $0x318] sm:$0xff]
          %v2122 = vld [vmem:[#allocation2 + $0x320] sm:$0xff]
          %v2123 = vld [vmem:[#allocation2 + $0x328] sm:$0xff]
          %v2124 = vld [vmem:[#allocation2 + $0x330] sm:$0xff]
          %v2125 = vld [vmem:[#allocation2 + $0x338] sm:$0xff]
          %v2126 = vld [vmem:[#allocation2 + $0x340] sm:$0xff]
          %v2127 = vld [vmem:[#allocation2 + $0x348] sm:$0xff]
          %v2128 = vld [vmem:[#allocation2 + $0x350] sm:$0xff]
          %v2129 = vld [vmem:[#allocation2 + $0x358] sm:$0xff]
          %v2130 = vld [vmem:[#allocation2 + $0x360] sm:$0xff]
          %v2131 = vld [vmem:[#allocation2 + $0x368] sm:$0xff]
          %v2132 = vld [vmem:[#allocation2 + $0x370] sm:$0xff]
          %v2133 = vld [vmem:[#allocation2 + $0x378] sm:$0xff]
          %v2134 = vld [vmem:[#allocation2 + $0x380] sm:$0xff]
          %v2135 = vld [vmem:[#allocation2 + $0x388] sm:$0xff]
          %v2136 = vld [vmem:[#allocation2 + $0x390] sm:$0xff]
          %v2137 = vld [vmem:[#allocation2 + $0x398] sm:$0xff]
          %v2138 = vld [vmem:[#allocation2 + $0x3a0] sm:$0xff]
          %v2139 = vld [vmem:[#allocation2 + $0x3a8] sm:$0xff]
          %v2140 = vld [vmem:[#allocation2 + $0x3b0] sm:$0xff]
          %v2141 = vld [vmem:[#allocation2 + $0x3b8] sm:$0xff]
          %v2142 = vld [vmem:[#allocation2 + $0x3c0] sm:$0xff]
          %v2143 = vld [vmem:[#allocation2 + $0x3c8] sm:$0xff]
          %v2144 = vld [vmem:[#allocation2 + $0x3d0] sm:$0xff]
          %v2145 = vld [vmem:[#allocation2 + $0x3d8] sm:$0xff]
          %v2146 = vld [vmem:[#allocation2 + $0x3e0] sm:$0xff]
          %v2147 = vld [vmem:[#allocation2 + $0x3e8] sm:$0xff]
          %v2148 = vld [vmem:[#allocation2 + $0x3f0] sm:$0xff]
          %v2149 = vld [vmem:[#allocation2 + $0x3f8] sm:$0xff]
          %v2150 = vld [vmem:[#allocation2 + $0x400] sm:$0xff]
          %v2151 = vld [vmem:[#allocation2 + $0x408] sm:$0xff]
          %v2152 = vld [vmem:[#allocation2 + $0x410] sm:$0xff]
          %v2153 = vld [vmem:[#allocation2 + $0x418] sm:$0xff]
          %v2154 = vld [vmem:[#allocation2 + $0x420] sm:$0xff]
          %v2155 = vld [vmem:[#allocation2 + $0x428] sm:$0xff]
          %v2156 = vld [vmem:[#allocation2 + $0x430] sm:$0xff]
          %v2157 = vld [vmem:[#allocation2 + $0x438] sm:$0xff]
          %v2158 = vld [vmem:[#allocation2 + $0x440] sm:$0xff]
          %v2159 = vld [vmem:[#allocation2 + $0x448] sm:$0xff]
          %v2160 = vld [vmem:[#allocation2 + $0x450] sm:$0xff]
          %v2161 = vld [vmem:[#allocation2 + $0x458] sm:$0xff]
          %v2162 = vld [vmem:[#allocation2 + $0x460] sm:$0xff]
          %v2163 = vld [vmem:[#allocation2 + $0x468] sm:$0xff]
          %v2164 = vld [vmem:[#allocation2 + $0x470] sm:$0xff]
          %v2165 = vld [vmem:[#allocation2 + $0x478] sm:$0xff]
          %v2166 = vld [vmem:[#allocation2 + $0x480] sm:$0xff]
          %v2167 = vld [vmem:[#allocation2 + $0x488] sm:$0xff]
          %v2168 = vld [vmem:[#allocation2 + $0x490] sm:$0xff]
          %v2169 = vld [vmem:[#allocation2 + $0x498] sm:$0xff]
          %v2170 = vld [vmem:[#allocation2 + $0x4a0] sm:$0xff]
          %v2171 = vld [vmem:[#allocation2 + $0x4a8] sm:$0xff]
          %v2172 = vld [vmem:[#allocation2 + $0x4b0] sm:$0xff]
          %v2173 = vld [vmem:[#allocation2 + $0x4b8] sm:$0xff]
          %v2174 = vld [vmem:[#allocation2 + $0x4c0] sm:$0xff]
          %v2175 = vld [vmem:[#allocation2 + $0x4c8] sm:$0xff]
          %v2176 = vld [vmem:[#allocation2 + $0x4d0] sm:$0xff]
          %v2177 = vld [vmem:[#allocation2 + $0x4d8] sm:$0xff]
          %v2178 = vld [vmem:[#allocation2 + $0x4e0] sm:$0xff]
          %v2179 = vld [vmem:[#allocation2 + $0x4e8] sm:$0xff]
          %v2180 = vld [vmem:[#allocation2 + $0x4f0] sm:$0xff]
          %v2181 = vld [vmem:[#allocation2 + $0x4f8] sm:$0xff]
          %v2182 = vld [vmem:[#allocation2 + $0x500] sm:$0xff]
          %v2183 = vld [vmem:[#allocation2 + $0x508] sm:$0xff]
          %v2184 = vld [vmem:[#allocation2 + $0x510] sm:$0xff]
          %v2185 = vld [vmem:[#allocation2 + $0x518] sm:$0xff]
          %v2186 = vld [vmem:[#allocation2 + $0x520] sm:$0xff]
          %v2187 = vld [vmem:[#allocation2 + $0x528] sm:$0xff]
          %v2188 = vld [vmem:[#allocation2 + $0x530] sm:$0xff]
          %v2189 = vld [vmem:[#allocation2 + $0x538] sm:$0xff]
          %v2190 = vld [vmem:[#allocation2 + $0x540] sm:$0xff]
          %v2191 = vld [vmem:[#allocation2 + $0x548] sm:$0xff]
          %v2192 = vld [vmem:[#allocation2 + $0x550] sm:$0xff]
          %v2193 = vld [vmem:[#allocation2 + $0x558] sm:$0xff]
          %v2194 = vld [vmem:[#allocation2 + $0x560] sm:$0xff]
          %v2195 = vld [vmem:[#allocation2 + $0x568] sm:$0xff]
          %v2196 = vld [vmem:[#allocation2 + $0x570] sm:$0xff]
          %v2197 = vld [vmem:[#allocation2 + $0x578] sm:$0xff]
          %v2198 = vld [vmem:[#allocation2 + $0x580] sm:$0xff]
          %v2199 = vld [vmem:[#allocation2 + $0x588] sm:$0xff]
          %v2200 = vld [vmem:[#allocation2 + $0x590] sm:$0xff]
          %v2201 = vld [vmem:[#allocation2 + $0x598] sm:$0xff]
          %v2202 = vld [vmem:[#allocation2 + $0x5a0] sm:$0xff]
          %v2203 = vld [vmem:[#allocation2 + $0x5a8] sm:$0xff]
          %v2204 = vld [vmem:[#allocation2 + $0x5b0] sm:$0xff]
          %v2205 = vld [vmem:[#allocation2 + $0x5b8] sm:$0xff]
          %v2206 = vld [vmem:[#allocation2 + $0x5c0] sm:$0xff]
          %v2207 = vld [vmem:[#allocation2 + $0x5c8] sm:$0xff]
          %v2208 = vld [vmem:[#allocation2 + $0x5d0] sm:$0xff]
          %v2209 = vld [vmem:[#allocation2 + $0x5d8] sm:$0xff]
          %v2210 = vld [vmem:[#allocation2 + $0x5e0] sm:$0xff]
          %v2211 = vld [vmem:[#allocation2 + $0x5e8] sm:$0xff]
          %v2212 = vld [vmem:[#allocation2 + $0x5f0] sm:$0xff]
          %v2213 = vld [vmem:[#allocation2 + $0x5f8] sm:$0xff]
          %v2214 = vld [vmem:[%s264] sm:$0x7]
          %v2216 = vlaneseq
          %v2217 = vshrl.u32 %v2216, 7
          %v2218 = vsub.s32 0, %v2217
          %v2219 = vrot.slane %v2214, %v2218
          %v2220 = vlaneseq
          %v2221 = vshrl.u32 %v2220, 7
          %v2222 = vsub.s32 1, %v2221
          %v2223 = vrot.slane %v2214, %v2222
          %v2224 = vlaneseq
          %v2225 = vshrl.u32 %v2224, 7
          %v2226 = vsub.s32 2, %v2225
          %v2227 = vrot.slane %v2214, %v2226
          %v2231 = vadd.f32 %v2022, %v2219
          %v2232 = vadd.f32 %v2023, %v2223
          %v2233 = vadd.f32 %v2024, %v2227
          %v2234 = vadd.f32 %v2025, %v2219
          %v2235 = vadd.f32 %v2026, %v2223
          %v2236 = vadd.f32 %v2027, %v2227
          %v2237 = vadd.f32 %v2028, %v2219
          %v2238 = vadd.f32 %v2029, %v2223
          %v2239 = vadd.f32 %v2030, %v2227
          %v2240 = vadd.f32 %v2031, %v2219
          %v2241 = vadd.f32 %v2032, %v2223
          %v2242 = vadd.f32 %v2033, %v2227
          %v2243 = vadd.f32 %v2034, %v2219
          %v2244 = vadd.f32 %v2035, %v2223
          %v2245 = vadd.f32 %v2036, %v2227
          %v2246 = vadd.f32 %v2037, %v2219
          %v2247 = vadd.f32 %v2038, %v2223
          %v2248 = vadd.f32 %v2039, %v2227
          %v2249 = vadd.f32 %v2040, %v2219
          %v2250 = vadd.f32 %v2041, %v2223
          %v2251 = vadd.f32 %v2042, %v2227
          %v2252 = vadd.f32 %v2043, %v2219
          %v2253 = vadd.f32 %v2044, %v2223
          %v2254 = vadd.f32 %v2045, %v2227
          %v2255 = vadd.f32 %v2046, %v2219
          %v2256 = vadd.f32 %v2047, %v2223
          %v2257 = vadd.f32 %v2048, %v2227
          %v2258 = vadd.f32 %v2049, %v2219
          %v2259 = vadd.f32 %v2050, %v2223
          %v2260 = vadd.f32 %v2051, %v2227
          %v2261 = vadd.f32 %v2052, %v2219
          %v2262 = vadd.f32 %v2053, %v2223
          %v2263 = vadd.f32 %v2054, %v2227
          %v2264 = vadd.f32 %v2055, %v2219
          %v2265 = vadd.f32 %v2056, %v2223
          %v2266 = vadd.f32 %v2057, %v2227
          %v2267 = vadd.f32 %v2058, %v2219
          %v2268 = vadd.f32 %v2059, %v2223
          %v2269 = vadd.f32 %v2060, %v2227
          %v2270 = vadd.f32 %v2061, %v2219
          %v2271 = vadd.f32 %v2062, %v2223
          %v2272 = vadd.f32 %v2063, %v2227
          %v2273 = vadd.f32 %v2064, %v2219
          %v2274 = vadd.f32 %v2065, %v2223
          %v2275 = vadd.f32 %v2066, %v2227
          %v2276 = vadd.f32 %v2067, %v2219
          %v2277 = vadd.f32 %v2068, %v2223
          %v2278 = vadd.f32 %v2069, %v2227
          %v2279 = vadd.f32 %v2070, %v2219
          %v2280 = vadd.f32 %v2071, %v2223
          %v2281 = vadd.f32 %v2072, %v2227
          %v2282 = vadd.f32 %v2073, %v2219
          %v2283 = vadd.f32 %v2074, %v2223
          %v2284 = vadd.f32 %v2075, %v2227
          %v2285 = vadd.f32 %v2076, %v2219
          %v2286 = vadd.f32 %v2077, %v2223
          %v2287 = vadd.f32 %v2078, %v2227
          %v2288 = vadd.f32 %v2079, %v2219
          %v2289 = vadd.f32 %v2080, %v2223
          %v2290 = vadd.f32 %v2081, %v2227
          %v2291 = vadd.f32 %v2082, %v2219
          %v2292 = vadd.f32 %v2083, %v2223
          %v2293 = vadd.f32 %v2084, %v2227
          %v2294 = vadd.f32 %v2085, %v2219
          %v2295 = vadd.f32 %v2086, %v2223
          %v2296 = vadd.f32 %v2087, %v2227
          %v2297 = vadd.f32 %v2088, %v2219
          %v2298 = vadd.f32 %v2089, %v2223
          %v2299 = vadd.f32 %v2090, %v2227
          %v2300 = vadd.f32 %v2091, %v2219
          %v2301 = vadd.f32 %v2092, %v2223
          %v2302 = vadd.f32 %v2093, %v2227
          %v2303 = vadd.f32 %v2094, %v2219
          %v2304 = vadd.f32 %v2095, %v2223
          %v2305 = vadd.f32 %v2096, %v2227
          %v2306 = vadd.f32 %v2097, %v2219
          %v2307 = vadd.f32 %v2098, %v2223
          %v2308 = vadd.f32 %v2099, %v2227
          %v2309 = vadd.f32 %v2100, %v2219
          %v2310 = vadd.f32 %v2101, %v2223
          %v2311 = vadd.f32 %v2102, %v2227
          %v2312 = vadd.f32 %v2103, %v2219
          %v2313 = vadd.f32 %v2104, %v2223
          %v2314 = vadd.f32 %v2105, %v2227
          %v2315 = vadd.f32 %v2106, %v2219
          %v2316 = vadd.f32 %v2107, %v2223
          %v2317 = vadd.f32 %v2108, %v2227
          %v2318 = vadd.f32 %v2109, %v2219
          %v2319 = vadd.f32 %v2110, %v2223
          %v2320 = vadd.f32 %v2111, %v2227
          %v2321 = vadd.f32 %v2112, %v2219
          %v2322 = vadd.f32 %v2113, %v2223
          %v2323 = vadd.f32 %v2114, %v2227
          %v2324 = vadd.f32 %v2115, %v2219
          %v2325 = vadd.f32 %v2116, %v2223
          %v2326 = vadd.f32 %v2117, %v2227
          %v2327 = vadd.f32 %v2118, %v2219
          %v2328 = vadd.f32 %v2119, %v2223
          %v2329 = vadd.f32 %v2120, %v2227
          %v2330 = vadd.f32 %v2121, %v2219
          %v2331 = vadd.f32 %v2122, %v2223
          %v2332 = vadd.f32 %v2123, %v2227
          %v2333 = vadd.f32 %v2124, %v2219
          %v2334 = vadd.f32 %v2125, %v2223
          %v2335 = vadd.f32 %v2126, %v2227
          %v2336 = vadd.f32 %v2127, %v2219
          %v2337 = vadd.f32 %v2128, %v2223
          %v2338 = vadd.f32 %v2129, %v2227
          %v2339 = vadd.f32 %v2130, %v2219
          %v2340 = vadd.f32 %v2131, %v2223
          %v2341 = vadd.f32 %v2132, %v2227
          %v2342 = vadd.f32 %v2133, %v2219
          %v2343 = vadd.f32 %v2134, %v2223
          %v2344 = vadd.f32 %v2135, %v2227
          %v2345 = vadd.f32 %v2136, %v2219
          %v2346 = vadd.f32 %v2137, %v2223
          %v2347 = vadd.f32 %v2138, %v2227
          %v2348 = vadd.f32 %v2139, %v2219
          %v2349 = vadd.f32 %v2140, %v2223
          %v2350 = vadd.f32 %v2141, %v2227
          %v2351 = vadd.f32 %v2142, %v2219
          %v2352 = vadd.f32 %v2143, %v2223
          %v2353 = vadd.f32 %v2144, %v2227
          %v2354 = vadd.f32 %v2145, %v2219
          %v2355 = vadd.f32 %v2146, %v2223
          %v2356 = vadd.f32 %v2147, %v2227
          %v2357 = vadd.f32 %v2148, %v2219
          %v2358 = vadd.f32 %v2149, %v2223
          %v2359 = vadd.f32 %v2150, %v2227
          %v2360 = vadd.f32 %v2151, %v2219
          %v2361 = vadd.f32 %v2152, %v2223
          %v2362 = vadd.f32 %v2153, %v2227
          %v2363 = vadd.f32 %v2154, %v2219
          %v2364 = vadd.f32 %v2155, %v2223
          %v2365 = vadd.f32 %v2156, %v2227
          %v2366 = vadd.f32 %v2157, %v2219
          %v2367 = vadd.f32 %v2158, %v2223
          %v2368 = vadd.f32 %v2159, %v2227
          %v2369 = vadd.f32 %v2160, %v2219
          %v2370 = vadd.f32 %v2161, %v2223
          %v2371 = vadd.f32 %v2162, %v2227
          %v2372 = vadd.f32 %v2163, %v2219
          %v2373 = vadd.f32 %v2164, %v2223
          %v2374 = vadd.f32 %v2165, %v2227
          %v2375 = vadd.f32 %v2166, %v2219
          %v2376 = vadd.f32 %v2167, %v2223
          %v2377 = vadd.f32 %v2168, %v2227
          %v2378 = vadd.f32 %v2169, %v2219
          %v2379 = vadd.f32 %v2170, %v2223
          %v2380 = vadd.f32 %v2171, %v2227
          %v2381 = vadd.f32 %v2172, %v2219
          %v2382 = vadd.f32 %v2173, %v2223
          %v2383 = vadd.f32 %v2174, %v2227
          %v2384 = vadd.f32 %v2175, %v2219
          %v2385 = vadd.f32 %v2176, %v2223
          %v2386 = vadd.f32 %v2177, %v2227
          %v2387 = vadd.f32 %v2178, %v2219
          %v2388 = vadd.f32 %v2179, %v2223
          %v2389 = vadd.f32 %v2180, %v2227
          %v2390 = vadd.f32 %v2181, %v2219
          %v2391 = vadd.f32 %v2182, %v2223
          %v2392 = vadd.f32 %v2183, %v2227
          %v2393 = vadd.f32 %v2184, %v2219
          %v2394 = vadd.f32 %v2185, %v2223
          %v2395 = vadd.f32 %v2186, %v2227
          %v2396 = vadd.f32 %v2187, %v2219
          %v2397 = vadd.f32 %v2188, %v2223
          %v2398 = vadd.f32 %v2189, %v2227
          %v2399 = vadd.f32 %v2190, %v2219
          %v2400 = vadd.f32 %v2191, %v2223
          %v2401 = vadd.f32 %v2192, %v2227
          %v2402 = vadd.f32 %v2193, %v2219
          %v2403 = vadd.f32 %v2194, %v2223
          %v2404 = vadd.f32 %v2195, %v2227
          %v2405 = vadd.f32 %v2196, %v2219
          %v2406 = vadd.f32 %v2197, %v2223
          %v2407 = vadd.f32 %v2198, %v2227
          %v2408 = vadd.f32 %v2199, %v2219
          %v2409 = vadd.f32 %v2200, %v2223
          %v2410 = vadd.f32 %v2201, %v2227
          %v2411 = vadd.f32 %v2202, %v2219
          %v2412 = vadd.f32 %v2203, %v2223
          %v2413 = vadd.f32 %v2204, %v2227
          %v2414 = vadd.f32 %v2205, %v2219
          %v2415 = vadd.f32 %v2206, %v2223
          %v2416 = vadd.f32 %v2207, %v2227
          %v2417 = vadd.f32 %v2208, %v2219
          %v2418 = vadd.f32 %v2209, %v2223
          %v2419 = vadd.f32 %v2210, %v2227
          %v2420 = vadd.f32 %v2211, %v2219
          %v2421 = vadd.f32 %v2212, %v2223
          %v2422 = vadd.f32 %v2213, %v2227
          %v2423 = vpack.c.bf16 %v2234, %v2231
          %v2424 = vpack.c.bf16 %v2235, %v2232
          %v2425 = vpack.c.bf16 %v2236, %v2233
          %v2426 = vpack.c.bf16 %v2240, %v2237
          %v2427 = vpack.c.bf16 %v2241, %v2238
          %v2428 = vpack.c.bf16 %v2242, %v2239
          %v2429 = vpack.c.bf16 %v2246, %v2243
          %v2430 = vpack.c.bf16 %v2247, %v2244
          %v2431 = vpack.c.bf16 %v2248, %v2245
          %v2432 = vpack.c.bf16 %v2252, %v2249
          %v2433 = vpack.c.bf16 %v2253, %v2250
          %v2434 = vpack.c.bf16 %v2254, %v2251
          %v2435 = vpack.c.bf16 %v2258, %v2255
          %v2436 = vpack.c.bf16 %v2259, %v2256
          %v2437 = vpack.c.bf16 %v2260, %v2257
          %v2438 = vpack.c.bf16 %v2264, %v2261
          %v2439 = vpack.c.bf16 %v2265, %v2262
          %v2440 = vpack.c.bf16 %v2266, %v2263
          %v2441 = vpack.c.bf16 %v2270, %v2267
          %v2442 = vpack.c.bf16 %v2271, %v2268
          %v2443 = vpack.c.bf16 %v2272, %v2269
          %v2444 = vpack.c.bf16 %v2276, %v2273
          %v2445 = vpack.c.bf16 %v2277, %v2274
          %v2446 = vpack.c.bf16 %v2278, %v2275
          %v2447 = vpack.c.bf16 %v2282, %v2279
          %v2448 = vpack.c.bf16 %v2283, %v2280
          %v2449 = vpack.c.bf16 %v2284, %v2281
          %v2450 = vpack.c.bf16 %v2288, %v2285
          %v2451 = vpack.c.bf16 %v2289, %v2286
          %v2452 = vpack.c.bf16 %v2290, %v2287
          %v2453 = vpack.c.bf16 %v2294, %v2291
          %v2454 = vpack.c.bf16 %v2295, %v2292
          %v2455 = vpack.c.bf16 %v2296, %v2293
          %v2456 = vpack.c.bf16 %v2300, %v2297
          %v2457 = vpack.c.bf16 %v2301, %v2298
          %v2458 = vpack.c.bf16 %v2302, %v2299
          %v2459 = vpack.c.bf16 %v2306, %v2303
          %v2460 = vpack.c.bf16 %v2307, %v2304
          %v2461 = vpack.c.bf16 %v2308, %v2305
          %v2462 = vpack.c.bf16 %v2312, %v2309
          %v2463 = vpack.c.bf16 %v2313, %v2310
          %v2464 = vpack.c.bf16 %v2314, %v2311
          %v2465 = vpack.c.bf16 %v2318, %v2315
          %v2466 = vpack.c.bf16 %v2319, %v2316
          %v2467 = vpack.c.bf16 %v2320, %v2317
          %v2468 = vpack.c.bf16 %v2324, %v2321
          %v2469 = vpack.c.bf16 %v2325, %v2322
          %v2470 = vpack.c.bf16 %v2326, %v2323
          %v2471 = vpack.c.bf16 %v2330, %v2327
          %v2472 = vpack.c.bf16 %v2331, %v2328
          %v2473 = vpack.c.bf16 %v2332, %v2329
          %v2474 = vpack.c.bf16 %v2336, %v2333
          %v2475 = vpack.c.bf16 %v2337, %v2334
          %v2476 = vpack.c.bf16 %v2338, %v2335
          %v2477 = vpack.c.bf16 %v2342, %v2339
          %v2478 = vpack.c.bf16 %v2343, %v2340
          %v2479 = vpack.c.bf16 %v2344, %v2341
          %v2480 = vpack.c.bf16 %v2348, %v2345
          %v2481 = vpack.c.bf16 %v2349, %v2346
          %v2482 = vpack.c.bf16 %v2350, %v2347
          %v2483 = vpack.c.bf16 %v2354, %v2351
          %v2484 = vpack.c.bf16 %v2355, %v2352
          %v2485 = vpack.c.bf16 %v2356, %v2353
          %v2486 = vpack.c.bf16 %v2360, %v2357
          %v2487 = vpack.c.bf16 %v2361, %v2358
          %v2488 = vpack.c.bf16 %v2362, %v2359
          %v2489 = vpack.c.bf16 %v2366, %v2363
          %v2490 = vpack.c.bf16 %v2367, %v2364
          %v2491 = vpack.c.bf16 %v2368, %v2365
          %v2492 = vpack.c.bf16 %v2372, %v2369
          %v2493 = vpack.c.bf16 %v2373, %v2370
          %v2494 = vpack.c.bf16 %v2374, %v2371
          %v2495 = vpack.c.bf16 %v2378, %v2375
          %v2496 = vpack.c.bf16 %v2379, %v2376
          %v2497 = vpack.c.bf16 %v2380, %v2377
          %v2498 = vpack.c.bf16 %v2384, %v2381
          %v2499 = vpack.c.bf16 %v2385, %v2382
          %v2500 = vpack.c.bf16 %v2386, %v2383
          %v2501 = vpack.c.bf16 %v2390, %v2387
          %v2502 = vpack.c.bf16 %v2391, %v2388
          %v2503 = vpack.c.bf16 %v2392, %v2389
          %v2504 = vpack.c.bf16 %v2396, %v2393
          %v2505 = vpack.c.bf16 %v2397, %v2394
          %v2506 = vpack.c.bf16 %v2398, %v2395
          %v2507 = vpack.c.bf16 %v2402, %v2399
          %v2508 = vpack.c.bf16 %v2403, %v2400
          %v2509 = vpack.c.bf16 %v2404, %v2401
          %v2510 = vpack.c.bf16 %v2408, %v2405
          %v2511 = vpack.c.bf16 %v2409, %v2406
          %v2512 = vpack.c.bf16 %v2410, %v2407
          %v2513 = vpack.c.bf16 %v2414, %v2411
          %v2514 = vpack.c.bf16 %v2415, %v2412
          %v2515 = vpack.c.bf16 %v2416, %v2413
          %v2516 = vpack.c.bf16 %v2420, %v2417
          %v2517 = vpack.c.bf16 %v2421, %v2418
          %v2518 = vpack.c.bf16 %v2422, %v2419
          %v2615 = vunpack.c.l.b16 %v2423
          %v2616 = vunpack.c.l.b16 %v2424
          %v2617 = vunpack.c.l.b16 %v2425
          %v2618 = vunpack.c.h.b16 %v2423
          %v2619 = vunpack.c.h.b16 %v2424
          %v2620 = vunpack.c.h.b16 %v2425
          %v2621 = vunpack.c.l.b16 %v2426
          %v2622 = vunpack.c.l.b16 %v2427
          %v2623 = vunpack.c.l.b16 %v2428
          %v2624 = vunpack.c.h.b16 %v2426
          %v2625 = vunpack.c.h.b16 %v2427
          %v2626 = vunpack.c.h.b16 %v2428
          %v2627 = vunpack.c.l.b16 %v2429
          %v2628 = vunpack.c.l.b16 %v2430
          %v2629 = vunpack.c.l.b16 %v2431
          %v2630 = vunpack.c.h.b16 %v2429
          %v2631 = vunpack.c.h.b16 %v2430
          %v2632 = vunpack.c.h.b16 %v2431
          %v2633 = vunpack.c.l.b16 %v2432
          %v2634 = vunpack.c.l.b16 %v2433
          %v2635 = vunpack.c.l.b16 %v2434
          %v2636 = vunpack.c.h.b16 %v2432
          %v2637 = vunpack.c.h.b16 %v2433
          %v2638 = vunpack.c.h.b16 %v2434
          %v2639 = vunpack.c.l.b16 %v2435
          %v2640 = vunpack.c.l.b16 %v2436
          %v2641 = vunpack.c.l.b16 %v2437
          %v2642 = vunpack.c.h.b16 %v2435
          %v2643 = vunpack.c.h.b16 %v2436
          %v2644 = vunpack.c.h.b16 %v2437
          %v2645 = vunpack.c.l.b16 %v2438
          %v2646 = vunpack.c.l.b16 %v2439
          %v2647 = vunpack.c.l.b16 %v2440
          %v2648 = vunpack.c.h.b16 %v2438
          %v2649 = vunpack.c.h.b16 %v2439
          %v2650 = vunpack.c.h.b16 %v2440
          %v2651 = vunpack.c.l.b16 %v2441
          %v2652 = vunpack.c.l.b16 %v2442
          %v2653 = vunpack.c.l.b16 %v2443
          %v2654 = vunpack.c.h.b16 %v2441
          %v2655 = vunpack.c.h.b16 %v2442
          %v2656 = vunpack.c.h.b16 %v2443
          %v2657 = vunpack.c.l.b16 %v2444
          %v2658 = vunpack.c.l.b16 %v2445
          %v2659 = vunpack.c.l.b16 %v2446
          %v2660 = vunpack.c.h.b16 %v2444
          %v2661 = vunpack.c.h.b16 %v2445
          %v2662 = vunpack.c.h.b16 %v2446
          %v2663 = vunpack.c.l.b16 %v2447
          %v2664 = vunpack.c.l.b16 %v2448
          %v2665 = vunpack.c.l.b16 %v2449
          %v2666 = vunpack.c.h.b16 %v2447
          %v2667 = vunpack.c.h.b16 %v2448
          %v2668 = vunpack.c.h.b16 %v2449
          %v2669 = vunpack.c.l.b16 %v2450
          %v2670 = vunpack.c.l.b16 %v2451
          %v2671 = vunpack.c.l.b16 %v2452
          %v2672 = vunpack.c.h.b16 %v2450
          %v2673 = vunpack.c.h.b16 %v2451
          %v2674 = vunpack.c.h.b16 %v2452
          %v2675 = vunpack.c.l.b16 %v2453
          %v2676 = vunpack.c.l.b16 %v2454
          %v2677 = vunpack.c.l.b16 %v2455
          %v2678 = vunpack.c.h.b16 %v2453
          %v2679 = vunpack.c.h.b16 %v2454
          %v2680 = vunpack.c.h.b16 %v2455
          %v2681 = vunpack.c.l.b16 %v2456
          %v2682 = vunpack.c.l.b16 %v2457
          %v2683 = vunpack.c.l.b16 %v2458
          %v2684 = vunpack.c.h.b16 %v2456
          %v2685 = vunpack.c.h.b16 %v2457
          %v2686 = vunpack.c.h.b16 %v2458
          %v2687 = vunpack.c.l.b16 %v2459
          %v2688 = vunpack.c.l.b16 %v2460
          %v2689 = vunpack.c.l.b16 %v2461
          %v2690 = vunpack.c.h.b16 %v2459
          %v2691 = vunpack.c.h.b16 %v2460
          %v2692 = vunpack.c.h.b16 %v2461
          %v2693 = vunpack.c.l.b16 %v2462
          %v2694 = vunpack.c.l.b16 %v2463
          %v2695 = vunpack.c.l.b16 %v2464
          %v2696 = vunpack.c.h.b16 %v2462
          %v2697 = vunpack.c.h.b16 %v2463
          %v2698 = vunpack.c.h.b16 %v2464
          %v2699 = vunpack.c.l.b16 %v2465
          %v2700 = vunpack.c.l.b16 %v2466
          %v2701 = vunpack.c.l.b16 %v2467
          %v2702 = vunpack.c.h.b16 %v2465
          %v2703 = vunpack.c.h.b16 %v2466
          %v2704 = vunpack.c.h.b16 %v2467
          %v2705 = vunpack.c.l.b16 %v2468
          %v2706 = vunpack.c.l.b16 %v2469
          %v2707 = vunpack.c.l.b16 %v2470
          %v2708 = vunpack.c.h.b16 %v2468
          %v2709 = vunpack.c.h.b16 %v2469
          %v2710 = vunpack.c.h.b16 %v2470
          %v2711 = vunpack.c.l.b16 %v2471
          %v2712 = vunpack.c.l.b16 %v2472
          %v2713 = vunpack.c.l.b16 %v2473
          %v2714 = vunpack.c.h.b16 %v2471
          %v2715 = vunpack.c.h.b16 %v2472
          %v2716 = vunpack.c.h.b16 %v2473
          %v2717 = vunpack.c.l.b16 %v2474
          %v2718 = vunpack.c.l.b16 %v2475
          %v2719 = vunpack.c.l.b16 %v2476
          %v2720 = vunpack.c.h.b16 %v2474
          %v2721 = vunpack.c.h.b16 %v2475
          %v2722 = vunpack.c.h.b16 %v2476
          %v2723 = vunpack.c.l.b16 %v2477
          %v2724 = vunpack.c.l.b16 %v2478
          %v2725 = vunpack.c.l.b16 %v2479
          %v2726 = vunpack.c.h.b16 %v2477
          %v2727 = vunpack.c.h.b16 %v2478
          %v2728 = vunpack.c.h.b16 %v2479
          %v2729 = vunpack.c.l.b16 %v2480
          %v2730 = vunpack.c.l.b16 %v2481
          %v2731 = vunpack.c.l.b16 %v2482
          %v2732 = vunpack.c.h.b16 %v2480
          %v2733 = vunpack.c.h.b16 %v2481
          %v2734 = vunpack.c.h.b16 %v2482
          %v2735 = vunpack.c.l.b16 %v2483
          %v2736 = vunpack.c.l.b16 %v2484
          %v2737 = vunpack.c.l.b16 %v2485
          %v2738 = vunpack.c.h.b16 %v2483
          %v2739 = vunpack.c.h.b16 %v2484
          %v2740 = vunpack.c.h.b16 %v2485
          %v2741 = vunpack.c.l.b16 %v2486
          %v2742 = vunpack.c.l.b16 %v2487
          %v2743 = vunpack.c.l.b16 %v2488
          %v2744 = vunpack.c.h.b16 %v2486
          %v2745 = vunpack.c.h.b16 %v2487
          %v2746 = vunpack.c.h.b16 %v2488
          %v2747 = vunpack.c.l.b16 %v2489
          %v2748 = vunpack.c.l.b16 %v2490
          %v2749 = vunpack.c.l.b16 %v2491
          %v2750 = vunpack.c.h.b16 %v2489
          %v2751 = vunpack.c.h.b16 %v2490
          %v2752 = vunpack.c.h.b16 %v2491
          %v2753 = vunpack.c.l.b16 %v2492
          %v2754 = vunpack.c.l.b16 %v2493
          %v2755 = vunpack.c.l.b16 %v2494
          %v2756 = vunpack.c.h.b16 %v2492
          %v2757 = vunpack.c.h.b16 %v2493
          %v2758 = vunpack.c.h.b16 %v2494
          %v2759 = vunpack.c.l.b16 %v2495
          %v2760 = vunpack.c.l.b16 %v2496
          %v2761 = vunpack.c.l.b16 %v2497
          %v2762 = vunpack.c.h.b16 %v2495
          %v2763 = vunpack.c.h.b16 %v2496
          %v2764 = vunpack.c.h.b16 %v2497
          %v2765 = vunpack.c.l.b16 %v2498
          %v2766 = vunpack.c.l.b16 %v2499
          %v2767 = vunpack.c.l.b16 %v2500
          %v2768 = vunpack.c.h.b16 %v2498
          %v2769 = vunpack.c.h.b16 %v2499
          %v2770 = vunpack.c.h.b16 %v2500
          %v2771 = vunpack.c.l.b16 %v2501
          %v2772 = vunpack.c.l.b16 %v2502
          %v2773 = vunpack.c.l.b16 %v2503
          %v2774 = vunpack.c.h.b16 %v2501
          %v2775 = vunpack.c.h.b16 %v2502
          %v2776 = vunpack.c.h.b16 %v2503
          %v2777 = vunpack.c.l.b16 %v2504
          %v2778 = vunpack.c.l.b16 %v2505
          %v2779 = vunpack.c.l.b16 %v2506
          %v2780 = vunpack.c.h.b16 %v2504
          %v2781 = vunpack.c.h.b16 %v2505
          %v2782 = vunpack.c.h.b16 %v2506
          %v2783 = vunpack.c.l.b16 %v2507
          %v2784 = vunpack.c.l.b16 %v2508
          %v2785 = vunpack.c.l.b16 %v2509
          %v2786 = vunpack.c.h.b16 %v2507
          %v2787 = vunpack.c.h.b16 %v2508
          %v2788 = vunpack.c.h.b16 %v2509
          %v2789 = vunpack.c.l.b16 %v2510
          %v2790 = vunpack.c.l.b16 %v2511
          %v2791 = vunpack.c.l.b16 %v2512
          %v2792 = vunpack.c.h.b16 %v2510
          %v2793 = vunpack.c.h.b16 %v2511
          %v2794 = vunpack.c.h.b16 %v2512
          %v2795 = vunpack.c.l.b16 %v2513
          %v2796 = vunpack.c.l.b16 %v2514
          %v2797 = vunpack.c.l.b16 %v2515
          %v2798 = vunpack.c.h.b16 %v2513
          %v2799 = vunpack.c.h.b16 %v2514
          %v2800 = vunpack.c.h.b16 %v2515
          %v2801 = vunpack.c.l.b16 %v2516
          %v2802 = vunpack.c.l.b16 %v2517
          %v2803 = vunpack.c.l.b16 %v2518
          %v2804 = vunpack.c.h.b16 %v2516
          %v2805 = vunpack.c.h.b16 %v2517
          %v2806 = vunpack.c.h.b16 %v2518
          %v2807 = vpack.c.b16 %v2616, %v2615
          %v2808 = vpack.c.b16 %v2617, %v2617
          %v2809 = vpack.c.b16 %v2619, %v2618
          %v2810 = vpack.c.b16 %v2620, %v2620
          %v2811 = vpack.c.b16 %v2622, %v2621
          %v2812 = vpack.c.b16 %v2623, %v2623
          %v2813 = vpack.c.b16 %v2625, %v2624
          %v2814 = vpack.c.b16 %v2626, %v2626
          %v2815 = vpack.c.b16 %v2628, %v2627
          %v2816 = vpack.c.b16 %v2629, %v2629
          %v2817 = vpack.c.b16 %v2631, %v2630
          %v2818 = vpack.c.b16 %v2632, %v2632
          %v2819 = vpack.c.b16 %v2634, %v2633
          %v2820 = vpack.c.b16 %v2635, %v2635
          %v2821 = vpack.c.b16 %v2637, %v2636
          %v2822 = vpack.c.b16 %v2638, %v2638
          %v2823 = vpack.c.b16 %v2640, %v2639
          %v2824 = vpack.c.b16 %v2641, %v2641
          %v2825 = vpack.c.b16 %v2643, %v2642
          %v2826 = vpack.c.b16 %v2644, %v2644
          %v2827 = vpack.c.b16 %v2646, %v2645
          %v2828 = vpack.c.b16 %v2647, %v2647
          %v2829 = vpack.c.b16 %v2649, %v2648
          %v2830 = vpack.c.b16 %v2650, %v2650
          %v2831 = vpack.c.b16 %v2652, %v2651
          %v2832 = vpack.c.b16 %v2653, %v2653
          %v2833 = vpack.c.b16 %v2655, %v2654
          %v2834 = vpack.c.b16 %v2656, %v2656
          %v2835 = vpack.c.b16 %v2658, %v2657
          %v2836 = vpack.c.b16 %v2659, %v2659
          %v2837 = vpack.c.b16 %v2661, %v2660
          %v2838 = vpack.c.b16 %v2662, %v2662
          %v2839 = vpack.c.b16 %v2664, %v2663
          %v2840 = vpack.c.b16 %v2665, %v2665
          %v2841 = vpack.c.b16 %v2667, %v2666
          %v2842 = vpack.c.b16 %v2668, %v2668
          %v2843 = vpack.c.b16 %v2670, %v2669
          %v2844 = vpack.c.b16 %v2671, %v2671
          %v2845 = vpack.c.b16 %v2673, %v2672
          %v2846 = vpack.c.b16 %v2674, %v2674
          %v2847 = vpack.c.b16 %v2676, %v2675
          %v2848 = vpack.c.b16 %v2677, %v2677
          %v2849 = vpack.c.b16 %v2679, %v2678
          %v2850 = vpack.c.b16 %v2680, %v2680
          %v2851 = vpack.c.b16 %v2682, %v2681
          %v2852 = vpack.c.b16 %v2683, %v2683
          %v2853 = vpack.c.b16 %v2685, %v2684
          %v2854 = vpack.c.b16 %v2686, %v2686
          %v2855 = vpack.c.b16 %v2688, %v2687
          %v2856 = vpack.c.b16 %v2689, %v2689
          %v2857 = vpack.c.b16 %v2691, %v2690
          %v2858 = vpack.c.b16 %v2692, %v2692
          %v2859 = vpack.c.b16 %v2694, %v2693
          %v2860 = vpack.c.b16 %v2695, %v2695
          %v2861 = vpack.c.b16 %v2697, %v2696
          %v2862 = vpack.c.b16 %v2698, %v2698
          %v2863 = vpack.c.b16 %v2700, %v2699
          %v2864 = vpack.c.b16 %v2701, %v2701
          %v2865 = vpack.c.b16 %v2703, %v2702
          %v2866 = vpack.c.b16 %v2704, %v2704
          %v2867 = vpack.c.b16 %v2706, %v2705
          %v2868 = vpack.c.b16 %v2707, %v2707
          %v2869 = vpack.c.b16 %v2709, %v2708
          %v2870 = vpack.c.b16 %v2710, %v2710
          %v2871 = vpack.c.b16 %v2712, %v2711
          %v2872 = vpack.c.b16 %v2713, %v2713
          %v2873 = vpack.c.b16 %v2715, %v2714
          %v2874 = vpack.c.b16 %v2716, %v2716
          %v2875 = vpack.c.b16 %v2718, %v2717
          %v2876 = vpack.c.b16 %v2719, %v2719
          %v2877 = vpack.c.b16 %v2721, %v2720
          %v2878 = vpack.c.b16 %v2722, %v2722
          %v2879 = vpack.c.b16 %v2724, %v2723
          %v2880 = vpack.c.b16 %v2725, %v2725
          %v2881 = vpack.c.b16 %v2727, %v2726
          %v2882 = vpack.c.b16 %v2728, %v2728
          %v2883 = vpack.c.b16 %v2730, %v2729
          %v2884 = vpack.c.b16 %v2731, %v2731
          %v2885 = vpack.c.b16 %v2733, %v2732
          %v2886 = vpack.c.b16 %v2734, %v2734
          %v2887 = vpack.c.b16 %v2736, %v2735
          %v2888 = vpack.c.b16 %v2737, %v2737
          %v2889 = vpack.c.b16 %v2739, %v2738
          %v2890 = vpack.c.b16 %v2740, %v2740
          %v2891 = vpack.c.b16 %v2742, %v2741
          %v2892 = vpack.c.b16 %v2743, %v2743
          %v2893 = vpack.c.b16 %v2745, %v2744
          %v2894 = vpack.c.b16 %v2746, %v2746
          %v2895 = vpack.c.b16 %v2748, %v2747
          %v2896 = vpack.c.b16 %v2749, %v2749
          %v2897 = vpack.c.b16 %v2751, %v2750
          %v2898 = vpack.c.b16 %v2752, %v2752
          %v2899 = vpack.c.b16 %v2754, %v2753
          %v2900 = vpack.c.b16 %v2755, %v2755
          %v2901 = vpack.c.b16 %v2757, %v2756
          %v2902 = vpack.c.b16 %v2758, %v2758
          %v2903 = vpack.c.b16 %v2760, %v2759
          %v2904 = vpack.c.b16 %v2761, %v2761
          %v2905 = vpack.c.b16 %v2763, %v2762
          %v2906 = vpack.c.b16 %v2764, %v2764
          %v2907 = vpack.c.b16 %v2766, %v2765
          %v2908 = vpack.c.b16 %v2767, %v2767
          %v2909 = vpack.c.b16 %v2769, %v2768
          %v2910 = vpack.c.b16 %v2770, %v2770
          %v2911 = vpack.c.b16 %v2772, %v2771
          %v2912 = vpack.c.b16 %v2773, %v2773
          %v2913 = vpack.c.b16 %v2775, %v2774
          %v2914 = vpack.c.b16 %v2776, %v2776
          %v2915 = vpack.c.b16 %v2778, %v2777
          %v2916 = vpack.c.b16 %v2779, %v2779
          %v2917 = vpack.c.b16 %v2781, %v2780
          %v2918 = vpack.c.b16 %v2782, %v2782
          %v2919 = vpack.c.b16 %v2784, %v2783
          %v2920 = vpack.c.b16 %v2785, %v2785
          %v2921 = vpack.c.b16 %v2787, %v2786
          %v2922 = vpack.c.b16 %v2788, %v2788
          %v2923 = vpack.c.b16 %v2790, %v2789
          %v2924 = vpack.c.b16 %v2791, %v2791
          %v2925 = vpack.c.b16 %v2793, %v2792
          %v2926 = vpack.c.b16 %v2794, %v2794
          %v2927 = vpack.c.b16 %v2796, %v2795
          %v2928 = vpack.c.b16 %v2797, %v2797
          %v2929 = vpack.c.b16 %v2799, %v2798
          %v2930 = vpack.c.b16 %v2800, %v2800
          %v2931 = vpack.c.b16 %v2802, %v2801
          %v2932 = vpack.c.b16 %v2803, %v2803
          %v2933 = vpack.c.b16 %v2805, %v2804
          %v2934 = vpack.c.b16 %v2806, %v2806
          %3063 = vst [vmem:[%s256] sm:$0xff] %v2807
          %3064 = vst [vmem:[%s256 + $0x8] sm:$0xf] %v2808
          %3065 = vst [vmem:[%s256 + $0xc] sm:$0xff] %v2809
          %3066 = vst [vmem:[%s256 + $0x14] sm:$0xf] %v2810
          %3067 = vst [vmem:[%s256 + $0x18] sm:$0xff] %v2811
          %3068 = vst [vmem:[%s256 + $0x20] sm:$0xf] %v2812
          %3069 = vst [vmem:[%s256 + $0x24] sm:$0xff] %v2813
          %3070 = vst [vmem:[%s256 + $0x2c] sm:$0xf] %v2814
          %3071 = vst [vmem:[%s256 + $0x30] sm:$0xff] %v2815
          %3072 = vst [vmem:[%s256 + $0x38] sm:$0xf] %v2816
          %3073 = vst [vmem:[%s256 + $0x3c] sm:$0xff] %v2817
          %3074 = vst [vmem:[%s256 + $0x44] sm:$0xf] %v2818
          %3075 = vst [vmem:[%s256 + $0x48] sm:$0xff] %v2819
          %3076 = vst [vmem:[%s256 + $0x50] sm:$0xf] %v2820
          %3077 = vst [vmem:[%s256 + $0x54] sm:$0xff] %v2821
          %3078 = vst [vmem:[%s256 + $0x5c] sm:$0xf] %v2822
          %3079 = vst [vmem:[%s256 + $0x60] sm:$0xff] %v2823
          %3080 = vst [vmem:[%s256 + $0x68] sm:$0xf] %v2824
          %3081 = vst [vmem:[%s256 + $0x6c] sm:$0xff] %v2825
          %3082 = vst [vmem:[%s256 + $0x74] sm:$0xf] %v2826
          %3083 = vst [vmem:[%s256 + $0x78] sm:$0xff] %v2827
          %3084 = vst [vmem:[%s256 + $0x80] sm:$0xf] %v2828
          %3085 = vst [vmem:[%s256 + $0x84] sm:$0xff] %v2829
          %3086 = vst [vmem:[%s256 + $0x8c] sm:$0xf] %v2830
          %3087 = vst [vmem:[%s256 + $0x90] sm:$0xff] %v2831
          %3088 = vst [vmem:[%s256 + $0x98] sm:$0xf] %v2832
          %3089 = vst [vmem:[%s256 + $0x9c] sm:$0xff] %v2833
          %3090 = vst [vmem:[%s256 + $0xa4] sm:$0xf] %v2834
          %3091 = vst [vmem:[%s256 + $0xa8] sm:$0xff] %v2835
          %3092 = vst [vmem:[%s256 + $0xb0] sm:$0xf] %v2836
          %3093 = vst [vmem:[%s256 + $0xb4] sm:$0xff] %v2837
          %3094 = vst [vmem:[%s256 + $0xbc] sm:$0xf] %v2838
          %3095 = vst [vmem:[%s256 + $0xc0] sm:$0xff] %v2839
          %3096 = vst [vmem:[%s256 + $0xc8] sm:$0xf] %v2840
          %3097 = vst [vmem:[%s256 + $0xcc] sm:$0xff] %v2841
          %3098 = vst [vmem:[%s256 + $0xd4] sm:$0xf] %v2842
          %3099 = vst [vmem:[%s256 + $0xd8] sm:$0xff] %v2843
          %3100 = vst [vmem:[%s256 + $0xe0] sm:$0xf] %v2844
          %3101 = vst [vmem:[%s256 + $0xe4] sm:$0xff] %v2845
          %3102 = vst [vmem:[%s256 + $0xec] sm:$0xf] %v2846
          %3103 = vst [vmem:[%s256 + $0xf0] sm:$0xff] %v2847
          %3104 = vst [vmem:[%s256 + $0xf8] sm:$0xf] %v2848
          %3105 = vst [vmem:[%s256 + $0xfc] sm:$0xff] %v2849
          %3106 = vst [vmem:[%s256 + $0x104] sm:$0xf] %v2850
          %3107 = vst [vmem:[%s256 + $0x108] sm:$0xff] %v2851
          %3108 = vst [vmem:[%s256 + $0x110] sm:$0xf] %v2852
          %3109 = vst [vmem:[%s256 + $0x114] sm:$0xff] %v2853
          %3110 = vst [vmem:[%s256 + $0x11c] sm:$0xf] %v2854
          %3111 = vst [vmem:[%s256 + $0x120] sm:$0xff] %v2855
          %3112 = vst [vmem:[%s256 + $0x128] sm:$0xf] %v2856
          %3113 = vst [vmem:[%s256 + $0x12c] sm:$0xff] %v2857
          %3114 = vst [vmem:[%s256 + $0x134] sm:$0xf] %v2858
          %3115 = vst [vmem:[%s256 + $0x138] sm:$0xff] %v2859
          %3116 = vst [vmem:[%s256 + $0x140] sm:$0xf] %v2860
          %3117 = vst [vmem:[%s256 + $0x144] sm:$0xff] %v2861
          %3118 = vst [vmem:[%s256 + $0x14c] sm:$0xf] %v2862
          %3119 = vst [vmem:[%s256 + $0x150] sm:$0xff] %v2863
          %3120 = vst [vmem:[%s256 + $0x158] sm:$0xf] %v2864
          %3121 = vst [vmem:[%s256 + $0x15c] sm:$0xff] %v2865
          %3122 = vst [vmem:[%s256 + $0x164] sm:$0xf] %v2866
          %3123 = vst [vmem:[%s256 + $0x168] sm:$0xff] %v2867
          %3124 = vst [vmem:[%s256 + $0x170] sm:$0xf] %v2868
          %3125 = vst [vmem:[%s256 + $0x174] sm:$0xff] %v2869
          %3126 = vst [vmem:[%s256 + $0x17c] sm:$0xf] %v2870
          %3127 = vst [vmem:[%s256 + $0x180] sm:$0xff] %v2871
          %3128 = vst [vmem:[%s256 + $0x188] sm:$0xf] %v2872
          %3129 = vst [vmem:[%s256 + $0x18c] sm:$0xff] %v2873
          %3130 = vst [vmem:[%s256 + $0x194] sm:$0xf] %v2874
          %3131 = vst [vmem:[%s256 + $0x198] sm:$0xff] %v2875
          %3132 = vst [vmem:[%s256 + $0x1a0] sm:$0xf] %v2876
          %3133 = vst [vmem:[%s256 + $0x1a4] sm:$0xff] %v2877
          %3134 = vst [vmem:[%s256 + $0x1ac] sm:$0xf] %v2878
          %3135 = vst [vmem:[%s256 + $0x1b0] sm:$0xff] %v2879
          %3136 = vst [vmem:[%s256 + $0x1b8] sm:$0xf] %v2880
          %3137 = vst [vmem:[%s256 + $0x1bc] sm:$0xff] %v2881
          %3138 = vst [vmem:[%s256 + $0x1c4] sm:$0xf] %v2882
          %3139 = vst [vmem:[%s256 + $0x1c8] sm:$0xff] %v2883
          %3140 = vst [vmem:[%s256 + $0x1d0] sm:$0xf] %v2884
          %3141 = vst [vmem:[%s256 + $0x1d4] sm:$0xff] %v2885
          %3142 = vst [vmem:[%s256 + $0x1dc] sm:$0xf] %v2886
          %3143 = vst [vmem:[%s256 + $0x1e0] sm:$0xff] %v2887
          %3144 = vst [vmem:[%s256 + $0x1e8] sm:$0xf] %v2888
          %3145 = vst [vmem:[%s256 + $0x1ec] sm:$0xff] %v2889
          %3146 = vst [vmem:[%s256 + $0x1f4] sm:$0xf] %v2890
          %3147 = vst [vmem:[%s256 + $0x1f8] sm:$0xff] %v2891
          %3148 = vst [vmem:[%s256 + $0x200] sm:$0xf] %v2892
          %3149 = vst [vmem:[%s256 + $0x204] sm:$0xff] %v2893
          %3150 = vst [vmem:[%s256 + $0x20c] sm:$0xf] %v2894
          %3151 = vst [vmem:[%s256 + $0x210] sm:$0xff] %v2895
          %3152 = vst [vmem:[%s256 + $0x218] sm:$0xf] %v2896
          %3153 = vst [vmem:[%s256 + $0x21c] sm:$0xff] %v2897
          %3154 = vst [vmem:[%s256 + $0x224] sm:$0xf] %v2898
          %3155 = vst [vmem:[%s256 + $0x228] sm:$0xff] %v2899
          %3156 = vst [vmem:[%s256 + $0x230] sm:$0xf] %v2900
          %3157 = vst [vmem:[%s256 + $0x234] sm:$0xff] %v2901
          %3158 = vst [vmem:[%s256 + $0x23c] sm:$0xf] %v2902
          %3159 = vst [vmem:[%s256 + $0x240] sm:$0xff] %v2903
          %3160 = vst [vmem:[%s256 + $0x248] sm:$0xf] %v2904
          %3161 = vst [vmem:[%s256 + $0x24c] sm:$0xff] %v2905
          %3162 = vst [vmem:[%s256 + $0x254] sm:$0xf] %v2906
          %3163 = vst [vmem:[%s256 + $0x258] sm:$0xff] %v2907
          %3164 = vst [vmem:[%s256 + $0x260] sm:$0xf] %v2908
          %3165 = vst [vmem:[%s256 + $0x264] sm:$0xff] %v2909
          %3166 = vst [vmem:[%s256 + $0x26c] sm:$0xf] %v2910
          %3167 = vst [vmem:[%s256 + $0x270] sm:$0xff] %v2911
          %3168 = vst [vmem:[%s256 + $0x278] sm:$0xf] %v2912
          %3169 = vst [vmem:[%s256 + $0x27c] sm:$0xff] %v2913
          %3170 = vst [vmem:[%s256 + $0x284] sm:$0xf] %v2914
          %3171 = vst [vmem:[%s256 + $0x288] sm:$0xff] %v2915
          %3172 = vst [vmem:[%s256 + $0x290] sm:$0xf] %v2916
          %3173 = vst [vmem:[%s256 + $0x294] sm:$0xff] %v2917
          %3174 = vst [vmem:[%s256 + $0x29c] sm:$0xf] %v2918
          %3175 = vst [vmem:[%s256 + $0x2a0] sm:$0xff] %v2919
          %3176 = vst [vmem:[%s256 + $0x2a8] sm:$0xf] %v2920
          %3177 = vst [vmem:[%s256 + $0x2ac] sm:$0xff] %v2921
          %3178 = vst [vmem:[%s256 + $0x2b4] sm:$0xf] %v2922
          %3179 = vst [vmem:[%s256 + $0x2b8] sm:$0xff] %v2923
          %3180 = vst [vmem:[%s256 + $0x2c0] sm:$0xf] %v2924
          %3181 = vst [vmem:[%s256 + $0x2c4] sm:$0xff] %v2925
          %3182 = vst [vmem:[%s256 + $0x2cc] sm:$0xf] %v2926
          %3183 = vst [vmem:[%s256 + $0x2d0] sm:$0xff] %v2927
          %3184 = vst [vmem:[%s256 + $0x2d8] sm:$0xf] %v2928
          %3185 = vst [vmem:[%s256 + $0x2dc] sm:$0xff] %v2929
          %3186 = vst [vmem:[%s256 + $0x2e4] sm:$0xf] %v2930
          %3187 = vst [vmem:[%s256 + $0x2e8] sm:$0xff] %v2931
          %3188 = vst [vmem:[%s256 + $0x2f0] sm:$0xf] %v2932
          %3189 = vst [vmem:[%s256 + $0x2f4] sm:$0xff] %v2933
          %3190 = vst [vmem:[%s256 + $0x2fc] sm:$0xf] %v2934
        $region48: #{tpu_custom_call.1} parent=31 // pred_fallthru
          _
        %s3191 = sand.u32 %s132, 1
        %s3192 = scalar_lea.sflag [#allocation5], %s3191
        %s3193 = sand.u32 %s132, 1
        %s3194 = smul.addr %s3193, 768
        %s3195 = scalar_lea.vmem [#allocation8], %s3194
        // Predicated region
        $region49: #{tpu_custom_call.1} parent=31 // pred_check
          %p3196 = pneg %p142
        $region50: #{tpu_custom_call.1} parent=31 // pred_check_branch
          %3198 = sbr.rel (%p3196) target = $region52
        $region51: #{tpu_custom_call.1} parent=31 // pred_region
          %s3199 = smul.u32 64, %s26
          %s3200 = smul.u32 3, %s27
          %s3202 = ssub.s32 12288, 12288
          %3203 = vsyncadd %s3192, %s3202
          %s3204 = smul.addr %s3199, 6
          %s3205 = sadd.s32 %s3200, %s3204
          %s3206 = smul.addr %s3205, 64
          %s3207 = scalar_lea.hbm %s3, %s3206
          %s3208 = sshll.u32 %s3195, 4
          %s3209 = int_to_ptr.vmem [resolvable:$true] %s3208
          %3214 = dma.vmem_to_hbm [thread:$0]  %s3209, 12288, %s3207, %s3192, 192, 384, 12
        $region52: #{tpu_custom_call.1} parent=31 // pred_fallthru
          _
      $region32: #{tpu_custom_call.1} parent=5 // pred_fallthru
        _
      %p3215 = scmp.le.s32.totalorder 2, %s16
      // Predicated region
      $region53: #{tpu_custom_call.1} parent=5 // pred_check
        %p3216 = pneg %p3215
      $region54: #{tpu_custom_call.1} parent=5 // pred_check_branch
        %3218 = sbr.rel (%p3216) target = $region56
      $region55: #{tpu_custom_call.1} parent=5 // pred_region
        %s3219 = ssub.s32 %s16, 2
        // Predicated region
        $region57: #{tpu_custom_call.1} parent=55 // pred_check
          %p3220 = pneg %p148
        $region58: #{tpu_custom_call.1} parent=55 // pred_check_branch
          %3222 = sbr.rel (%p3220) target = $region60
        $region59: #{tpu_custom_call.1} parent=55 // pred_region
          %s3223 = sand.u32 %s133, 1
          %s3224 = scalar_lea.sflag [#allocation5], %s3223
          %s3225 = sand.u32 %s133, 1
          %s3226 = smul.addr %s3225, 768
          %s3227 = scalar_lea.vmem [#allocation8], %s3226
          %3228 = dma.done %s3224, 12288
        $region60: #{tpu_custom_call.1} parent=55 // pred_fallthru
          _
      $region56: #{tpu_custom_call.1} parent=5 // pred_fallthru
        _
    $region6: #{tpu_custom_call.1} parent=1 // loop_footer
      %s20 = sadd.s32 1, %s16
    $region7: #{tpu_custom_call.1} parent=1 // loop_footer_branch
      %15 = sbr.rel target = $region3
    $region8: #{tpu_custom_call.1} parent=1 // loop_exit
      _
    %3229 = vsyncpa [#allocation4], 1
    %s3230 = scalar_lea.sflag [#allocation4], 1
    %3231 = vsyncpa %s3230, 1
    %3232 = vsyncpa [#allocation7], 1
    %s3233 = scalar_lea.sflag [#allocation7], 1
    %3234 = vsyncpa %s3233, 1
    %3235 = vsyncpa [#allocation5], 1
    %s3236 = scalar_lea.sflag [#allocation5], 1
    %3237 = vsyncpa %s3236, 1

</llo_original>
